<compile_context>
chip_gen: v6e
topology: v6e:2x2x1
jax: 0.10.0
libtpu: 0.0.40
codegen_flags: <defaults>
</compile_context>

<pallas_src>
import functools

import jax
import jax.numpy as jnp
from jax import lax
from jax.experimental import pallas as pl
from jax.experimental.pallas import tpu as pltpu

LANE = 128
EPS = 1e-5


# --------------------------------------------------------------------------------------
# small helpers
# --------------------------------------------------------------------------------------
def _rup(n, m=LANE):
    return ((n + m - 1) // m) * m


def _pad_last(x, target):
    pad = target - x.shape[-1]
    if pad == 0:
        return x
    return jnp.pad(x, [(0, 0)] * (x.ndim - 1) + [(0, pad)])


def _fold_bn(bn, eps=EPS):
    g, b, m, v = bn
    s = g / jnp.sqrt(v + eps)
    return s, b - m * s


def _pick_batch_tiles(B, T, per_sample_bytes):
    """Grid = batch tiles.  Use as many steps as possible (DMA pipelining; on v7x the
    'parallel' axis also shards across both TensorCores) while keeping the matmul
    M = Bt*T >= 256 and >= ~2 MiB of activation per step.  Tiny inputs -> one step
    (splitting only halves MXU fill on single-TC v5e/v6e)."""
    best_nb, best_bt = 1, B
    for nb in range(2, B + 1):
        if B % nb:
            continue
        bt = B // nb
        if bt * T < 256 or bt * per_sample_bytes < (2 << 20):
            break
        best_nb, best_bt = nb, bt
    return best_nb, best_bt


def _vmem_limit(block_bytes, scratch_bytes=0):
    """Scoped-VMEM request computed from the actual block sizes: double-buffered
    pipeline operands + compute temporaries + headroom, clamped to 32..96 MiB."""
    need = 2 * block_bytes + scratch_bytes
    need = int(need * 1.25) + (4 << 20)
    return int(max(32 << 20, min(need, 96 << 20)))


# --------------------------------------------------------------------------------------
# Kernel 1: (dilated conv over `taps` centered taps) -> folded BN -> PReLU
#           taps == 1 covers the 1x1-conv Transition layers.
# --------------------------------------------------------------------------------------
def conv_bn_prelu_kernel(x_ref, w_ref, p_ref, o_ref, *, taps, dil, T):
    # x_ref : (Bt, T + (taps-1)*dil, Cin_p)  bf16, time-pre-padded
    # w_ref : (taps*Cin_p, Cout_p)           bf16, combined tap weights (padded layout)
    # p_ref : (3, Cout_p)                    f32  [scale, shift, prelu_alpha]
    # o_ref : (Bt, T, Cout_p)                bf16
    Bt, _, Cin = x_ref.shape
    Cout = o_ref.shape[-1]
    x = x_ref[...]
    # per-tap matmul accumulation (no taps-wide im2col slab in VMEM)
    acc = None
    for j in range(taps):
        xj = x[:, j * dil: j * dil + T, :].reshape(Bt * T, Cin)
        part = jnp.dot(xj, w_ref[j * Cin:(j + 1) * Cin, :],
                       preferred_element_type=jnp.float32)
        acc = part if acc is None else acc + part
    y = acc * p_ref[0:1, :] + p_ref[1:2, :]
    y = jnp.where(y >= 0.0, y, y * p_ref[2:3, :])
    o_ref[...] = y.reshape(Bt, T, Cout).astype(o_ref.dtype)


def conv_bn_prelu(x, w, pack, *, taps, dil):
    """x: (B,T,Cin_p) bf16 (padded layout).  w: (taps*Cin_p, Cout_p) bf16.  pack: (3,Cout_p) f32."""
    B, T, Cin_p = x.shape
    Cout_p = w.shape[1]
    pmax = dil * (taps - 1) // 2
    Tp = T + 2 * pmax
    xpad = jnp.pad(x, ((0, 0), (pmax, pmax), (0, 0))) if pmax else x

    per_sample = (Tp * Cin_p + T * Cout_p) * 2
    nb, Bt = _pick_batch_tiles(B, T, per_sample)
    block_bytes = Bt * per_sample + taps * Cin_p * Cout_p * 2 + 3 * Cout_p * 4
    scratch = Bt * T * (Cin_p * 2 + Cout_p * 8)          # per-tap slice + f32 acc

    kernel = functools.partial(conv_bn_prelu_kernel, taps=taps, dil=dil, T=T)
    return pl.pallas_call(
        kernel,
        out_shape=jax.ShapeDtypeStruct((B, T, Cout_p), jnp.bfloat16),
        grid_spec=pltpu.PrefetchScalarGridSpec(
            num_scalar_prefetch=0,
            grid=(nb,),
            in_specs=[
                pl.BlockSpec((Bt, Tp, Cin_p), lambda g: (g, 0, 0)),
                pl.BlockSpec((taps * Cin_p, Cout_p), lambda g: (0, 0)),
                pl.BlockSpec((3, Cout_p), lambda g: (0, 0)),
            ],
            out_specs=pl.BlockSpec((Bt, T, Cout_p), lambda g: (g, 0, 0)),
        ),
        compiler_params=pltpu.CompilerParams(
            dimension_semantics=("parallel",),
            vmem_limit_bytes=_vmem_limit(block_bytes, scratch)),
    )(xpad, w, pack)


# --------------------------------------------------------------------------------------
# Kernel 2: fused stage1 conv/BN/PReLU + (optional 1x1 downsample) residual + final PReLU
# --------------------------------------------------------------------------------------
def dense_stage2_kernel(*refs, taps, dil, T, use_ds):
    if use_ds:
        o0_ref, w1_ref, p1_ref, x_ref, wd_ref, pr_ref, o_ref = refs
    else:
        o0_ref, w1_ref, p1_ref, x_ref, pr_ref, o_ref = refs
        wd_ref = None
    # o0_ref : (Bt, T + (taps-1)*dil, G_p)  bf16  stage0 output, time-pre-padded
    # w1_ref : (taps*G_p, G_p)              bf16
    # p1_ref : (3, G_p)                     f32  [scale, shift, branch prelu alpha]
    # x_ref  : (Bt, T, Cin_p)               bf16 dense-layer input (residual source)
    # wd_ref : (Cin_p, G_p)                 bf16 downsample weight (only when use_ds)
    # pr_ref : (2, G_p)                     f32  [downsample bias, final prelu alpha]
    # o_ref  : (Bt, T, G_p)                 bf16
    Bt = o0_ref.shape[0]
    G = o0_ref.shape[-1]
    Cin = x_ref.shape[-1]

    o0 = o0_ref[...]
    acc = None
    for j in range(taps):
        xj = o0[:, j * dil: j * dil + T, :].reshape(Bt * T, G)
        part = jnp.dot(xj, w1_ref[j * G:(j + 1) * G, :],
                       preferred_element_type=jnp.float32)
        acc = part if acc is None else acc + part
    y = acc * p1_ref[0:1, :] + p1_ref[1:2, :]
    y = jnp.where(y >= 0.0, y, y * p1_ref[2:3, :])            # per-branch PReLU (stage1)

    if use_ds:
        xm = x_ref[...].reshape(Bt * T, Cin)                  # bf16 matmul input
        res = jnp.dot(xm, wd_ref[...], preferred_element_type=jnp.float32) + pr_ref[0:1, :]
    else:
        res = x_ref[...].reshape(Bt * T, G).astype(jnp.float32)  # identity residual

    y = y + res
    y = jnp.where(y >= 0.0, y, y * pr_ref[1:2, :])            # relu_final (PReLU)
    o_ref[...] = y.reshape(Bt, T, G).astype(o_ref.dtype)


def dense_stage2(out0, x_in, w1, p1, wd, pres, *, taps, dil):
    """out0: (B,T,G_p) bf16; x_in: (B,T,Cin_p) bf16; w1: (taps*G_p,G_p) bf16; wd: (Cin_p,G_p) or None."""
    B, T, G_p = out0.shape
    Cin_p = x_in.shape[-1]
    pmax = dil * (taps - 1) // 2
    Tp = T + 2 * pmax
    o0pad = jnp.pad(out0, ((0, 0), (pmax, pmax), (0, 0))) if pmax else out0
    use_ds = wd is not None

    per_sample = (Tp * G_p + T * Cin_p + T * G_p) * 2
    nb, Bt = _pick_batch_tiles(B, T, per_sample)
    block_bytes = (Bt * per_sample + taps * G_p * G_p * 2 + 5 * G_p * 4
                   + (Cin_p * G_p * 2 if use_ds else 0))
    scratch = Bt * T * (G_p * 2 + G_p * 8 + Cin_p * 2)

    in_specs = [
        pl.BlockSpec((Bt, Tp, G_p), lambda g: (g, 0, 0)),
        pl.BlockSpec((taps * G_p, G_p), lambda g: (0, 0)),
        pl.BlockSpec((3, G_p), lambda g: (0, 0)),
        pl.BlockSpec((Bt, T, Cin_p), lambda g: (g, 0, 0)),
    ]
    args = [o0pad, w1, p1, x_in]
    if use_ds:
        in_specs.append(pl.BlockSpec((Cin_p, G_p), lambda g: (0, 0)))
        args.append(wd)
    in_specs.append(pl.BlockSpec((2, G_p), lambda g: (0, 0)))
    args.append(pres)

    kernel = functools.partial(dense_stage2_kernel, taps=taps, dil=dil, T=T, use_ds=use_ds)
    return pl.pallas_call(
        kernel,
        out_shape=jax.ShapeDtypeStruct((B, T, G_p), jnp.bfloat16),
        grid_spec=pltpu.PrefetchScalarGridSpec(
            num_scalar_prefetch=0,
            grid=(nb,),
            in_specs=in_specs,
            out_specs=pl.BlockSpec((Bt, T, G_p), lambda g: (g, 0, 0)),
        ),
        compiler_params=pltpu.CompilerParams(
            dimension_semantics=("parallel",),
            vmem_limit_bytes=_vmem_limit(block_bytes, scratch)),
    )(*args)


# --------------------------------------------------------------------------------------
# Kernel 3: head = masked temporal mean (per-sample length) + norm5-folded Linear
# --------------------------------------------------------------------------------------
def head_kernel(len_ref, f_ref, w_ref, b_ref, o_ref):
    # len_ref : (B, 2) f32 [length, 1/max(length,1)]
    # f_ref   : (B, T, C_p) bf16 ; w_ref: (C_p, NC_p) f32 ; b_ref: (1, NC_p) f32
    # o_ref   : (B, NC_p) f32
    B, T, _ = f_ref.shape
    L = len_ref[:, 0:1]                                        # (B,1)
    inv = len_ref[:, 1:2]                                      # (B,1)
    t_idx = lax.broadcasted_iota(jnp.int32, (B, T), 1).astype(jnp.float32)
    mask = (t_idx < L).astype(jnp.float32)                     # (B,T) exact 0/1
    sums = jnp.sum(f_ref[...].astype(jnp.float32) * mask[:, :, None], axis=1)  # (B, C_p)
    pooled = sums * inv
    o_ref[...] = jnp.dot(pooled, w_ref[...],
                         preferred_element_type=jnp.float32) + b_ref[...]


def head(feats, lengths, hp, num_classes):
    """feats: (B,T,C_p) bf16 (padded layout); hp['w']: (C_p,NC_p) f32; hp['b']: (1,NC_p) f32."""
    B, T, C_p = feats.shape
    NC_p = hp['w'].shape[1]
    lens_f = lengths.astype(jnp.float32)
    leninfo = jnp.stack([lens_f, 1.0 / jnp.maximum(lens_f, 1.0)], axis=1)  # (B,2)

    block_bytes = B * 2 * 4 + B * T * C_p * 2 + C_p * NC_p * 4 + NC_p * 4 + B * NC_p * 4
    scratch = B * T * C_p * 4 + B * C_p * 4

    out = pl.pallas_call(
        head_kernel,
        out_shape=jax.ShapeDtypeStruct((B, NC_p), jnp.float32),
        grid_spec=pltpu.PrefetchScalarGridSpec(
            num_scalar_prefetch=0,
            grid=(1,),
            in_specs=[
                pl.BlockSpec((B, 2), lambda i: (0, 0)),
                pl.BlockSpec((B, T, C_p), lambda i: (0, 0, 0)),
                pl.BlockSpec((C_p, NC_p), lambda i: (0, 0)),
                pl.BlockSpec((1, NC_p), lambda i: (0, 0)),
            ],
            out_specs=pl.BlockSpec((B, NC_p), lambda i: (0, 0)),
        ),
        compiler_params=pltpu.CompilerParams(
            dimension_semantics=("arbitrary",),
            vmem_limit_bytes=_vmem_limit(block_bytes, scratch)),
    )(leninfo, feats, hp['w'], hp['b'])
    return out[:, :num_classes]


# --------------------------------------------------------------------------------------
# one-time parameter folding / padding (outside the per-call forward)
# --------------------------------------------------------------------------------------
def _scatter_rows_2d(w_real, pieces, rows_pad, cols_pad):
    """Place real input rows of a 1x1-conv-style weight at the padded-layout piece offsets."""
    cols_real = w_real.shape[1]
    w = jnp.zeros((rows_pad, cols_pad), jnp.float32)
    r0 = p0 = 0
    for real, padw in pieces:
        w = w.at[p0:p0 + real, :cols_real].set(w_real[r0:r0 + real, :])
        r0 += real
        p0 += padw
    return w


def _fold_branches(branches, ksizes, k_max, gb, in_pieces, cin_pad, eps=EPS):
    """Combined (k_max*cin_pad, G_p) bf16 tap weights (padded-row layout) + (3,G_p) f32 pack."""
    nk = len(ksizes)
    G = gb * nk
    G_p = _rup(G)
    w = jnp.zeros((k_max, cin_pad, G_p), jnp.float32)
    pack = jnp.zeros((3, G_p), jnp.float32)
    for bidx, (k, br) in enumerate(zip(ksizes, branches)):
        off = (k_max - k) // 2                                 # center smaller kernels
        wb = jnp.transpose(br['w'], (2, 1, 0))                 # (k, Cin_real, gb)
        r0 = p0 = 0
        for real, padw in in_pieces:
            w = w.at[off:off + k, p0:p0 + real, bidx * gb:(bidx + 1) * gb].set(
                wb[:, r0:r0 + real, :])
            r0 += real
            p0 += padw
        g_, b_, m_, v_ = br['bn']
        sc = g_ / jnp.sqrt(v_ + eps)
        pack = pack.at[0, bidx * gb:(bidx + 1) * gb].set(sc)
        pack = pack.at[1, bidx * gb:(bidx + 1) * gb].set(b_ + (br['b'] - m_) * sc)  # conv bias folded
        pack = pack.at[2, bidx * gb:(bidx + 1) * gb].set(br['alpha'])
    return w.reshape(k_max * cin_pad, G_p).astype(jnp.bfloat16), pack


def prepare_params(params, cfg):
    """One-time fold/pad/pack of all weights into the padded bf16 layout the kernels consume."""
    ksizes = cfg['kernel_size_set']
    k_max = max(ksizes)
    nk = len(ksizes)
    assert all(k % 2 == 1 for k in ksizes), \
        "combined-tap centering requires all-odd kernel sizes (e.g. [3,5,7])"

    IN, RS = cfg['input_size'], cfg['reduced_size']
    IN_p, RS_p = _rup(IN), _rup(RS)
    prep = {'blocks': [], 'trans': []}

    # transition0: 1x1 conv (no bias) + BN + PReLU
    tr = params['trans0']
    s, sh = _fold_bn(tr['bn'])
    w0 = _scatter_rows_2d(tr['w'].T, [(IN, IN_p)], IN_p, RS_p)
    pk = (jnp.zeros((3, RS_p), jnp.float32)
          .at[0, :RS].set(s).at[1, :RS].set(sh).at[2, :RS].set(tr['alpha']))
    prep['trans0'] = dict(w=w0.astype(jnp.bfloat16), pack=pk)

    pieces = [(RS, RS_p)]
    for bi, num_layers in enumerate(cfg['block_config']):
        growth = cfg['growth_rate_set'][bi]
        assert growth % nk == 0
        gb = growth // nk
        G_p = _rup(growth)
        blk = []
        for li in range(num_layers):
            lp = params['blocks'][bi][li]
            in_pieces = list(pieces) + [(growth, G_p)] * li
            cin_pad = sum(p for _, p in in_pieces)

            w0c, p0 = _fold_branches(lp['stage0'], ksizes, k_max, gb, in_pieces, cin_pad)
            w1c, p1 = _fold_branches(lp['stage1'], ksizes, k_max, gb, [(growth, G_p)], G_p)

            if lp['down'] is not None:
                wd = _scatter_rows_2d(lp['down']['w'].T, in_pieces, cin_pad, G_p)
                wd = wd.astype(jnp.bfloat16)
                bd = lp['down']['b']
            else:
                wd = None
                bd = jnp.zeros((growth,), jnp.float32)
            pres = (jnp.zeros((2, G_p), jnp.float32)
                    .at[0, :growth].set(bd).at[1, :growth].set(lp['alpha_final']))
            blk.append(dict(w0=w0c, p0=p0, w1=w1c, p1=p1, wd=wd, pres=pres))
        prep['blocks'].append(blk)
        pieces = list(pieces) + [(growth, G_p)] * num_layers

        if bi != len(cfg['block_config']) - 1:
            tr = params['trans'][bi]
            s, sh = _fold_bn(tr['bn'])
            c_pad = sum(p for _, p in pieces)
            wt = _scatter_rows_2d(tr['w'].T, pieces, c_pad, RS_p)
            pk = (jnp.zeros((3, RS_p), jnp.float32)
                  .at[0, :RS].set(s).at[1, :RS].set(sh).at[2, :RS].set(tr['alpha']))
            prep['trans'].append(dict(w=wt.astype(jnp.bfloat16), pack=pk))
            pieces = [(RS, RS_p)]

    # head: norm5 (eval BN) folded into the classifier (per-channel affine commutes with mean)
    s5, sh5 = _fold_bn(params['norm5'])
    wl, bl = params['linear']['w'], params['linear']['b']     # (NC, Creal), (NC,)
    NC = wl.shape[0]
    NC_p = _rup(NC)
    w_eff = s5[:, None] * wl.T                                # (Creal, NC)
    b_eff = sh5 @ wl.T + bl                                   # (NC,)
    c_pad = sum(p for _, p in pieces)
    wh = _scatter_rows_2d(w_eff, pieces, c_pad, NC_p)         # f32 (C_pad, NC_p)
    bh = jnp.zeros((1, NC_p), jnp.float32).at[0, :NC].set(b_eff)
    prep['head'] = dict(w=wh, b=bh)
    return prep


# --------------------------------------------------------------------------------------
# forward pass (Pallas kernels only; jit-able, all weight prep done beforehand)
# --------------------------------------------------------------------------------------
def dense_tcn_forward(x, lengths, prep, *, cfg):
    """x: (B, T, input_size) f32 -- channel-last equivalent of the PyTorch forward."""
    ksizes = cfg['kernel_size_set']
    k_max = max(ksizes)
    IN_p = _rup(cfg['input_size'])
    x = _pad_last(x, IN_p).astype(jnp.bfloat16)               # pad channels once, bf16 stream

    feats = conv_bn_prelu(x, prep['trans0']['w'], prep['trans0']['pack'], taps=1, dil=1)

    for bi, num_layers in enumerate(cfg['block_config']):
        block_feats = [feats]
        for li in range(num_layers):
            dil = cfg['dilation_size_set'][li % len(cfg['dilation_size_set'])]
            lp = prep['blocks'][bi][li]
            layer_in = block_feats[0] if li == 0 else jnp.concatenate(block_feats, axis=-1)

            out0 = conv_bn_prelu(layer_in, lp['w0'], lp['p0'], taps=k_max, dil=dil)
            new_feat = dense_stage2(out0, layer_in, lp['w1'], lp['p1'],
                                    lp['wd'], lp['pres'], taps=k_max, dil=dil)
            block_feats.append(new_feat)
        feats = jnp.concatenate(block_feats, axis=-1)
        if bi != len(cfg['block_config']) - 1:
            tp = prep['trans'][bi]
            feats = conv_bn_prelu(feats, tp['w'], tp['pack'], taps=1, dil=1)

    return head(feats, lengths, prep['head'], cfg['num_classes'])


# --------------------------------------------------------------------------------------
# pure-JAX reference (mirrors the PyTorch module; activations rounded to bf16 at the same
# stage boundaries as the kernel's bf16 activation stream, f32 accumulation everywhere)
# --------------------------------------------------------------------------------------
def _prelu(x, a):
    return jnp.where(x >= 0, x, x * a)


def _bn_eval(x, p):
    g, b, m, v = p
    return (x - m) * (g / jnp.sqrt(v + EPS)) + b


def _round_bf16(x):
    return x.astype(jnp.bfloat16).astype(jnp.float32)


def _conv1d_same_ref(x, w, bias, dil):
    # Conv1d(padding=(k-1)*dil) followed by symmetric Chomp1d((k-1)*dil)
    # == centered 'same' dilated conv (cross-correlation).
    B, T, _ = x.shape
    Cout, _, k = w.shape
    p = dil * (k - 1) // 2
    xp = jnp.pad(x, ((0, 0), (p, p), (0, 0)))
    y = jnp.zeros((B, T, Cout), jnp.float32)
    for i in range(k):
        y = y + jnp.einsum('btc,oc->bto',
                           xp[:, i * dil:i * dil + T, :].astype(jnp.bfloat16),
                           w[:, :, i].astype(jnp.bfloat16),
                           preferred_element_type=jnp.float32)
    return y + bias


def _temporal_conv_layer_ref(x, br, dil):
    y = _conv1d_same_ref(x, br['w'], br['b'], dil)
    y = _bn_eval(y, br['bn'])
    return _prelu(y, br['alpha'])


def _transition_ref(x, tr):
    y = jnp.einsum('btc,oc->bto', x.astype(jnp.bfloat16), tr['w'].astype(jnp.bfloat16),
                   preferred_element_type=jnp.float32)
    y = _bn_eval(y, tr['bn'])
    return _round_bf16(_prelu(y, tr['alpha']))


def _dense_layer_ref(x, lp, dil):
    out0 = _round_bf16(jnp.concatenate(
        [_temporal_conv_layer_ref(x, br, dil) for br in lp['stage0']], axis=-1))
    out1 = jnp.concatenate(
        [_temporal_conv_layer_ref(out0, br, dil) for br in lp['stage1']], axis=-1)
    if lp['down'] is not None:
        res = jnp.einsum('btc,oc->bto', x.astype(jnp.bfloat16),
                         lp['down']['w'].astype(jnp.bfloat16),
                         preferred_element_type=jnp.float32) + lp['down']['b']
    else:
        res = x
    return _round_bf16(_prelu(out1 + res, lp['alpha_final']))


def dense_tcn_ref(x, lengths, params, cfg):
    x = _round_bf16(x)
    feats = _transition_ref(x, params['trans0'])
    for bi, num_layers in enumerate(cfg['block_config']):
        block_feats = [feats]
        for li in range(num_layers):
            dil = cfg['dilation_size_set'][li % len(cfg['dilation_size_set'])]
            layer_in = jnp.concatenate(block_feats, axis=-1)
            block_feats.append(_dense_layer_ref(layer_in, params['blocks'][bi][li], dil))
        feats = jnp.concatenate(block_feats, axis=-1)
        if bi != len(cfg['block_config']) - 1:
            feats = _transition_ref(feats, params['trans'][bi])
    feats = _bn_eval(feats, params['norm5'])
    T = feats.shape[1]
    mask = (jnp.arange(T)[None, :, None] < lengths[:, None, None]).astype(jnp.float32)
    denom = jnp.maximum(lengths[:, None].astype(jnp.float32), 1.0)
    pooled = jnp.sum(feats * mask, axis=1) / denom
    return pooled @ params['linear']['w'].T + params['linear']['b']


# --------------------------------------------------------------------------------------
# deterministic parameter construction
# --------------------------------------------------------------------------------------
def init_params(key, cfg):
    ks = iter(jax.random.split(key, 256))

    def nrm(shape, scale=1.0):
        return scale * jax.random.normal(next(ks), shape, jnp.float32)

    def bn_params(c):
        return (1.0 + 0.1 * nrm((c,)),
                0.1 * nrm((c,)),
                0.1 * nrm((c,)),
                1.0 + 0.1 * jax.random.uniform(next(ks), (c,), jnp.float32))

    def conv_branch(cin, cout, k):
        return {'w': nrm((cout, cin, k), (2.0 / (k * cin)) ** 0.5),
                'b': 0.1 * nrm((cout,)),
                'bn': bn_params(cout),
                'alpha': 0.25 + 0.05 * nrm((cout,))}

    nk = len(cfg['kernel_size_set'])
    p = {'trans0': {'w': nrm((cfg['reduced_size'], cfg['input_size']),
                             (2.0 / cfg['input_size']) ** 0.5),
                    'bn': bn_params(cfg['reduced_size']),
                    'alpha': 0.25 + 0.05 * nrm((cfg['reduced_size'],))},
         'blocks': [], 'trans': []}
    num_features = cfg['reduced_size']
    for bi, num_layers in enumerate(cfg['block_config']):
        growth = cfg['growth_rate_set'][bi]
        gb = growth // nk
        layers = []
        for li in range(num_layers):
            cin = num_features + li * growth
            layers.append({
                'stage0': [conv_branch(cin, gb, k) for k in cfg['kernel_size_set']],
                'stage1': [conv_branch(growth, gb, k) for k in cfg['kernel_size_set']],
                'down': (None if cin == growth else
                         {'w': nrm((growth, cin), (1.0 / cin) ** 0.5),
                          'b': 0.1 * nrm((growth,))}),
                'alpha_final': 0.25 + 0.05 * nrm((growth,)),
            })
        p['blocks'].append(layers)
        num_features = num_features + num_layers * growth
        if bi != len(cfg['block_config']) - 1:
            p['trans'].append({'w': nrm((cfg['reduced_size'], num_features),
                                        (2.0 / num_features) ** 0.5),
                               'bn': bn_params(cfg['reduced_size']),
                               'alpha': 0.25 + 0.05 * nrm((cfg['reduced_size'],))})
            num_features = cfg['reduced_size']
    p['norm5'] = bn_params(num_features)
    p['linear'] = {'w': nrm((cfg['num_classes'], num_features), (1.0 / num_features) ** 0.5),
                   'b': 0.1 * nrm((cfg['num_classes'],))}
    return p


# --------------------------------------------------------------------------------------
if __name__ == "__main__":
    cfg = dict(block_config=[2],
               growth_rate_set=[64],
               input_size=80,
               reduced_size=64,
               num_classes=10,
               kernel_size_set=[3, 5],
               dilation_size_set=[1, 2])
    B, T = 2, 16

    key = jax.random.PRNGKey(0)
    kx, kp = jax.random.split(key)
    # PyTorch forward gets x as (B, T, C) and transposes to (B, C, T) for Conv1d;
    # the kernels here are channel-last, so we keep (B, T, C) throughout.
    x = jax.random.normal(kx, (B, T, cfg['input_size']), jnp.float32)
    lengths = jnp.array([16, 11], jnp.int32)
    params = init_params(kp, cfg)

    # one-time weight folding / padding / bf16 packing (outside the per-call forward)
    prep = prepare_params(params, cfg)
    fwd = jax.jit(functools.partial(dense_tcn_forward, cfg=cfg))

    out = jax.block_until_ready(fwd(x, lengths, prep))

    ref = dense_tcn_ref(x, lengths, params, cfg)
    assert out.shape == (B, cfg['num_classes'])
    max_err = float(jnp.max(jnp.abs(out - ref)))
    assert jnp.allclose(out, ref, atol=1e-2, rtol=1e-2), f"max abs err = {max_err}"
    print("KERNEL_OK")
</pallas_src>

<mosaic_0001>
module attributes {stable_mosaic.version = 11 : i64} {
  func.func @conv_bn_prelu_kernel(%arg0: i32, %arg1: memref<2x16x128xbf16, #tpu.memory_space<vmem>>, %arg2: memref<128x128xbf16, #tpu.memory_space<vmem>>, %arg3: memref<3x128xf32, #tpu.memory_space<vmem>>, %arg4: memref<2x16x128xbf16, #tpu.memory_space<vmem>>) attributes {dimension_semantics = [#tpu.dimension_semantics<parallel>], iteration_bounds = array<i64: 1>, scalar_prefetch = 0 : i64, scratch_operands = 0 : i64, tpu.core_type = #tpu.core_type<tc>, window_params = [{transform_indices = @transform_0, window_bounds = array<i64: 2, 16, 128>}, {pipeline_mode = #tpu.pipeline_mode<synchronous>, transform_indices = @transform_1, window_bounds = array<i64: 128, 128>}, {pipeline_mode = #tpu.pipeline_mode<synchronous>, transform_indices = @transform_2, window_bounds = array<i64: 3, 128>}, {transform_indices = @transform_3, window_bounds = array<i64: 2, 16, 128>}]} {
    %c0 = arith.constant 0 : index
    %c0_0 = arith.constant 0 : index
    %c0_1 = arith.constant 0 : index
    %0 = vector.load %arg1[%c0, %c0_0, %c0_1] : memref<2x16x128xbf16, #tpu.memory_space<vmem>>, vector<2x16x128xbf16>
    %1 = vector.shape_cast %0 : vector<2x16x128xbf16> to vector<32x128xbf16>
    %c0_2 = arith.constant 0 : index
    %c0_3 = arith.constant 0 : index
    %2 = vector.load %arg2[%c0_2, %c0_3] : memref<128x128xbf16, #tpu.memory_space<vmem>>, vector<128x128xbf16>
    %cst = arith.constant dense<0.000000e+00> : vector<32x128xf32>
    %3 = tpu.matmul %1, %2, %cst {dimension_numbers = #tpu.dot_dimension_numbers<[1], [0], [0], [1], [0, 0, 1, 1], [], []>} : vector<32x128xbf16>, vector<128x128xbf16>, vector<32x128xf32> -> vector<32x128xf32>
    %c0_4 = arith.constant 0 : index
    %c0_5 = arith.constant 0 : index
    %4 = vector.load %arg3[%c0_4, %c0_5] : memref<3x128xf32, #tpu.memory_space<vmem>>, vector<1x128xf32>
    %5 = vector.broadcast %4 : vector<1x128xf32> to vector<32x128xf32>
    %6 = arith.mulf %3, %5 : vector<32x128xf32>
    %c1 = arith.constant 1 : index
    %c0_6 = arith.constant 0 : index
    %7 = vector.load %arg3[%c1, %c0_6] : memref<3x128xf32, #tpu.memory_space<vmem>>, vector<1x128xf32>
    %8 = vector.broadcast %7 : vector<1x128xf32> to vector<32x128xf32>
    %9 = arith.addf %6, %8 : vector<32x128xf32>
    %cst_7 = arith.constant 0.000000e+00 : f32
    %10 = vector.broadcast %cst_7 : f32 to vector<32x128xf32>
    %11 = arith.cmpf oge, %9, %10 : vector<32x128xf32>
    %c2 = arith.constant 2 : index
    %c0_8 = arith.constant 0 : index
    %12 = vector.load %arg3[%c2, %c0_8] : memref<3x128xf32, #tpu.memory_space<vmem>>, vector<1x128xf32>
    %13 = vector.broadcast %12 : vector<1x128xf32> to vector<32x128xf32>
    %14 = arith.mulf %9, %13 : vector<32x128xf32>
    %15 = arith.select %11, %9, %14 : vector<32x128xi1>, vector<32x128xf32>
    %16 = vector.shape_cast %15 : vector<32x128xf32> to vector<2x16x128xf32>
    %17 = arith.truncf %16 : vector<2x16x128xf32> to vector<2x16x128xbf16>
    %c0_9 = arith.constant 0 : index
    %c0_10 = arith.constant 0 : index
    %c0_11 = arith.constant 0 : index
    %18 = vector.load %arg4[%c0_9, %c0_10, %c0_11] : memref<2x16x128xbf16, #tpu.memory_space<vmem>>, vector<2x16x128xbf16>
    tpu.vector_store %arg4[%c0_9, %c0_10, %c0_11], %17 {strides = array<i32>} : memref<2x16x128xbf16, #tpu.memory_space<vmem>>, vector<2x16x128xbf16>,
    return
  }
  func.func @transform_0(%arg0: i32) -> (i32, i32, i32) {
    %c0_i32 = arith.constant 0 : i32
    %c0_i32_0 = arith.constant 0 : i32
    %c0_i32_1 = arith.constant 0 : i32
    return %arg0, %c0_i32, %c0_i32_0 : i32, i32, i32
  }
  func.func @transform_1(%arg0: i32) -> (i32, i32) {
    %c0_i32 = arith.constant 0 : i32
    %c0_i32_0 = arith.constant 0 : i32
    %c0_i32_1 = arith.constant 0 : i32
    return %c0_i32, %c0_i32_0 : i32, i32
  }
  func.func @transform_2(%arg0: i32) -> (i32, i32) {
    %c0_i32 = arith.constant 0 : i32
    %c0_i32_0 = arith.constant 0 : i32
    %c0_i32_1 = arith.constant 0 : i32
    return %c0_i32, %c0_i32_0 : i32, i32
  }
  func.func @transform_3(%arg0: i32) -> (i32, i32, i32) {
    %c0_i32 = arith.constant 0 : i32
    %c0_i32_0 = arith.constant 0 : i32
    %c0_i32_1 = arith.constant 0 : i32
    return %arg0, %c0_i32, %c0_i32_0 : i32, i32, i32
  }
}

module attributes {stable_mosaic.version = 11 : i64} {
  func.func @conv_bn_prelu_kernel(%arg0: i32, %arg1: memref<2x20x128xbf16, #tpu.memory_space<vmem>>, %arg2: memref<640x128xbf16, #tpu.memory_space<vmem>>, %arg3: memref<3x128xf32, #tpu.memory_space<vmem>>, %arg4: memref<2x16x128xbf16, #tpu.memory_space<vmem>>) attributes {dimension_semantics = [#tpu.dimension_semantics<parallel>], iteration_bounds = array<i64: 1>, scalar_prefetch = 0 : i64, scratch_operands = 0 : i64, tpu.core_type = #tpu.core_type<tc>, window_params = [{transform_indices = @transform_0, window_bounds = array<i64: 2, 20, 128>}, {pipeline_mode = #tpu.pipeline_mode<synchronous>, transform_indices = @transform_1, window_bounds = array<i64: 640, 128>}, {pipeline_mode = #tpu.pipeline_mode<synchronous>, transform_indices = @transform_2, window_bounds = array<i64: 3, 128>}, {transform_indices = @transform_3, window_bounds = array<i64: 2, 16, 128>}]} {
    %c0 = arith.constant 0 : index
    %c0_0 = arith.constant 0 : index
    %c0_1 = arith.constant 0 : index
    %0 = vector.load %arg1[%c0, %c0_0, %c0_1] : memref<2x20x128xbf16, #tpu.memory_space<vmem>>, vector<2x20x128xbf16>
    %1 = vector.extract_strided_slice %0 {offsets = [0, 0, 0], sizes = [2, 16, 128], strides = [1, 1, 1]} : vector<2x20x128xbf16> to vector<2x16x128xbf16>
    %2 = vector.shape_cast %1 : vector<2x16x128xbf16> to vector<32x128xbf16>
    %c0_2 = arith.constant 0 : index
    %c0_3 = arith.constant 0 : index
    %3 = vector.load %arg2[%c0_2, %c0_3] : memref<640x128xbf16, #tpu.memory_space<vmem>>, vector<128x128xbf16>
    %cst = arith.constant dense<0.000000e+00> : vector<32x128xf32>
    %4 = tpu.matmul %2, %3, %cst {dimension_numbers = #tpu.dot_dimension_numbers<[1], [0], [0], [1], [0, 0, 1, 1], [], []>} : vector<32x128xbf16>, vector<128x128xbf16>, vector<32x128xf32> -> vector<32x128xf32>
    %5 = vector.extract_strided_slice %0 {offsets = [0, 1, 0], sizes = [2, 16, 128], strides = [1, 1, 1]} : vector<2x20x128xbf16> to vector<2x16x128xbf16>
    %6 = vector.shape_cast %5 : vector<2x16x128xbf16> to vector<32x128xbf16>
    %c128 = arith.constant 128 : index
    %c0_4 = arith.constant 0 : index
    %7 = vector.load %arg2[%c128, %c0_4] : memref<640x128xbf16, #tpu.memory_space<vmem>>, vector<128x128xbf16>
    %cst_5 = arith.constant dense<0.000000e+00> : vector<32x128xf32>
    %8 = tpu.matmul %6, %7, %cst_5 {dimension_numbers = #tpu.dot_dimension_numbers<[1], [0], [0], [1], [0, 0, 1, 1], [], []>} : vector<32x128xbf16>, vector<128x128xbf16>, vector<32x128xf32> -> vector<32x128xf32>
    %9 = arith.addf %4, %8 : vector<32x128xf32>
    %10 = vector.extract_strided_slice %0 {offsets = [0, 2, 0], sizes = [2, 16, 128], strides = [1, 1, 1]} : vector<2x20x128xbf16> to vector<2x16x128xbf16>
    %11 = vector.shape_cast %10 : vector<2x16x128xbf16> to vector<32x128xbf16>
    %c256 = arith.constant 256 : index
    %c0_6 = arith.constant 0 : index
    %12 = vector.load %arg2[%c256, %c0_6] : memref<640x128xbf16, #tpu.memory_space<vmem>>, vector<128x128xbf16>
    %cst_7 = arith.constant dense<0.000000e+00> : vector<32x128xf32>
    %13 = tpu.matmul %11, %12, %cst_7 {dimension_numbers = #tpu.dot_dimension_numbers<[1], [0], [0], [1], [0, 0, 1, 1], [], []>} : vector<32x128xbf16>, vector<128x128xbf16>, vector<32x128xf32> -> vector<32x128xf32>
    %14 = arith.addf %9, %13 : vector<32x128xf32>
    %15 = vector.extract_strided_slice %0 {offsets = [0, 3, 0], sizes = [2, 16, 128], strides = [1, 1, 1]} : vector<2x20x128xbf16> to vector<2x16x128xbf16>
    %16 = vector.shape_cast %15 : vector<2x16x128xbf16> to vector<32x128xbf16>
    %c384 = arith.constant 384 : index
    %c0_8 = arith.constant 0 : index
    %17 = vector.load %arg2[%c384, %c0_8] : memref<640x128xbf16, #tpu.memory_space<vmem>>, vector<128x128xbf16>
    %cst_9 = arith.constant dense<0.000000e+00> : vector<32x128xf32>
    %18 = tpu.matmul %16, %17, %cst_9 {dimension_numbers = #tpu.dot_dimension_numbers<[1], [0], [0], [1], [0, 0, 1, 1], [], []>} : vector<32x128xbf16>, vector<128x128xbf16>, vector<32x128xf32> -> vector<32x128xf32>
    %19 = arith.addf %14, %18 : vector<32x128xf32>
    %20 = vector.extract_strided_slice %0 {offsets = [0, 4, 0], sizes = [2, 16, 128], strides = [1, 1, 1]} : vector<2x20x128xbf16> to vector<2x16x128xbf16>
    %21 = vector.shape_cast %20 : vector<2x16x128xbf16> to vector<32x128xbf16>
    %c512 = arith.constant 512 : index
    %c0_10 = arith.constant 0 : index
    %22 = vector.load %arg2[%c512, %c0_10] : memref<640x128xbf16, #tpu.memory_space<vmem>>, vector<128x128xbf16>
    %cst_11 = arith.constant dense<0.000000e+00> : vector<32x128xf32>
    %23 = tpu.matmul %21, %22, %cst_11 {dimension_numbers = #tpu.dot_dimension_numbers<[1], [0], [0], [1], [0, 0, 1, 1], [], []>} : vector<32x128xbf16>, vector<128x128xbf16>, vector<32x128xf32> -> vector<32x128xf32>
    %24 = arith.addf %19, %23 : vector<32x128xf32>
    %c0_12 = arith.constant 0 : index
    %c0_13 = arith.constant 0 : index
    %25 = vector.load %arg3[%c0_12, %c0_13] : memref<3x128xf32, #tpu.memory_space<vmem>>, vector<1x128xf32>
    %26 = vector.broadcast %25 : vector<1x128xf32> to vector<32x128xf32>
    %27 = arith.mulf %24, %26 : vector<32x128xf32>
    %c1 = arith.constant 1 : index
    %c0_14 = arith.constant 0 : index
    %28 = vector.load %arg3[%c1, %c0_14] : memref<3x128xf32, #tpu.memory_space<vmem>>, vector<1x128xf32>
    %29 = vector.broadcast %28 : vector<1x128xf32> to vector<32x128xf32>
    %30 = arith.addf %27, %29 : vector<32x128xf32>
    %cst_15 = arith.constant 0.000000e+00 : f32
    %31 = vector.broadcast %cst_15 : f32 to vector<32x128xf32>
    %32 = arith.cmpf oge, %30, %31 : vector<32x128xf32>
    %c2 = arith.constant 2 : index
    %c0_16 = arith.constant 0 : index
    %33 = vector.load %arg3[%c2, %c0_16] : memref<3x128xf32, #tpu.memory_space<vmem>>, vector<1x128xf32>
    %34 = vector.broadcast %33 : vector<1x128xf32> to vector<32x128xf32>
    %35 = arith.mulf %30, %34 : vector<32x128xf32>
    %36 = arith.select %32, %30, %35 : vector<32x128xi1>, vector<32x128xf32>
    %37 = vector.shape_cast %36 : vector<32x128xf32> to vector<2x16x128xf32>
    %38 = arith.truncf %37 : vector<2x16x128xf32> to vector<2x16x128xbf16>
    %c0_17 = arith.constant 0 : index
    %c0_18 = arith.constant 0 : index
    %c0_19 = arith.constant 0 : index
    %39 = vector.load %arg4[%c0_17, %c0_18, %c0_19] : memref<2x16x128xbf16, #tpu.memory_space<vmem>>, vector<2x16x128xbf16>
    tpu.vector_store %arg4[%c0_17, %c0_18, %c0_19], %38 {strides = array<i32>} : memref<2x16x128xbf16, #tpu.memory_space<vmem>>, vector<2x16x128xbf16>,
    return
  }
  func.func @transform_0(%arg0: i32) -> (i32, i32, i32) {
    %c0_i32 = arith.constant 0 : i32
    %c0_i32_0 = arith.constant 0 : i32
    %c0_i32_1 = arith.constant 0 : i32
    return %arg0, %c0_i32, %c0_i32_0 : i32, i32, i32
  }
  func.func @transform_1(%arg0: i32) -> (i32, i32) {
    %c0_i32 = arith.constant 0 : i32
    %c0_i32_0 = arith.constant 0 : i32
    %c0_i32_1 = arith.constant 0 : i32
    return %c0_i32, %c0_i32_0 : i32, i32
  }
  func.func @transform_2(%arg0: i32) -> (i32, i32) {
    %c0_i32 = arith.constant 0 : i32
    %c0_i32_0 = arith.constant 0 : i32
    %c0_i32_1 = arith.constant 0 : i32
    return %c0_i32, %c0_i32_0 : i32, i32
  }
  func.func @transform_3(%arg0: i32) -> (i32, i32, i32) {
    %c0_i32 = arith.constant 0 : i32
    %c0_i32_0 = arith.constant 0 : i32
    %c0_i32_1 = arith.constant 0 : i32
    return %arg0, %c0_i32, %c0_i32_0 : i32, i32, i32
  }
}

module attributes {stable_mosaic.version = 11 : i64} {
  func.func @dense_stage2_kernel(%arg0: i32, %arg1: memref<2x20x128xbf16, #tpu.memory_space<vmem>>, %arg2: memref<640x128xbf16, #tpu.memory_space<vmem>>, %arg3: memref<3x128xf32, #tpu.memory_space<vmem>>, %arg4: memref<2x16x128xbf16, #tpu.memory_space<vmem>>, %arg5: memref<2x128xf32, #tpu.memory_space<vmem>>, %arg6: memref<2x16x128xbf16, #tpu.memory_space<vmem>>) attributes {dimension_semantics = [#tpu.dimension_semantics<parallel>], iteration_bounds = array<i64: 1>, scalar_prefetch = 0 : i64, scratch_operands = 0 : i64, tpu.core_type = #tpu.core_type<tc>, window_params = [{transform_indices = @transform_0, window_bounds = array<i64: 2, 20, 128>}, {pipeline_mode = #tpu.pipeline_mode<synchronous>, transform_indices = @transform_1, window_bounds = array<i64: 640, 128>}, {pipeline_mode = #tpu.pipeline_mode<synchronous>, transform_indices = @transform_2, window_bounds = array<i64: 3, 128>}, {transform_indices = @transform_3, window_bounds = array<i64: 2, 16, 128>}, {pipeline_mode = #tpu.pipeline_mode<synchronous>, transform_indices = @transform_4, window_bounds = array<i64: 2, 128>}, {transform_indices = @transform_5, window_bounds = array<i64: 2, 16, 128>}]} {
    %c0 = arith.constant 0 : index
    %c0_0 = arith.constant 0 : index
    %c0_1 = arith.constant 0 : index
    %0 = vector.load %arg1[%c0, %c0_0, %c0_1] : memref<2x20x128xbf16, #tpu.memory_space<vmem>>, vector<2x20x128xbf16>
    %1 = vector.extract_strided_slice %0 {offsets = [0, 0, 0], sizes = [2, 16, 128], strides = [1, 1, 1]} : vector<2x20x128xbf16> to vector<2x16x128xbf16>
    %2 = vector.shape_cast %1 : vector<2x16x128xbf16> to vector<32x128xbf16>
    %c0_2 = arith.constant 0 : index
    %c0_3 = arith.constant 0 : index
    %3 = vector.load %arg2[%c0_2, %c0_3] : memref<640x128xbf16, #tpu.memory_space<vmem>>, vector<128x128xbf16>
    %cst = arith.constant dense<0.000000e+00> : vector<32x128xf32>
    %4 = tpu.matmul %2, %3, %cst {dimension_numbers = #tpu.dot_dimension_numbers<[1], [0], [0], [1], [0, 0, 1, 1], [], []>} : vector<32x128xbf16>, vector<128x128xbf16>, vector<32x128xf32> -> vector<32x128xf32>
    %5 = vector.extract_strided_slice %0 {offsets = [0, 1, 0], sizes = [2, 16, 128], strides = [1, 1, 1]} : vector<2x20x128xbf16> to vector<2x16x128xbf16>
    %6 = vector.shape_cast %5 : vector<2x16x128xbf16> to vector<32x128xbf16>
    %c128 = arith.constant 128 : index
    %c0_4 = arith.constant 0 : index
    %7 = vector.load %arg2[%c128, %c0_4] : memref<640x128xbf16, #tpu.memory_space<vmem>>, vector<128x128xbf16>
    %cst_5 = arith.constant dense<0.000000e+00> : vector<32x128xf32>
    %8 = tpu.matmul %6, %7, %cst_5 {dimension_numbers = #tpu.dot_dimension_numbers<[1], [0], [0], [1], [0, 0, 1, 1], [], []>} : vector<32x128xbf16>, vector<128x128xbf16>, vector<32x128xf32> -> vector<32x128xf32>
    %9 = arith.addf %4, %8 : vector<32x128xf32>
    %10 = vector.extract_strided_slice %0 {offsets = [0, 2, 0], sizes = [2, 16, 128], strides = [1, 1, 1]} : vector<2x20x128xbf16> to vector<2x16x128xbf16>
    %11 = vector.shape_cast %10 : vector<2x16x128xbf16> to vector<32x128xbf16>
    %c256 = arith.constant 256 : index
    %c0_6 = arith.constant 0 : index
    %12 = vector.load %arg2[%c256, %c0_6] : memref<640x128xbf16, #tpu.memory_space<vmem>>, vector<128x128xbf16>
    %cst_7 = arith.constant dense<0.000000e+00> : vector<32x128xf32>
    %13 = tpu.matmul %11, %12, %cst_7 {dimension_numbers = #tpu.dot_dimension_numbers<[1], [0], [0], [1], [0, 0, 1, 1], [], []>} : vector<32x128xbf16>, vector<128x128xbf16>, vector<32x128xf32> -> vector<32x128xf32>
    %14 = arith.addf %9, %13 : vector<32x128xf32>
    %15 = vector.extract_strided_slice %0 {offsets = [0, 3, 0], sizes = [2, 16, 128], strides = [1, 1, 1]} : vector<2x20x128xbf16> to vector<2x16x128xbf16>
    %16 = vector.shape_cast %15 : vector<2x16x128xbf16> to vector<32x128xbf16>
    %c384 = arith.constant 384 : index
    %c0_8 = arith.constant 0 : index
    %17 = vector.load %arg2[%c384, %c0_8] : memref<640x128xbf16, #tpu.memory_space<vmem>>, vector<128x128xbf16>
    %cst_9 = arith.constant dense<0.000000e+00> : vector<32x128xf32>
    %18 = tpu.matmul %16, %17, %cst_9 {dimension_numbers = #tpu.dot_dimension_numbers<[1], [0], [0], [1], [0, 0, 1, 1], [], []>} : vector<32x128xbf16>, vector<128x128xbf16>, vector<32x128xf32> -> vector<32x128xf32>
    %19 = arith.addf %14, %18 : vector<32x128xf32>
    %20 = vector.extract_strided_slice %0 {offsets = [0, 4, 0], sizes = [2, 16, 128], strides = [1, 1, 1]} : vector<2x20x128xbf16> to vector<2x16x128xbf16>
    %21 = vector.shape_cast %20 : vector<2x16x128xbf16> to vector<32x128xbf16>
    %c512 = arith.constant 512 : index
    %c0_10 = arith.constant 0 : index
    %22 = vector.load %arg2[%c512, %c0_10] : memref<640x128xbf16, #tpu.memory_space<vmem>>, vector<128x128xbf16>
    %cst_11 = arith.constant dense<0.000000e+00> : vector<32x128xf32>
    %23 = tpu.matmul %21, %22, %cst_11 {dimension_numbers = #tpu.dot_dimension_numbers<[1], [0], [0], [1], [0, 0, 1, 1], [], []>} : vector<32x128xbf16>, vector<128x128xbf16>, vector<32x128xf32> -> vector<32x128xf32>
    %24 = arith.addf %19, %23 : vector<32x128xf32>
    %c0_12 = arith.constant 0 : index
    %c0_13 = arith.constant 0 : index
    %25 = vector.load %arg3[%c0_12, %c0_13] : memref<3x128xf32, #tpu.memory_space<vmem>>, vector<1x128xf32>
    %26 = vector.broadcast %25 : vector<1x128xf32> to vector<32x128xf32>
    %27 = arith.mulf %24, %26 : vector<32x128xf32>
    %c1 = arith.constant 1 : index
    %c0_14 = arith.constant 0 : index
    %28 = vector.load %arg3[%c1, %c0_14] : memref<3x128xf32, #tpu.memory_space<vmem>>, vector<1x128xf32>
    %29 = vector.broadcast %28 : vector<1x128xf32> to vector<32x128xf32>
    %30 = arith.addf %27, %29 : vector<32x128xf32>
    %cst_15 = arith.constant 0.000000e+00 : f32
    %31 = vector.broadcast %cst_15 : f32 to vector<32x128xf32>
    %32 = arith.cmpf oge, %30, %31 : vector<32x128xf32>
    %c2 = arith.constant 2 : index
    %c0_16 = arith.constant 0 : index
    %33 = vector.load %arg3[%c2, %c0_16] : memref<3x128xf32, #tpu.memory_space<vmem>>, vector<1x128xf32>
    %34 = vector.broadcast %33 : vector<1x128xf32> to vector<32x128xf32>
    %35 = arith.mulf %30, %34 : vector<32x128xf32>
    %36 = arith.select %32, %30, %35 : vector<32x128xi1>, vector<32x128xf32>
    %c0_17 = arith.constant 0 : index
    %c0_18 = arith.constant 0 : index
    %c0_19 = arith.constant 0 : index
    %37 = vector.load %arg4[%c0_17, %c0_18, %c0_19] : memref<2x16x128xbf16, #tpu.memory_space<vmem>>, vector<2x16x128xbf16>
    %38 = vector.shape_cast %37 : vector<2x16x128xbf16> to vector<32x128xbf16>
    %39 = arith.extf %38 : vector<32x128xbf16> to vector<32x128xf32>
    %40 = arith.addf %36, %39 : vector<32x128xf32>
    %cst_20 = arith.constant 0.000000e+00 : f32
    %41 = vector.broadcast %cst_20 : f32 to vector<32x128xf32>
    %42 = arith.cmpf oge, %40, %41 : vector<32x128xf32>
    %c1_21 = arith.constant 1 : index
    %c0_22 = arith.constant 0 : index
    %43 = vector.load %arg5[%c1_21, %c0_22] : memref<2x128xf32, #tpu.memory_space<vmem>>, vector<1x128xf32>
    %44 = vector.broadcast %43 : vector<1x128xf32> to vector<32x128xf32>
    %45 = arith.mulf %40, %44 : vector<32x128xf32>
    %46 = arith.select %42, %40, %45 : vector<32x128xi1>, vector<32x128xf32>
    %47 = vector.shape_cast %46 : vector<32x128xf32> to vector<2x16x128xf32>
    %48 = arith.truncf %47 : vector<2x16x128xf32> to vector<2x16x128xbf16>
    %c0_23 = arith.constant 0 : index
    %c0_24 = arith.constant 0 : index
    %c0_25 = arith.constant 0 : index
    %49 = vector.load %arg6[%c0_23, %c0_24, %c0_25] : memref<2x16x128xbf16, #tpu.memory_space<vmem>>, vector<2x16x128xbf16>
    tpu.vector_store %arg6[%c0_23, %c0_24, %c0_25], %48 {strides = array<i32>} : memref<2x16x128xbf16, #tpu.memory_space<vmem>>, vector<2x16x128xbf16>,
    return
  }
  func.func @transform_0(%arg0: i32) -> (i32, i32, i32) {
    %c0_i32 = arith.constant 0 : i32
    %c0_i32_0 = arith.constant 0 : i32
    %c0_i32_1 = arith.constant 0 : i32
    return %arg0, %c0_i32, %c0_i32_0 : i32, i32, i32
  }
  func.func @transform_1(%arg0: i32) -> (i32, i32) {
    %c0_i32 = arith.constant 0 : i32
    %c0_i32_0 = arith.constant 0 : i32
    %c0_i32_1 = arith.constant 0 : i32
    return %c0_i32, %c0_i32_0 : i32, i32
  }
  func.func @transform_2(%arg0: i32) -> (i32, i32) {
    %c0_i32 = arith.constant 0 : i32
    %c0_i32_0 = arith.constant 0 : i32
    %c0_i32_1 = arith.constant 0 : i32
    return %c0_i32, %c0_i32_0 : i32, i32
  }
  func.func @transform_3(%arg0: i32) -> (i32, i32, i32) {
    %c0_i32 = arith.constant 0 : i32
    %c0_i32_0 = arith.constant 0 : i32
    %c0_i32_1 = arith.constant 0 : i32
    return %arg0, %c0_i32, %c0_i32_0 : i32, i32, i32
  }
  func.func @transform_4(%arg0: i32) -> (i32, i32) {
    %c0_i32 = arith.constant 0 : i32
    %c0_i32_0 = arith.constant 0 : i32
    %c0_i32_1 = arith.constant 0 : i32
    return %c0_i32, %c0_i32_0 : i32, i32
  }
  func.func @transform_5(%arg0: i32) -> (i32, i32, i32) {
    %c0_i32 = arith.constant 0 : i32
    %c0_i32_0 = arith.constant 0 : i32
    %c0_i32_1 = arith.constant 0 : i32
    return %arg0, %c0_i32, %c0_i32_0 : i32, i32, i32
  }
}

module attributes {stable_mosaic.version = 11 : i64} {
  func.func @conv_bn_prelu_kernel(%arg0: i32, %arg1: memref<2x24x256xbf16, #tpu.memory_space<vmem>>, %arg2: memref<1280x128xbf16, #tpu.memory_space<vmem>>, %arg3: memref<3x128xf32, #tpu.memory_space<vmem>>, %arg4: memref<2x16x128xbf16, #tpu.memory_space<vmem>>) attributes {dimension_semantics = [#tpu.dimension_semantics<parallel>], iteration_bounds = array<i64: 1>, scalar_prefetch = 0 : i64, scratch_operands = 0 : i64, tpu.core_type = #tpu.core_type<tc>, window_params = [{transform_indices = @transform_0, window_bounds = array<i64: 2, 24, 256>}, {pipeline_mode = #tpu.pipeline_mode<synchronous>, transform_indices = @transform_1, window_bounds = array<i64: 1280, 128>}, {pipeline_mode = #tpu.pipeline_mode<synchronous>, transform_indices = @transform_2, window_bounds = array<i64: 3, 128>}, {transform_indices = @transform_3, window_bounds = array<i64: 2, 16, 128>}]} {
    %c0 = arith.constant 0 : index
    %c0_0 = arith.constant 0 : index
    %c0_1 = arith.constant 0 : index
    %0 = vector.load %arg1[%c0, %c0_0, %c0_1] : memref<2x24x256xbf16, #tpu.memory_space<vmem>>, vector<2x24x256xbf16>
    %1 = vector.extract_strided_slice %0 {offsets = [0, 0, 0], sizes = [2, 16, 256], strides = [1, 1, 1]} : vector<2x24x256xbf16> to vector<2x16x256xbf16>
    %2 = vector.shape_cast %1 : vector<2x16x256xbf16> to vector<32x256xbf16>
    %c0_2 = arith.constant 0 : index
    %c0_3 = arith.constant 0 : index
    %3 = vector.load %arg2[%c0_2, %c0_3] : memref<1280x128xbf16, #tpu.memory_space<vmem>>, vector<256x128xbf16>
    %cst = arith.constant dense<0.000000e+00> : vector<32x128xf32>
    %4 = tpu.matmul %2, %3, %cst {dimension_numbers = #tpu.dot_dimension_numbers<[1], [0], [0], [1], [0, 0, 1, 1], [], []>} : vector<32x256xbf16>, vector<256x128xbf16>, vector<32x128xf32> -> vector<32x128xf32>
    %5 = vector.extract_strided_slice %0 {offsets = [0, 2, 0], sizes = [2, 16, 256], strides = [1, 1, 1]} : vector<2x24x256xbf16> to vector<2x16x256xbf16>
    %6 = vector.shape_cast %5 : vector<2x16x256xbf16> to vector<32x256xbf16>
    %c256 = arith.constant 256 : index
    %c0_4 = arith.constant 0 : index
    %7 = vector.load %arg2[%c256, %c0_4] : memref<1280x128xbf16, #tpu.memory_space<vmem>>, vector<256x128xbf16>
    %cst_5 = arith.constant dense<0.000000e+00> : vector<32x128xf32>
    %8 = tpu.matmul %6, %7, %cst_5 {dimension_numbers = #tpu.dot_dimension_numbers<[1], [0], [0], [1], [0, 0, 1, 1], [], []>} : vector<32x256xbf16>, vector<256x128xbf16>, vector<32x128xf32> -> vector<32x128xf32>
    %9 = arith.addf %4, %8 : vector<32x128xf32>
    %10 = vector.extract_strided_slice %0 {offsets = [0, 4, 0], sizes = [2, 16, 256], strides = [1, 1, 1]} : vector<2x24x256xbf16> to vector<2x16x256xbf16>
    %11 = vector.shape_cast %10 : vector<2x16x256xbf16> to vector<32x256xbf16>
    %c512 = arith.constant 512 : index
    %c0_6 = arith.constant 0 : index
    %12 = vector.load %arg2[%c512, %c0_6] : memref<1280x128xbf16, #tpu.memory_space<vmem>>, vector<256x128xbf16>
    %cst_7 = arith.constant dense<0.000000e+00> : vector<32x128xf32>
    %13 = tpu.matmul %11, %12, %cst_7 {dimension_numbers = #tpu.dot_dimension_numbers<[1], [0], [0], [1], [0, 0, 1, 1], [], []>} : vector<32x256xbf16>, vector<256x128xbf16>, vector<32x128xf32> -> vector<32x128xf32>
    %14 = arith.addf %9, %13 : vector<32x128xf32>
    %15 = vector.extract_strided_slice %0 {offsets = [0, 6, 0], sizes = [2, 16, 256], strides = [1, 1, 1]} : vector<2x24x256xbf16> to vector<2x16x256xbf16>
    %16 = vector.shape_cast %15 : vector<2x16x256xbf16> to vector<32x256xbf16>
    %c768 = arith.constant 768 : index
    %c0_8 = arith.constant 0 : index
    %17 = vector.load %arg2[%c768, %c0_8] : memref<1280x128xbf16, #tpu.memory_space<vmem>>, vector<256x128xbf16>
    %cst_9 = arith.constant dense<0.000000e+00> : vector<32x128xf32>
    %18 = tpu.matmul %16, %17, %cst_9 {dimension_numbers = #tpu.dot_dimension_numbers<[1], [0], [0], [1], [0, 0, 1, 1], [], []>} : vector<32x256xbf16>, vector<256x128xbf16>, vector<32x128xf32> -> vector<32x128xf32>
    %19 = arith.addf %14, %18 : vector<32x128xf32>
    %20 = vector.extract_strided_slice %0 {offsets = [0, 8, 0], sizes = [2, 16, 256], strides = [1, 1, 1]} : vector<2x24x256xbf16> to vector<2x16x256xbf16>
    %21 = vector.shape_cast %20 : vector<2x16x256xbf16> to vector<32x256xbf16>
    %c1024 = arith.constant 1024 : index
    %c0_10 = arith.constant 0 : index
    %22 = vector.load %arg2[%c1024, %c0_10] : memref<1280x128xbf16, #tpu.memory_space<vmem>>, vector<256x128xbf16>
    %cst_11 = arith.constant dense<0.000000e+00> : vector<32x128xf32>
    %23 = tpu.matmul %21, %22, %cst_11 {dimension_numbers = #tpu.dot_dimension_numbers<[1], [0], [0], [1], [0, 0, 1, 1], [], []>} : vector<32x256xbf16>, vector<256x128xbf16>, vector<32x128xf32> -> vector<32x128xf32>
    %24 = arith.addf %19, %23 : vector<32x128xf32>
    %c0_12 = arith.constant 0 : index
    %c0_13 = arith.constant 0 : index
    %25 = vector.load %arg3[%c0_12, %c0_13] : memref<3x128xf32, #tpu.memory_space<vmem>>, vector<1x128xf32>
    %26 = vector.broadcast %25 : vector<1x128xf32> to vector<32x128xf32>
    %27 = arith.mulf %24, %26 : vector<32x128xf32>
    %c1 = arith.constant 1 : index
    %c0_14 = arith.constant 0 : index
    %28 = vector.load %arg3[%c1, %c0_14] : memref<3x128xf32, #tpu.memory_space<vmem>>, vector<1x128xf32>
    %29 = vector.broadcast %28 : vector<1x128xf32> to vector<32x128xf32>
    %30 = arith.addf %27, %29 : vector<32x128xf32>
    %cst_15 = arith.constant 0.000000e+00 : f32
    %31 = vector.broadcast %cst_15 : f32 to vector<32x128xf32>
    %32 = arith.cmpf oge, %30, %31 : vector<32x128xf32>
    %c2 = arith.constant 2 : index
    %c0_16 = arith.constant 0 : index
    %33 = vector.load %arg3[%c2, %c0_16] : memref<3x128xf32, #tpu.memory_space<vmem>>, vector<1x128xf32>
    %34 = vector.broadcast %33 : vector<1x128xf32> to vector<32x128xf32>
    %35 = arith.mulf %30, %34 : vector<32x128xf32>
    %36 = arith.select %32, %30, %35 : vector<32x128xi1>, vector<32x128xf32>
    %37 = vector.shape_cast %36 : vector<32x128xf32> to vector<2x16x128xf32>
    %38 = arith.truncf %37 : vector<2x16x128xf32> to vector<2x16x128xbf16>
    %c0_17 = arith.constant 0 : index
    %c0_18 = arith.constant 0 : index
    %c0_19 = arith.constant 0 : index
    %39 = vector.load %arg4[%c0_17, %c0_18, %c0_19] : memref<2x16x128xbf16, #tpu.memory_space<vmem>>, vector<2x16x128xbf16>
    tpu.vector_store %arg4[%c0_17, %c0_18, %c0_19], %38 {strides = array<i32>} : memref<2x16x128xbf16, #tpu.memory_space<vmem>>, vector<2x16x128xbf16>,
    return
  }
  func.func @transform_0(%arg0: i32) -> (i32, i32, i32) {
    %c0_i32 = arith.constant 0 : i32
    %c0_i32_0 = arith.constant 0 : i32
    %c0_i32_1 = arith.constant 0 : i32
    return %arg0, %c0_i32, %c0_i32_0 : i32, i32, i32
  }
  func.func @transform_1(%arg0: i32) -> (i32, i32) {
    %c0_i32 = arith.constant 0 : i32
    %c0_i32_0 = arith.constant 0 : i32
    %c0_i32_1 = arith.constant 0 : i32
    return %c0_i32, %c0_i32_0 : i32, i32
  }
  func.func @transform_2(%arg0: i32) -> (i32, i32) {
    %c0_i32 = arith.constant 0 : i32
    %c0_i32_0 = arith.constant 0 : i32
    %c0_i32_1 = arith.constant 0 : i32
    return %c0_i32, %c0_i32_0 : i32, i32
  }
  func.func @transform_3(%arg0: i32) -> (i32, i32, i32) {
    %c0_i32 = arith.constant 0 : i32
    %c0_i32_0 = arith.constant 0 : i32
    %c0_i32_1 = arith.constant 0 : i32
    return %arg0, %c0_i32, %c0_i32_0 : i32, i32, i32
  }
}

module attributes {stable_mosaic.version = 11 : i64} {
  func.func @dense_stage2_kernel(%arg0: i32, %arg1: memref<2x24x128xbf16, #tpu.memory_space<vmem>>, %arg2: memref<640x128xbf16, #tpu.memory_space<vmem>>, %arg3: memref<3x128xf32, #tpu.memory_space<vmem>>, %arg4: memref<2x16x256xbf16, #tpu.memory_space<vmem>>, %arg5: memref<256x128xbf16, #tpu.memory_space<vmem>>, %arg6: memref<2x128xf32, #tpu.memory_space<vmem>>, %arg7: memref<2x16x128xbf16, #tpu.memory_space<vmem>>) attributes {dimension_semantics = [#tpu.dimension_semantics<parallel>], iteration_bounds = array<i64: 1>, scalar_prefetch = 0 : i64, scratch_operands = 0 : i64, tpu.core_type = #tpu.core_type<tc>, window_params = [{transform_indices = @transform_0, window_bounds = array<i64: 2, 24, 128>}, {pipeline_mode = #tpu.pipeline_mode<synchronous>, transform_indices = @transform_1, window_bounds = array<i64: 640, 128>}, {pipeline_mode = #tpu.pipeline_mode<synchronous>, transform_indices = @transform_2, window_bounds = array<i64: 3, 128>}, {transform_indices = @transform_3, window_bounds = array<i64: 2, 16, 256>}, {pipeline_mode = #tpu.pipeline_mode<synchronous>, transform_indices = @transform_4, window_bounds = array<i64: 256, 128>}, {pipeline_mode = #tpu.pipeline_mode<synchronous>, transform_indices = @transform_5, window_bounds = array<i64: 2, 128>}, {transform_indices = @transform_6, window_bounds = array<i64: 2, 16, 128>}]} {
    %c0 = arith.constant 0 : index
    %c0_0 = arith.constant 0 : index
    %c0_1 = arith.constant 0 : index
    %0 = vector.load %arg1[%c0, %c0_0, %c0_1] : memref<2x24x128xbf16, #tpu.memory_space<vmem>>, vector<2x24x128xbf16>
    %1 = vector.extract_strided_slice %0 {offsets = [0, 0, 0], sizes = [2, 16, 128], strides = [1, 1, 1]} : vector<2x24x128xbf16> to vector<2x16x128xbf16>
    %2 = vector.shape_cast %1 : vector<2x16x128xbf16> to vector<32x128xbf16>
    %c0_2 = arith.constant 0 : index
    %c0_3 = arith.constant 0 : index
    %3 = vector.load %arg2[%c0_2, %c0_3] : memref<640x128xbf16, #tpu.memory_space<vmem>>, vector<128x128xbf16>
    %cst = arith.constant dense<0.000000e+00> : vector<32x128xf32>
    %4 = tpu.matmul %2, %3, %cst {dimension_numbers = #tpu.dot_dimension_numbers<[1], [0], [0], [1], [0, 0, 1, 1], [], []>} : vector<32x128xbf16>, vector<128x128xbf16>, vector<32x128xf32> -> vector<32x128xf32>
    %5 = vector.extract_strided_slice %0 {offsets = [0, 2, 0], sizes = [2, 16, 128], strides = [1, 1, 1]} : vector<2x24x128xbf16> to vector<2x16x128xbf16>
    %6 = vector.shape_cast %5 : vector<2x16x128xbf16> to vector<32x128xbf16>
    %c128 = arith.constant 128 : index
    %c0_4 = arith.constant 0 : index
    %7 = vector.load %arg2[%c128, %c0_4] : memref<640x128xbf16, #tpu.memory_space<vmem>>, vector<128x128xbf16>
    %cst_5 = arith.constant dense<0.000000e+00> : vector<32x128xf32>
    %8 = tpu.matmul %6, %7, %cst_5 {dimension_numbers = #tpu.dot_dimension_numbers<[1], [0], [0], [1], [0, 0, 1, 1], [], []>} : vector<32x128xbf16>, vector<128x128xbf16>, vector<32x128xf32> -> vector<32x128xf32>
    %9 = arith.addf %4, %8 : vector<32x128xf32>
    %10 = vector.extract_strided_slice %0 {offsets = [0, 4, 0], sizes = [2, 16, 128], strides = [1, 1, 1]} : vector<2x24x128xbf16> to vector<2x16x128xbf16>
    %11 = vector.shape_cast %10 : vector<2x16x128xbf16> to vector<32x128xbf16>
    %c256 = arith.constant 256 : index
    %c0_6 = arith.constant 0 : index
    %12 = vector.load %arg2[%c256, %c0_6] : memref<640x128xbf16, #tpu.memory_space<vmem>>, vector<128x128xbf16>
    %cst_7 = arith.constant dense<0.000000e+00> : vector<32x128xf32>
    %13 = tpu.matmul %11, %12, %cst_7 {dimension_numbers = #tpu.dot_dimension_numbers<[1], [0], [0], [1], [0, 0, 1, 1], [], []>} : vector<32x128xbf16>, vector<128x128xbf16>, vector<32x128xf32> -> vector<32x128xf32>
    %14 = arith.addf %9, %13 : vector<32x128xf32>
    %15 = vector.extract_strided_slice %0 {offsets = [0, 6, 0], sizes = [2, 16, 128], strides = [1, 1, 1]} : vector<2x24x128xbf16> to vector<2x16x128xbf16>
    %16 = vector.shape_cast %15 : vector<2x16x128xbf16> to vector<32x128xbf16>
    %c384 = arith.constant 384 : index
    %c0_8 = arith.constant 0 : index
    %17 = vector.load %arg2[%c384, %c0_8] : memref<640x128xbf16, #tpu.memory_space<vmem>>, vector<128x128xbf16>
    %cst_9 = arith.constant dense<0.000000e+00> : vector<32x128xf32>
    %18 = tpu.matmul %16, %17, %cst_9 {dimension_numbers = #tpu.dot_dimension_numbers<[1], [0], [0], [1], [0, 0, 1, 1], [], []>} : vector<32x128xbf16>, vector<128x128xbf16>, vector<32x128xf32> -> vector<32x128xf32>
    %19 = arith.addf %14, %18 : vector<32x128xf32>
    %20 = vector.extract_strided_slice %0 {offsets = [0, 8, 0], sizes = [2, 16, 128], strides = [1, 1, 1]} : vector<2x24x128xbf16> to vector<2x16x128xbf16>
    %21 = vector.shape_cast %20 : vector<2x16x128xbf16> to vector<32x128xbf16>
    %c512 = arith.constant 512 : index
    %c0_10 = arith.constant 0 : index
    %22 = vector.load %arg2[%c512, %c0_10] : memref<640x128xbf16, #tpu.memory_space<vmem>>, vector<128x128xbf16>
    %cst_11 = arith.constant dense<0.000000e+00> : vector<32x128xf32>
    %23 = tpu.matmul %21, %22, %cst_11 {dimension_numbers = #tpu.dot_dimension_numbers<[1], [0], [0], [1], [0, 0, 1, 1], [], []>} : vector<32x128xbf16>, vector<128x128xbf16>, vector<32x128xf32> -> vector<32x128xf32>
    %24 = arith.addf %19, %23 : vector<32x128xf32>
    %c0_12 = arith.constant 0 : index
    %c0_13 = arith.constant 0 : index
    %25 = vector.load %arg3[%c0_12, %c0_13] : memref<3x128xf32, #tpu.memory_space<vmem>>, vector<1x128xf32>
    %26 = vector.broadcast %25 : vector<1x128xf32> to vector<32x128xf32>
    %27 = arith.mulf %24, %26 : vector<32x128xf32>
    %c1 = arith.constant 1 : index
    %c0_14 = arith.constant 0 : index
    %28 = vector.load %arg3[%c1, %c0_14] : memref<3x128xf32, #tpu.memory_space<vmem>>, vector<1x128xf32>
    %29 = vector.broadcast %28 : vector<1x128xf32> to vector<32x128xf32>
    %30 = arith.addf %27, %29 : vector<32x128xf32>
    %cst_15 = arith.constant 0.000000e+00 : f32
    %31 = vector.broadcast %cst_15 : f32 to vector<32x128xf32>
    %32 = arith.cmpf oge, %30, %31 : vector<32x128xf32>
    %c2 = arith.constant 2 : index
    %c0_16 = arith.constant 0 : index
    %33 = vector.load %arg3[%c2, %c0_16] : memref<3x128xf32, #tpu.memory_space<vmem>>, vector<1x128xf32>
    %34 = vector.broadcast %33 : vector<1x128xf32> to vector<32x128xf32>
    %35 = arith.mulf %30, %34 : vector<32x128xf32>
    %36 = arith.select %32, %30, %35 : vector<32x128xi1>, vector<32x128xf32>
    %c0_17 = arith.constant 0 : index
    %c0_18 = arith.constant 0 : index
    %c0_19 = arith.constant 0 : index
    %37 = vector.load %arg4[%c0_17, %c0_18, %c0_19] : memref<2x16x256xbf16, #tpu.memory_space<vmem>>, vector<2x16x256xbf16>
    %38 = vector.shape_cast %37 : vector<2x16x256xbf16> to vector<32x256xbf16>
    %c0_20 = arith.constant 0 : index
    %c0_21 = arith.constant 0 : index
    %39 = vector.load %arg5[%c0_20, %c0_21] : memref<256x128xbf16, #tpu.memory_space<vmem>>, vector<256x128xbf16>
    %cst_22 = arith.constant dense<0.000000e+00> : vector<32x128xf32>
    %40 = tpu.matmul %38, %39, %cst_22 {dimension_numbers = #tpu.dot_dimension_numbers<[1], [0], [0], [1], [0, 0, 1, 1], [], []>} : vector<32x256xbf16>, vector<256x128xbf16>, vector<32x128xf32> -> vector<32x128xf32>
    %c0_23 = arith.constant 0 : index
    %c0_24 = arith.constant 0 : index
    %41 = vector.load %arg6[%c0_23, %c0_24] : memref<2x128xf32, #tpu.memory_space<vmem>>, vector<1x128xf32>
    %42 = vector.broadcast %41 : vector<1x128xf32> to vector<32x128xf32>
    %43 = arith.addf %40, %42 : vector<32x128xf32>
    %44 = arith.addf %36, %43 : vector<32x128xf32>
    %cst_25 = arith.constant 0.000000e+00 : f32
    %45 = vector.broadcast %cst_25 : f32 to vector<32x128xf32>
    %46 = arith.cmpf oge, %44, %45 : vector<32x128xf32>
    %c1_26 = arith.constant 1 : index
    %c0_27 = arith.constant 0 : index
    %47 = vector.load %arg6[%c1_26, %c0_27] : memref<2x128xf32, #tpu.memory_space<vmem>>, vector<1x128xf32>
    %48 = vector.broadcast %47 : vector<1x128xf32> to vector<32x128xf32>
    %49 = arith.mulf %44, %48 : vector<32x128xf32>
    %50 = arith.select %46, %44, %49 : vector<32x128xi1>, vector<32x128xf32>
    %51 = vector.shape_cast %50 : vector<32x128xf32> to vector<2x16x128xf32>
    %52 = arith.truncf %51 : vector<2x16x128xf32> to vector<2x16x128xbf16>
    %c0_28 = arith.constant 0 : index
    %c0_29 = arith.constant 0 : index
    %c0_30 = arith.constant 0 : index
    %53 = vector.load %arg7[%c0_28, %c0_29, %c0_30] : memref<2x16x128xbf16, #tpu.memory_space<vmem>>, vector<2x16x128xbf16>
    tpu.vector_store %arg7[%c0_28, %c0_29, %c0_30], %52 {strides = array<i32>} : memref<2x16x128xbf16, #tpu.memory_space<vmem>>, vector<2x16x128xbf16>,
    return
  }
  func.func @transform_0(%arg0: i32) -> (i32, i32, i32) {
    %c0_i32 = arith.constant 0 : i32
    %c0_i32_0 = arith.constant 0 : i32
    %c0_i32_1 = arith.constant 0 : i32
    return %arg0, %c0_i32, %c0_i32_0 : i32, i32, i32
  }
  func.func @transform_1(%arg0: i32) -> (i32, i32) {
    %c0_i32 = arith.constant 0 : i32
    %c0_i32_0 = arith.constant 0 : i32
    %c0_i32_1 = arith.constant 0 : i32
    return %c0_i32, %c0_i32_0 : i32, i32
  }
  func.func @transform_2(%arg0: i32) -> (i32, i32) {
    %c0_i32 = arith.constant 0 : i32
    %c0_i32_0 = arith.constant 0 : i32
    %c0_i32_1 = arith.constant 0 : i32
    return %c0_i32, %c0_i32_0 : i32, i32
  }
  func.func @transform_3(%arg0: i32) -> (i32, i32, i32) {
    %c0_i32 = arith.constant 0 : i32
    %c0_i32_0 = arith.constant 0 : i32
    %c0_i32_1 = arith.constant 0 : i32
    return %arg0, %c0_i32, %c0_i32_0 : i32, i32, i32
  }
  func.func @transform_4(%arg0: i32) -> (i32, i32) {
    %c0_i32 = arith.constant 0 : i32
    %c0_i32_0 = arith.constant 0 : i32
    %c0_i32_1 = arith.constant 0 : i32
    return %c0_i32, %c0_i32_0 : i32, i32
  }
  func.func @transform_5(%arg0: i32) -> (i32, i32) {
    %c0_i32 = arith.constant 0 : i32
    %c0_i32_0 = arith.constant 0 : i32
    %c0_i32_1 = arith.constant 0 : i32
    return %c0_i32, %c0_i32_0 : i32, i32
  }
  func.func @transform_6(%arg0: i32) -> (i32, i32, i32) {
    %c0_i32 = arith.constant 0 : i32
    %c0_i32_0 = arith.constant 0 : i32
    %c0_i32_1 = arith.constant 0 : i32
    return %arg0, %c0_i32, %c0_i32_0 : i32, i32, i32
  }
}

module attributes {stable_mosaic.version = 11 : i64} {
  func.func @head_kernel(%arg0: i32, %arg1: memref<2x2xf32, #tpu.memory_space<vmem>>, %arg2: memref<2x16x384xbf16, #tpu.memory_space<vmem>>, %arg3: memref<384x128xf32, #tpu.memory_space<vmem>>, %arg4: memref<1x128xf32, #tpu.memory_space<vmem>>, %arg5: memref<2x128xf32, #tpu.memory_space<vmem>>) attributes {dimension_semantics = [#tpu.dimension_semantics<arbitrary>], iteration_bounds = array<i64: 1>, scalar_prefetch = 0 : i64, scratch_operands = 0 : i64, tpu.core_type = #tpu.core_type<tc>, window_params = [{pipeline_mode = #tpu.pipeline_mode<synchronous>, transform_indices = @transform_0, window_bounds = array<i64: 2, 2>}, {pipeline_mode = #tpu.pipeline_mode<synchronous>, transform_indices = @transform_1, window_bounds = array<i64: 2, 16, 384>}, {pipeline_mode = #tpu.pipeline_mode<synchronous>, transform_indices = @transform_2, window_bounds = array<i64: 384, 128>}, {pipeline_mode = #tpu.pipeline_mode<synchronous>, transform_indices = @transform_3, window_bounds = array<i64: 1, 128>}, {pipeline_mode = #tpu.pipeline_mode<synchronous>, transform_indices = @transform_4, window_bounds = array<i64: 2, 128>}]} {
    %c0 = arith.constant 0 : index
    %c0_0 = arith.constant 0 : index
    %0 = vector.load %arg1[%c0, %c0_0] : memref<2x2xf32, #tpu.memory_space<vmem>>, vector<2x1xf32>
    %c0_1 = arith.constant 0 : index
    %c1 = arith.constant 1 : index
    %1 = vector.load %arg1[%c0_1, %c1] : memref<2x2xf32, #tpu.memory_space<vmem>>, vector<2x1xf32>
    %2 = tpu.iota {dimensions = array<i32: 1>} : vector<2x16xi32>
    %3 = arith.sitofp %2 : vector<2x16xi32> to vector<2x16xf32>
    %4 = vector.broadcast %0 : vector<2x1xf32> to vector<2x16xf32>
    %5 = arith.cmpf olt, %3, %4 : vector<2x16xf32>
    %6 = arith.extui %5 : vector<2x16xi1> to vector<2x16xi32>
    %7 = arith.sitofp %6 : vector<2x16xi32> to vector<2x16xf32>
    %c0_2 = arith.constant 0 : index
    %c0_3 = arith.constant 0 : index
    %c0_4 = arith.constant 0 : index
    %8 = vector.load %arg2[%c0_2, %c0_3, %c0_4] : memref<2x16x384xbf16, #tpu.memory_space<vmem>>, vector<2x16x384xbf16>
    %9 = arith.extf %8 : vector<2x16x384xbf16> to vector<2x16x384xf32>
    %10 = vector.shape_cast %7 : vector<2x16xf32> to vector<2x16x1xf32>
    %11 = vector.broadcast %10 : vector<2x16x1xf32> to vector<2x16x384xf32>
    %12 = arith.mulf %9, %11 : vector<2x16x384xf32>
    %cst = arith.constant dense<0.000000e+00> : vector<2x384xf32>
    %13 = vector.multi_reduction <add>, %12, %cst [1] : vector<2x16x384xf32> to vector<2x384xf32>
    %14 = vector.broadcast %1 : vector<2x1xf32> to vector<2x384xf32>
    %15 = arith.mulf %13, %14 : vector<2x384xf32>
    %c0_5 = arith.constant 0 : index
    %c0_6 = arith.constant 0 : index
    %16 = vector.load %arg3[%c0_5, %c0_6] : memref<384x128xf32, #tpu.memory_space<vmem>>, vector<384x128xf32>
    %cst_7 = arith.constant dense<0.000000e+00> : vector<2x128xf32>
    %17 = tpu.matmul %15, %16, %cst_7 {dimension_numbers = #tpu.dot_dimension_numbers<[1], [0], [0], [1], [0, 0, 1, 1], [], []>} : vector<2x384xf32>, vector<384x128xf32>, vector<2x128xf32> -> vector<2x128xf32>
    %c0_8 = arith.constant 0 : index
    %c0_9 = arith.constant 0 : index
    %18 = vector.load %arg4[%c0_8, %c0_9] : memref<1x128xf32, #tpu.memory_space<vmem>>, vector<1x128xf32>
    %19 = vector.broadcast %18 : vector<1x128xf32> to vector<2x128xf32>
    %20 = arith.addf %17, %19 : vector<2x128xf32>
    %c0_10 = arith.constant 0 : index
    %c0_11 = arith.constant 0 : index
    %21 = vector.load %arg5[%c0_10, %c0_11] : memref<2x128xf32, #tpu.memory_space<vmem>>, vector<2x128xf32>
    tpu.vector_store %arg5[%c0_10, %c0_11], %20 {strides = array<i32>} : memref<2x128xf32, #tpu.memory_space<vmem>>, vector<2x128xf32>,
    return
  }
  func.func @transform_0(%arg0: i32) -> (i32, i32) {
    %c0_i32 = arith.constant 0 : i32
    %c0_i32_0 = arith.constant 0 : i32
    %c0_i32_1 = arith.constant 0 : i32
    return %c0_i32, %c0_i32_0 : i32, i32
  }
  func.func @transform_1(%arg0: i32) -> (i32, i32, i32) {
    %c0_i32 = arith.constant 0 : i32
    %c0_i32_0 = arith.constant 0 : i32
    %c0_i32_1 = arith.constant 0 : i32
    %c0_i32_2 = arith.constant 0 : i32
    return %c0_i32, %c0_i32_0, %c0_i32_1 : i32, i32, i32
  }
  func.func @transform_2(%arg0: i32) -> (i32, i32) {
    %c0_i32 = arith.constant 0 : i32
    %c0_i32_0 = arith.constant 0 : i32
    %c0_i32_1 = arith.constant 0 : i32
    return %c0_i32, %c0_i32_0 : i32, i32
  }
  func.func @transform_3(%arg0: i32) -> (i32, i32) {
    %c0_i32 = arith.constant 0 : i32
    %c0_i32_0 = arith.constant 0 : i32
    %c0_i32_1 = arith.constant 0 : i32
    return %c0_i32, %c0_i32_0 : i32, i32
  }
  func.func @transform_4(%arg0: i32) -> (i32, i32) {
    %c0_i32 = arith.constant 0 : i32
    %c0_i32_0 = arith.constant 0 : i32
    %c0_i32_1 = arith.constant 0 : i32
    return %c0_i32, %c0_i32_0 : i32, i32
  }
}

</mosaic_0001>

<llo_original>
// kernel: dense_tcn_forward.6
$region0: #{dense_tcn_forward.6}
  #allocation0 [shape = 'u32[]', space=smem, size = 0x4, offset = 0x4, fixed_abs, tag = 'smem constant byte address 0x4 - core index']
  #allocation1 [shape = 'u32[144,128]{1,0:T(1,128)}', space=vmem, size = 0x12000, scoped, tag = 'internal scratch']
  %s0 = inlined_call_operand.vmem [shape: bf16[2,16,128], index: 0, kind: input, shape index: {}]
  %s1 = inlined_call_operand.vmem [shape: bf16[128,128], index: 1, kind: input, shape index: {}]
  %s2 = inlined_call_operand.vmem [shape: f32[3,128], index: 2, kind: input, shape index: {}]
  %s3 = inlined_call_operand.vmem [shape: bf16[2,16,128], index: 3, kind: output, shape index: {}]
  %s4 = sld [smem:[#allocation0]]
  $region22: #{dense_tcn_forward.6} parent=0
    _
  %s6 = ssub.s32 1, %s4
  %s7 = scalar_select 0, %s6, %s4
  // Predicated region
  $region2: #{dense_tcn_forward.6} parent=0 // pred_check
    _
  $region3: #{dense_tcn_forward.6} parent=0 // pred_check_branch
    %9 = sbr.rel (0) target = $region5
  $region4: #{dense_tcn_forward.6} parent=0 // pred_region
    _
  $region5: #{dense_tcn_forward.6} parent=0 // pred_fallthru
    _
  // Predicated region
  $region6: #{dense_tcn_forward.6} parent=0 // pred_check
    _
  $region7: #{dense_tcn_forward.6} parent=0 // pred_check_branch
    %11 = sbr.rel (0) target = $region9
  $region8: #{dense_tcn_forward.6} parent=0 // pred_region
    _
  $region9: #{dense_tcn_forward.6} parent=0 // pred_fallthru
    _
  // Predicated region
  $region10: #{dense_tcn_forward.6} parent=0 // pred_check
    _
  $region11: #{dense_tcn_forward.6} parent=0 // pred_check_branch
    %13 = sbr.rel (0) target = $region13
  $region12: #{dense_tcn_forward.6} parent=0 // pred_region
    _
  $region13: #{dense_tcn_forward.6} parent=0 // pred_fallthru
    _
  %v15 = vld [vmem:[%s0] sm:$0xf]
  %v16 = vld [vmem:[%s0 + $0x4] sm:$0xf]
  %v17 = vld [vmem:[%s0 + $0x8] sm:$0xf]
  %v18 = vld [vmem:[%s0 + $0xc] sm:$0xf]
  %v19 = vld [vmem:[%s1] sm:$0xf]
  %v20 = vld [vmem:[%s1 + $0x4] sm:$0xf]
  %v21 = vld [vmem:[%s1 + $0x8] sm:$0xf]
  %v22 = vld [vmem:[%s1 + $0xc] sm:$0xf]
  %v23 = vld [vmem:[%s1 + $0x10] sm:$0xf]
  %v24 = vld [vmem:[%s1 + $0x14] sm:$0xf]
  %v25 = vld [vmem:[%s1 + $0x18] sm:$0xf]
  %v26 = vld [vmem:[%s1 + $0x1c] sm:$0xf]
  %v27 = vld [vmem:[%s1 + $0x20] sm:$0xf]
  %v28 = vld [vmem:[%s1 + $0x24] sm:$0xf]
  %v29 = vld [vmem:[%s1 + $0x28] sm:$0xf]
  %v30 = vld [vmem:[%s1 + $0x2c] sm:$0xf]
  %v31 = vld [vmem:[%s1 + $0x30] sm:$0xf]
  %v32 = vld [vmem:[%s1 + $0x34] sm:$0xf]
  %v33 = vld [vmem:[%s1 + $0x38] sm:$0xf]
  %v34 = vld [vmem:[%s1 + $0x3c] sm:$0xf]
  %v39 = vunpack.c.l.b16 %v15
  %v40 = vunpack.c.l.b16 %v16
  %v41 = vunpack.c.l.b16 %v17
  %v42 = vunpack.c.l.b16 %v18
  %v43 = vpack.c.b16 %v40, %v39
  %v44 = vpack.c.b16 %v42, %v41
  %v63 = vunpack.c.l.b16 %v19
  %v64 = vunpack.c.l.b16 %v20
  %v65 = vunpack.c.l.b16 %v21
  %v66 = vunpack.c.l.b16 %v22
  %v67 = vunpack.c.l.b16 %v23
  %v68 = vunpack.c.l.b16 %v24
  %v69 = vunpack.c.l.b16 %v25
  %v70 = vunpack.c.l.b16 %v26
  %v71 = vunpack.c.l.b16 %v27
  %v72 = vunpack.c.l.b16 %v28
  %v73 = vunpack.c.l.b16 %v29
  %v74 = vunpack.c.l.b16 %v30
  %v75 = vunpack.c.l.b16 %v31
  %v76 = vunpack.c.l.b16 %v32
  %v77 = vunpack.c.l.b16 %v33
  %v78 = vunpack.c.l.b16 %v34
  %v79 = vpack.c.b16 %v64, %v63
  %v80 = vpack.c.b16 %v66, %v65
  %v81 = vpack.c.b16 %v68, %v67
  %v82 = vpack.c.b16 %v70, %v69
  %v83 = vpack.c.b16 %v72, %v71
  %v84 = vpack.c.b16 %v74, %v73
  %v85 = vpack.c.b16 %v76, %v75
  %v86 = vpack.c.b16 %v78, %v77
  %95 = vmatprep.subr.bf16.mxu0 0
  %96 = vmatpush1.bf16.msra.mxu0 %v86
  %97 = vmatprep.subr.bf16.mxu0 0
  %98 = vmatpush1.bf16.msra.mxu0 %v85
  %99 = vmatprep.subr.bf16.mxu0 0
  %100 = vmatpush1.bf16.msra.mxu0 %v84
  %101 = vmatprep.subr.bf16.mxu0 0
  %102 = vmatpush1.bf16.msra.mxu0 %v83
  %103 = vmatprep.subr.bf16.mxu0 0
  %104 = vmatpush1.bf16.msra.mxu0 %v82
  %105 = vmatprep.subr.bf16.mxu0 0
  %106 = vmatpush1.bf16.msra.mxu0 %v81
  %107 = vmatprep.subr.bf16.mxu0 0
  %108 = vmatpush1.bf16.msra.mxu0 %v80
  %109 = vmatprep.subr.bf16.mxu0 0
  %110 = vmatpush1.bf16.msra.mxu0 %v79
  %111 = vmatprep.subr.bf16.mxu0 0
  %112 = vmatpush2.bf16.msra.mxu0 0
  %113 = vmatprep.subr.bf16.mxu0 0
  %114 = vmatpush2.bf16.msra.mxu0 0
  %115 = vmatprep.subr.bf16.mxu0 0
  %116 = vmatpush2.bf16.msra.mxu0 0
  %117 = vmatprep.subr.bf16.mxu0 0
  %118 = vmatpush2.bf16.msra.mxu0 0
  %119 = vmatprep.subr.bf16.mxu0 0
  %120 = vmatpush2.bf16.msra.mxu0 0
  %121 = vmatprep.subr.bf16.mxu0 0
  %122 = vmatpush2.bf16.msra.mxu0 0
  %123 = vmatprep.subr.bf16.mxu0 0
  %124 = vmatpush2.bf16.msra.mxu0 0
  %125 = vmatprep.subr.bf16.mxu0 0
  %126 = vmatpush2.bf16.msra.mxu0 0
  %127 = vmatprep.mubr.bf16.mxu0 0
  %128 = vmatmul.mubr.bf16.gmra.mxu0 %v43
  %v129 = vpop.f32.mrf.mxu0
  %v130 = vadd.f32 0.0, %v129
  %v131 = vpop.f32.mrf.mxu0
  %v132 = vpop.f32.mrf.mxu0
  %v133 = vadd.f32 0.0, %v132
  %v134 = vpop.f32.mrf.mxu0
  %135 = vmatprep.mubr.bf16.mxu0 0
  %136 = vmatmul.mubr.bf16.gmra.mxu0 %v44
  %v137 = vpop.f32.mrf.mxu0
  %v138 = vadd.f32 0.0, %v137
  %v139 = vpop.f32.mrf.mxu0
  %v140 = vpop.f32.mrf.mxu0
  %v141 = vadd.f32 0.0, %v140
  %v142 = vpop.f32.mrf.mxu0
  %143 = vdwg.mxu0
  %v144 = vld [vmem:[%s2] sm:$0x1]
  %v145 = vlaneseq
  %v146 = vshrl.u32 %v145, 7
  %v147 = vsub.s32 0, %v146
  %v148 = vrot.slane %v144, %v147
  %v149 = vmul.f32 %v130, %v148
  %v150 = vmul.f32 %v133, %v148
  %v151 = vmul.f32 %v138, %v148
  %v152 = vmul.f32 %v141, %v148
  %v153 = vld [vmem:[%s2 + $0x1] sm:$0x1]
  %v154 = vlaneseq
  %v155 = vshrl.u32 %v154, 7
  %v156 = vsub.s32 0, %v155
  %v157 = vrot.slane %v153, %v156
  %v158 = vadd.f32 %v149, %v157
  %v159 = vadd.f32 %v150, %v157
  %v160 = vadd.f32 %v151, %v157
  %v161 = vadd.f32 %v152, %v157
  %vm162 = vcmp.ge.f32.partialorder %v158, 0.0
  %vm163 = vcmp.ge.f32.partialorder %v159, 0.0
  %vm164 = vcmp.ge.f32.partialorder %v160, 0.0
  %vm165 = vcmp.ge.f32.partialorder %v161, 0.0
  %v166 = vld [vmem:[%s2 + $0x2] sm:$0x1]
  %v167 = vlaneseq
  %v168 = vshrl.u32 %v167, 7
  %v169 = vsub.s32 0, %v168
  %v170 = vrot.slane %v166, %v169
  %v171 = vmul.f32 %v158, %v170
  %v172 = vmul.f32 %v159, %v170
  %v173 = vmul.f32 %v160, %v170
  %v174 = vmul.f32 %v161, %v170
  %v175 = vsel %vm162, %v158, %v171
  %v176 = vsel %vm163, %v159, %v172
  %v177 = vsel %vm164, %v160, %v173
  %v178 = vsel %vm165, %v161, %v174
  %v179 = vpack.c.bf16 %v176, %v175
  %v180 = vpack.c.bf16 %v178, %v177
  %v183 = vunpack.c.l.b16 %v179
  %v184 = vunpack.c.h.b16 %v179
  %v185 = vunpack.c.l.b16 %v180
  %v186 = vunpack.c.h.b16 %v180
  %v187 = vpack.c.b16 %v183, %v183
  %v188 = vpack.c.b16 %v184, %v184
  %v189 = vpack.c.b16 %v185, %v185
  %v190 = vpack.c.b16 %v186, %v186
  %195 = vst [vmem:[%s3] sm:$0xf] %v187
  %196 = vst [vmem:[%s3 + $0x4] sm:$0xf] %v188
  %197 = vst [vmem:[%s3 + $0x8] sm:$0xf] %v189
  %198 = vst [vmem:[%s3 + $0xc] sm:$0xf] %v190
  // Predicated region
  $region14: #{dense_tcn_forward.6} parent=0 // pred_check
    _
  $region15: #{dense_tcn_forward.6} parent=0 // pred_check_branch
    %200 = sbr.rel (0) target = $region17
  $region16: #{dense_tcn_forward.6} parent=0 // pred_region
    _
  $region17: #{dense_tcn_forward.6} parent=0 // pred_fallthru
    _
  // Predicated region
  $region18: #{dense_tcn_forward.6} parent=0 // pred_check
    _
  $region19: #{dense_tcn_forward.6} parent=0 // pred_check_branch
    %202 = sbr.rel (0) target = $region21
  $region20: #{dense_tcn_forward.6} parent=0 // pred_region
    _
  $region21: #{dense_tcn_forward.6} parent=0 // pred_fallthru
    _

// kernel: dense_tcn_forward.7
$region0: #{dense_tcn_forward.7}
  #allocation0 [shape = 'u32[]', space=smem, size = 0x4, offset = 0x4, fixed_abs, tag = 'smem constant byte address 0x4 - core index']
  #allocation1 [shape = 'u32[144,128]{1,0:T(1,128)}', space=vmem, size = 0x12000, scoped, tag = 'internal scratch']
  %s0 = inlined_call_operand.vmem [shape: bf16[2,20,128], index: 0, kind: input, shape index: {}]
  %s1 = inlined_call_operand.hbm [shape: bf16[640,128], index: 1, kind: input, shape index: {}]
  %s2 = inlined_call_operand.vmem [shape: f32[3,128], index: 2, kind: input, shape index: {}]
  %s3 = inlined_call_operand.vmem [shape: bf16[2,16,128], index: 3, kind: output, shape index: {}]
  %s4 = sld [smem:[#allocation0]]
  $region26: #{dense_tcn_forward.7} parent=0
    _
  %s6 = ssub.s32 1, %s4
  %s7 = scalar_select 0, %s6, %s4
  $region1: #{dense_tcn_forward.7} parent=0
    #allocation2 [shape = 'u8[163840]{0}', space=vmem, size = 0x28000, scoped, tag = 'input window, operand 1, single buffered']
    #allocation3 [shape = 's32[1]{0}', space=sflag, size = 0x4, scoped, tag = 'scoped memory for dense_tcn_forward.7']
    %8 = vsyncpa [#allocation3], 0
    // Predicated region
    $region2: #{dense_tcn_forward.7} parent=1 // pred_check
      _
    $region3: #{dense_tcn_forward.7} parent=1 // pred_check_branch
      %10 = sbr.rel (0) target = $region5
    $region4: #{dense_tcn_forward.7} parent=1 // pred_region
      _
    $region5: #{dense_tcn_forward.7} parent=1 // pred_fallthru
      _
    // Predicated region
    $region6: #{dense_tcn_forward.7} parent=1 // pred_check
      _
    $region7: #{dense_tcn_forward.7} parent=1 // pred_check_branch
      %12 = sbr.rel (0) target = $region9
    $region8: #{dense_tcn_forward.7} parent=1 // pred_region
      %s14 = ssub.s32 5120, 5120
      %15 = vsyncadd [#allocation3], %s14
      %s16 = sshll.u32 [#allocation2], 4
      %s17 = int_to_ptr.vmem [resolvable:$true] %s16
      %22 = dma.hbm_to_vmem [thread:$0]  %s1, 5120, %s17, [#allocation3], 64, 64, 4
    $region9: #{dense_tcn_forward.7} parent=1 // pred_fallthru
      _
    // Predicated region
    $region10: #{dense_tcn_forward.7} parent=1 // pred_check
      _
    $region11: #{dense_tcn_forward.7} parent=1 // pred_check_branch
      %24 = sbr.rel (0) target = $region13
    $region12: #{dense_tcn_forward.7} parent=1 // pred_region
      _
    $region13: #{dense_tcn_forward.7} parent=1 // pred_fallthru
      _
    // Predicated region
    $region14: #{dense_tcn_forward.7} parent=1 // pred_check
      _
    $region15: #{dense_tcn_forward.7} parent=1 // pred_check_branch
      %26 = sbr.rel (0) target = $region17
    $region16: #{dense_tcn_forward.7} parent=1 // pred_region
      %27 = dma.done [#allocation3], 5120
    $region17: #{dense_tcn_forward.7} parent=1 // pred_fallthru
      _
    %v29 = vld [vmem:[%s0] sm:$0xf]
    %v30 = vld [vmem:[%s0 + $0x4] sm:$0xf]
    %v31 = vld [vmem:[%s0 + $0x8] sm:$0x3]
    %v32 = vld [vmem:[%s0 + $0xc] sm:$0xf]
    %v33 = vld [vmem:[%s0 + $0x10] sm:$0xf]
    %v34 = vld [vmem:[%s0 + $0x14] sm:$0x3]
    %v35 = vld [vmem:[#allocation2] sm:$0xf]
    %v36 = vld [vmem:[#allocation2 + $0x4] sm:$0xf]
    %v37 = vld [vmem:[#allocation2 + $0x8] sm:$0xf]
    %v38 = vld [vmem:[#allocation2 + $0xc] sm:$0xf]
    %v39 = vld [vmem:[#allocation2 + $0x10] sm:$0xf]
    %v40 = vld [vmem:[#allocation2 + $0x14] sm:$0xf]
    %v41 = vld [vmem:[#allocation2 + $0x18] sm:$0xf]
    %v42 = vld [vmem:[#allocation2 + $0x1c] sm:$0xf]
    %v43 = vld [vmem:[#allocation2 + $0x20] sm:$0xf]
    %v44 = vld [vmem:[#allocation2 + $0x24] sm:$0xf]
    %v45 = vld [vmem:[#allocation2 + $0x28] sm:$0xf]
    %v46 = vld [vmem:[#allocation2 + $0x2c] sm:$0xf]
    %v47 = vld [vmem:[#allocation2 + $0x30] sm:$0xf]
    %v48 = vld [vmem:[#allocation2 + $0x34] sm:$0xf]
    %v49 = vld [vmem:[#allocation2 + $0x38] sm:$0xf]
    %v50 = vld [vmem:[#allocation2 + $0x3c] sm:$0xf]
    %vm51 = vsmask.f32 3328
    %vm52 = vsmask.f32 7440
    %vm53 = vmor %vm51, %vm52
    %v55 = vshrl.u32 %v29, 16
    %v57 = vrot.slane %v55, 4
    %v58 = vshll.u32 %v29, 16
    %v60 = vrot.slane %v58, 5
    %v61 = vor.u32 %v57, %v60
    %v62 = vrot.slane %v61, 4
    %v64 = vshll.u32 %v30, 16
    %v66 = vrot.slane %v64, 5
    %v67 = vsel %vm53, %v62, %v66
    %v68 = vshrl.u32 %v30, 16
    %v70 = vrot.slane %v68, 4
    %v71 = vor.u32 %v70, %v66
    %v72 = vrot.slane %v71, 4
    %v74 = vshll.u32 %v31, 16
    %v76 = vrot.slane %v74, 5
    %v77 = vsel %vm53, %v72, %v76
    %v79 = vshrl.u32 %v32, 16
    %v81 = vrot.slane %v79, 4
    %v82 = vshll.u32 %v32, 16
    %v84 = vrot.slane %v82, 5
    %v85 = vor.u32 %v81, %v84
    %v86 = vrot.slane %v85, 4
    %v88 = vshll.u32 %v33, 16
    %v90 = vrot.slane %v88, 5
    %v91 = vsel %vm53, %v86, %v90
    %v92 = vshrl.u32 %v33, 16
    %v94 = vrot.slane %v92, 4
    %v95 = vor.u32 %v94, %v90
    %v96 = vrot.slane %v95, 4
    %v98 = vshll.u32 %v34, 16
    %v100 = vrot.slane %v98, 5
    %v101 = vsel %vm53, %v96, %v100
    %v102 = vld [vmem:[#allocation2 + $0x40] sm:$0xf]
    %v103 = vld [vmem:[#allocation2 + $0x44] sm:$0xf]
    %v104 = vld [vmem:[#allocation2 + $0x48] sm:$0xf]
    %v105 = vld [vmem:[#allocation2 + $0x4c] sm:$0xf]
    %v106 = vld [vmem:[#allocation2 + $0x50] sm:$0xf]
    %v107 = vld [vmem:[#allocation2 + $0x54] sm:$0xf]
    %v108 = vld [vmem:[#allocation2 + $0x58] sm:$0xf]
    %v109 = vld [vmem:[#allocation2 + $0x5c] sm:$0xf]
    %v110 = vld [vmem:[#allocation2 + $0x60] sm:$0xf]
    %v111 = vld [vmem:[#allocation2 + $0x64] sm:$0xf]
    %v112 = vld [vmem:[#allocation2 + $0x68] sm:$0xf]
    %v113 = vld [vmem:[#allocation2 + $0x6c] sm:$0xf]
    %v114 = vld [vmem:[#allocation2 + $0x70] sm:$0xf]
    %v115 = vld [vmem:[#allocation2 + $0x74] sm:$0xf]
    %v116 = vld [vmem:[#allocation2 + $0x78] sm:$0xf]
    %v117 = vld [vmem:[#allocation2 + $0x7c] sm:$0xf]
    %v118 = vunpack.c.l.b16 %v67
    %v119 = vunpack.c.l.b16 %v77
    %v120 = vunpack.c.l.b16 %v91
    %v121 = vunpack.c.l.b16 %v101
    %v122 = vpack.c.b16 %v119, %v118
    %v123 = vpack.c.b16 %v121, %v120
    %v142 = vunpack.c.l.b16 %v102
    %v143 = vunpack.c.l.b16 %v103
    %v144 = vunpack.c.l.b16 %v104
    %v145 = vunpack.c.l.b16 %v105
    %v146 = vunpack.c.l.b16 %v106
    %v147 = vunpack.c.l.b16 %v107
    %v148 = vunpack.c.l.b16 %v108
    %v149 = vunpack.c.l.b16 %v109
    %v150 = vunpack.c.l.b16 %v110
    %v151 = vunpack.c.l.b16 %v111
    %v152 = vunpack.c.l.b16 %v112
    %v153 = vunpack.c.l.b16 %v113
    %v154 = vunpack.c.l.b16 %v114
    %v155 = vunpack.c.l.b16 %v115
    %v156 = vunpack.c.l.b16 %v116
    %v157 = vunpack.c.l.b16 %v117
    %v158 = vpack.c.b16 %v143, %v142
    %v159 = vpack.c.b16 %v145, %v144
    %v160 = vpack.c.b16 %v147, %v146
    %v161 = vpack.c.b16 %v149, %v148
    %v162 = vpack.c.b16 %v151, %v150
    %v163 = vpack.c.b16 %v153, %v152
    %v164 = vpack.c.b16 %v155, %v154
    %v165 = vpack.c.b16 %v157, %v156
    %174 = vmatprep.subr.bf16.mxu0 0
    %175 = vmatpush1.bf16.msra.mxu0 %v165
    %176 = vmatprep.subr.bf16.mxu0 0
    %177 = vmatpush1.bf16.msra.mxu0 %v164
    %178 = vmatprep.subr.bf16.mxu0 0
    %179 = vmatpush1.bf16.msra.mxu0 %v163
    %180 = vmatprep.subr.bf16.mxu0 0
    %181 = vmatpush1.bf16.msra.mxu0 %v162
    %182 = vmatprep.subr.bf16.mxu0 0
    %183 = vmatpush1.bf16.msra.mxu0 %v161
    %184 = vmatprep.subr.bf16.mxu0 0
    %185 = vmatpush1.bf16.msra.mxu0 %v160
    %186 = vmatprep.subr.bf16.mxu0 0
    %187 = vmatpush1.bf16.msra.mxu0 %v159
    %188 = vmatprep.subr.bf16.mxu0 0
    %189 = vmatpush1.bf16.msra.mxu0 %v158
    %190 = vmatprep.subr.bf16.mxu0 0
    %191 = vmatpush2.bf16.msra.mxu0 0
    %192 = vmatprep.subr.bf16.mxu0 0
    %193 = vmatpush2.bf16.msra.mxu0 0
    %194 = vmatprep.subr.bf16.mxu0 0
    %195 = vmatpush2.bf16.msra.mxu0 0
    %196 = vmatprep.subr.bf16.mxu0 0
    %197 = vmatpush2.bf16.msra.mxu0 0
    %198 = vmatprep.subr.bf16.mxu0 0
    %199 = vmatpush2.bf16.msra.mxu0 0
    %200 = vmatprep.subr.bf16.mxu0 0
    %201 = vmatpush2.bf16.msra.mxu0 0
    %202 = vmatprep.subr.bf16.mxu0 0
    %203 = vmatpush2.bf16.msra.mxu0 0
    %204 = vmatprep.subr.bf16.mxu0 0
    %205 = vmatpush2.bf16.msra.mxu0 0
    %206 = vmatprep.mubr.bf16.mxu0 0
    %207 = vmatmul.mubr.bf16.gmra.mxu0 %v122
    %v208 = vpop.f32.mrf.mxu0
    %v209 = vadd.f32 0.0, %v208
    %v210 = vpop.f32.mrf.mxu0
    %v211 = vpop.f32.mrf.mxu0
    %v212 = vadd.f32 0.0, %v211
    %v213 = vpop.f32.mrf.mxu0
    %214 = vmatprep.mubr.bf16.mxu0 0
    %215 = vmatmul.mubr.bf16.gmra.mxu0 %v123
    %v216 = vpop.f32.mrf.mxu0
    %v217 = vadd.f32 0.0, %v216
    %v218 = vpop.f32.mrf.mxu0
    %v219 = vpop.f32.mrf.mxu0
    %v220 = vadd.f32 0.0, %v219
    %v221 = vpop.f32.mrf.mxu0
    %222 = vdwg.mxu0
    %v227 = vunpack.c.l.b16 %v29
    %v228 = vunpack.c.l.b16 %v30
    %v229 = vunpack.c.l.b16 %v32
    %v230 = vunpack.c.l.b16 %v33
    %v231 = vpack.c.b16 %v228, %v227
    %v232 = vpack.c.b16 %v230, %v229
    %v251 = vunpack.c.l.b16 %v35
    %v252 = vunpack.c.l.b16 %v36
    %v253 = vunpack.c.l.b16 %v37
    %v254 = vunpack.c.l.b16 %v38
    %v255 = vunpack.c.l.b16 %v39
    %v256 = vunpack.c.l.b16 %v40
    %v257 = vunpack.c.l.b16 %v41
    %v258 = vunpack.c.l.b16 %v42
    %v259 = vunpack.c.l.b16 %v43
    %v260 = vunpack.c.l.b16 %v44
    %v261 = vunpack.c.l.b16 %v45
    %v262 = vunpack.c.l.b16 %v46
    %v263 = vunpack.c.l.b16 %v47
    %v264 = vunpack.c.l.b16 %v48
    %v265 = vunpack.c.l.b16 %v49
    %v266 = vunpack.c.l.b16 %v50
    %v267 = vpack.c.b16 %v252, %v251
    %v268 = vpack.c.b16 %v254, %v253
    %v269 = vpack.c.b16 %v256, %v255
    %v270 = vpack.c.b16 %v258, %v257
    %v271 = vpack.c.b16 %v260, %v259
    %v272 = vpack.c.b16 %v262, %v261
    %v273 = vpack.c.b16 %v264, %v263
    %v274 = vpack.c.b16 %v266, %v265
    %283 = vmatprep.subr.bf16.mxu0 0
    %284 = vmatpush1.bf16.msra.mxu0 %v274
    %285 = vmatprep.subr.bf16.mxu0 0
    %286 = vmatpush1.bf16.msra.mxu0 %v273
    %287 = vmatprep.subr.bf16.mxu0 0
    %288 = vmatpush1.bf16.msra.mxu0 %v272
    %289 = vmatprep.subr.bf16.mxu0 0
    %290 = vmatpush1.bf16.msra.mxu0 %v271
    %291 = vmatprep.subr.bf16.mxu0 0
    %292 = vmatpush1.bf16.msra.mxu0 %v270
    %293 = vmatprep.subr.bf16.mxu0 0
    %294 = vmatpush1.bf16.msra.mxu0 %v269
    %295 = vmatprep.subr.bf16.mxu0 0
    %296 = vmatpush1.bf16.msra.mxu0 %v268
    %297 = vmatprep.subr.bf16.mxu0 0
    %298 = vmatpush1.bf16.msra.mxu0 %v267
    %299 = vmatprep.subr.bf16.mxu0 0
    %300 = vmatpush2.bf16.msra.mxu0 0
    %301 = vmatprep.subr.bf16.mxu0 0
    %302 = vmatpush2.bf16.msra.mxu0 0
    %303 = vmatprep.subr.bf16.mxu0 0
    %304 = vmatpush2.bf16.msra.mxu0 0
    %305 = vmatprep.subr.bf16.mxu0 0
    %306 = vmatpush2.bf16.msra.mxu0 0
    %307 = vmatprep.subr.bf16.mxu0 0
    %308 = vmatpush2.bf16.msra.mxu0 0
    %309 = vmatprep.subr.bf16.mxu0 0
    %310 = vmatpush2.bf16.msra.mxu0 0
    %311 = vmatprep.subr.bf16.mxu0 0
    %312 = vmatpush2.bf16.msra.mxu0 0
    %313 = vmatprep.subr.bf16.mxu0 0
    %314 = vmatpush2.bf16.msra.mxu0 0
    %315 = vmatprep.mubr.bf16.mxu0 0
    %316 = vmatmul.mubr.bf16.gmra.mxu0 %v231
    %v317 = vpop.f32.mrf.mxu0
    %v318 = vadd.f32 %v209, %v317
    %v319 = vpop.f32.mrf.mxu0
    %v320 = vpop.f32.mrf.mxu0
    %v321 = vadd.f32 %v212, %v320
    %v322 = vpop.f32.mrf.mxu0
    %323 = vmatprep.mubr.bf16.mxu0 0
    %324 = vmatmul.mubr.bf16.gmra.mxu0 %v232
    %v325 = vpop.f32.mrf.mxu0
    %v326 = vadd.f32 %v217, %v325
    %v327 = vpop.f32.mrf.mxu0
    %v328 = vpop.f32.mrf.mxu0
    %v329 = vadd.f32 %v220, %v328
    %v330 = vpop.f32.mrf.mxu0
    %331 = vdwg.mxu0
    %vm334 = vcmask 1042432
    %vm335 = vcmask 1046532
    %vm336 = vmor %vm334, %vm335
    %v337 = vrot.slane %v29, 5
    %v338 = vrot.slane %v337, 4
    %v339 = vrot.slane %v30, 5
    %v340 = vsel %vm336, %v338, %v339
    %v341 = vrot.slane %v339, 4
    %v342 = vrot.slane %v31, 5
    %v343 = vsel %vm336, %v341, %v342
    %v344 = vrot.slane %v32, 5
    %v345 = vrot.slane %v344, 4
    %v346 = vrot.slane %v33, 5
    %v347 = vsel %vm336, %v345, %v346
    %v348 = vrot.slane %v346, 4
    %v349 = vrot.slane %v34, 5
    %v350 = vsel %vm336, %v348, %v349
    %v351 = vld [vmem:[#allocation2 + $0x80] sm:$0xf]
    %v352 = vld [vmem:[#allocation2 + $0x84] sm:$0xf]
    %v353 = vld [vmem:[#allocation2 + $0x88] sm:$0xf]
    %v354 = vld [vmem:[#allocation2 + $0x8c] sm:$0xf]
    %v355 = vld [vmem:[#allocation2 + $0x90] sm:$0xf]
    %v356 = vld [vmem:[#allocation2 + $0x94] sm:$0xf]
    %v357 = vld [vmem:[#allocation2 + $0x98] sm:$0xf]
    %v358 = vld [vmem:[#allocation2 + $0x9c] sm:$0xf]
    %v359 = vld [vmem:[#allocation2 + $0xa0] sm:$0xf]
    %v360 = vld [vmem:[#allocation2 + $0xa4] sm:$0xf]
    %v361 = vld [vmem:[#allocation2 + $0xa8] sm:$0xf]
    %v362 = vld [vmem:[#allocation2 + $0xac] sm:$0xf]
    %v363 = vld [vmem:[#allocation2 + $0xb0] sm:$0xf]
    %v364 = vld [vmem:[#allocation2 + $0xb4] sm:$0xf]
    %v365 = vld [vmem:[#allocation2 + $0xb8] sm:$0xf]
    %v366 = vld [vmem:[#allocation2 + $0xbc] sm:$0xf]
    %v367 = vunpack.c.l.b16 %v340
    %v368 = vunpack.c.l.b16 %v343
    %v369 = vunpack.c.l.b16 %v347
    %v370 = vunpack.c.l.b16 %v350
    %v371 = vpack.c.b16 %v368, %v367
    %v372 = vpack.c.b16 %v370, %v369
    %v391 = vunpack.c.l.b16 %v351
    %v392 = vunpack.c.l.b16 %v352
    %v393 = vunpack.c.l.b16 %v353
    %v394 = vunpack.c.l.b16 %v354
    %v395 = vunpack.c.l.b16 %v355
    %v396 = vunpack.c.l.b16 %v356
    %v397 = vunpack.c.l.b16 %v357
    %v398 = vunpack.c.l.b16 %v358
    %v399 = vunpack.c.l.b16 %v359
    %v400 = vunpack.c.l.b16 %v360
    %v401 = vunpack.c.l.b16 %v361
    %v402 = vunpack.c.l.b16 %v362
    %v403 = vunpack.c.l.b16 %v363
    %v404 = vunpack.c.l.b16 %v364
    %v405 = vunpack.c.l.b16 %v365
    %v406 = vunpack.c.l.b16 %v366
    %v407 = vpack.c.b16 %v392, %v391
    %v408 = vpack.c.b16 %v394, %v393
    %v409 = vpack.c.b16 %v396, %v395
    %v410 = vpack.c.b16 %v398, %v397
    %v411 = vpack.c.b16 %v400, %v399
    %v412 = vpack.c.b16 %v402, %v401
    %v413 = vpack.c.b16 %v404, %v403
    %v414 = vpack.c.b16 %v406, %v405
    %423 = vmatprep.subr.bf16.mxu0 0
    %424 = vmatpush1.bf16.msra.mxu0 %v414
    %425 = vmatprep.subr.bf16.mxu0 0
    %426 = vmatpush1.bf16.msra.mxu0 %v413
    %427 = vmatprep.subr.bf16.mxu0 0
    %428 = vmatpush1.bf16.msra.mxu0 %v412
    %429 = vmatprep.subr.bf16.mxu0 0
    %430 = vmatpush1.bf16.msra.mxu0 %v411
    %431 = vmatprep.subr.bf16.mxu0 0
    %432 = vmatpush1.bf16.msra.mxu0 %v410
    %433 = vmatprep.subr.bf16.mxu0 0
    %434 = vmatpush1.bf16.msra.mxu0 %v409
    %435 = vmatprep.subr.bf16.mxu0 0
    %436 = vmatpush1.bf16.msra.mxu0 %v408
    %437 = vmatprep.subr.bf16.mxu0 0
    %438 = vmatpush1.bf16.msra.mxu0 %v407
    %439 = vmatprep.subr.bf16.mxu0 0
    %440 = vmatpush2.bf16.msra.mxu0 0
    %441 = vmatprep.subr.bf16.mxu0 0
    %442 = vmatpush2.bf16.msra.mxu0 0
    %443 = vmatprep.subr.bf16.mxu0 0
    %444 = vmatpush2.bf16.msra.mxu0 0
    %445 = vmatprep.subr.bf16.mxu0 0
    %446 = vmatpush2.bf16.msra.mxu0 0
    %447 = vmatprep.subr.bf16.mxu0 0
    %448 = vmatpush2.bf16.msra.mxu0 0
    %449 = vmatprep.subr.bf16.mxu0 0
    %450 = vmatpush2.bf16.msra.mxu0 0
    %451 = vmatprep.subr.bf16.mxu0 0
    %452 = vmatpush2.bf16.msra.mxu0 0
    %453 = vmatprep.subr.bf16.mxu0 0
    %454 = vmatpush2.bf16.msra.mxu0 0
    %455 = vmatprep.mubr.bf16.mxu0 0
    %456 = vmatmul.mubr.bf16.gmra.mxu0 %v371
    %v457 = vpop.f32.mrf.mxu0
    %v458 = vadd.f32 0.0, %v457
    %v459 = vpop.f32.mrf.mxu0
    %v460 = vpop.f32.mrf.mxu0
    %v461 = vadd.f32 0.0, %v460
    %v462 = vpop.f32.mrf.mxu0
    %463 = vmatprep.mubr.bf16.mxu0 0
    %464 = vmatmul.mubr.bf16.gmra.mxu0 %v372
    %v465 = vpop.f32.mrf.mxu0
    %v466 = vadd.f32 0.0, %v465
    %v467 = vpop.f32.mrf.mxu0
    %v468 = vpop.f32.mrf.mxu0
    %v469 = vadd.f32 0.0, %v468
    %v470 = vpop.f32.mrf.mxu0
    %471 = vdwg.mxu0
    %v472 = vadd.f32 %v318, %v458
    %v473 = vadd.f32 %v321, %v461
    %v474 = vadd.f32 %v326, %v466
    %v475 = vadd.f32 %v329, %v469
    %vm476 = vsmask.f32 2304
    %vm477 = vsmask.f32 6416
    %vm478 = vmor %vm476, %vm477
    %v479 = vrot.slane %v55, 5
    %v480 = vrot.slane %v58, 6
    %v481 = vor.u32 %v479, %v480
    %v482 = vrot.slane %v481, 4
    %v483 = vrot.slane %v68, 5
    %v484 = vrot.slane %v64, 6
    %v485 = vor.u32 %v483, %v484
    %v486 = vsel %vm478, %v482, %v485
    %v487 = vrot.slane %v485, 4
    %v488 = vshrl.u32 %v31, 16
    %v490 = vrot.slane %v488, 5
    %v491 = vrot.slane %v74, 6
    %v492 = vor.u32 %v490, %v491
    %v493 = vsel %vm478, %v487, %v492
    %v494 = vrot.slane %v79, 5
    %v495 = vrot.slane %v82, 6
    %v496 = vor.u32 %v494, %v495
    %v497 = vrot.slane %v496, 4
    %v498 = vrot.slane %v92, 5
    %v499 = vrot.slane %v88, 6
    %v500 = vor.u32 %v498, %v499
    %v501 = vsel %vm478, %v497, %v500
    %v502 = vrot.slane %v500, 4
    %v503 = vshrl.u32 %v34, 16
    %v505 = vrot.slane %v503, 5
    %v506 = vrot.slane %v98, 6
    %v507 = vor.u32 %v505, %v506
    %v508 = vsel %vm478, %v502, %v507
    %v509 = vld [vmem:[#allocation2 + $0xc0] sm:$0xf]
    %v510 = vld [vmem:[#allocation2 + $0xc4] sm:$0xf]
    %v511 = vld [vmem:[#allocation2 + $0xc8] sm:$0xf]
    %v512 = vld [vmem:[#allocation2 + $0xcc] sm:$0xf]
    %v513 = vld [vmem:[#allocation2 + $0xd0] sm:$0xf]
    %v514 = vld [vmem:[#allocation2 + $0xd4] sm:$0xf]
    %v515 = vld [vmem:[#allocation2 + $0xd8] sm:$0xf]
    %v516 = vld [vmem:[#allocation2 + $0xdc] sm:$0xf]
    %v517 = vld [vmem:[#allocation2 + $0xe0] sm:$0xf]
    %v518 = vld [vmem:[#allocation2 + $0xe4] sm:$0xf]
    %v519 = vld [vmem:[#allocation2 + $0xe8] sm:$0xf]
    %v520 = vld [vmem:[#allocation2 + $0xec] sm:$0xf]
    %v521 = vld [vmem:[#allocation2 + $0xf0] sm:$0xf]
    %v522 = vld [vmem:[#allocation2 + $0xf4] sm:$0xf]
    %v523 = vld [vmem:[#allocation2 + $0xf8] sm:$0xf]
    %v524 = vld [vmem:[#allocation2 + $0xfc] sm:$0xf]
    %v525 = vunpack.c.l.b16 %v486
    %v526 = vunpack.c.l.b16 %v493
    %v527 = vunpack.c.l.b16 %v501
    %v528 = vunpack.c.l.b16 %v508
    %v529 = vpack.c.b16 %v526, %v525
    %v530 = vpack.c.b16 %v528, %v527
    %v549 = vunpack.c.l.b16 %v509
    %v550 = vunpack.c.l.b16 %v510
    %v551 = vunpack.c.l.b16 %v511
    %v552 = vunpack.c.l.b16 %v512
    %v553 = vunpack.c.l.b16 %v513
    %v554 = vunpack.c.l.b16 %v514
    %v555 = vunpack.c.l.b16 %v515
    %v556 = vunpack.c.l.b16 %v516
    %v557 = vunpack.c.l.b16 %v517
    %v558 = vunpack.c.l.b16 %v518
    %v559 = vunpack.c.l.b16 %v519
    %v560 = vunpack.c.l.b16 %v520
    %v561 = vunpack.c.l.b16 %v521
    %v562 = vunpack.c.l.b16 %v522
    %v563 = vunpack.c.l.b16 %v523
    %v564 = vunpack.c.l.b16 %v524
    %v565 = vpack.c.b16 %v550, %v549
    %v566 = vpack.c.b16 %v552, %v551
    %v567 = vpack.c.b16 %v554, %v553
    %v568 = vpack.c.b16 %v556, %v555
    %v569 = vpack.c.b16 %v558, %v557
    %v570 = vpack.c.b16 %v560, %v559
    %v571 = vpack.c.b16 %v562, %v561
    %v572 = vpack.c.b16 %v564, %v563
    %581 = vmatprep.subr.bf16.mxu0 0
    %582 = vmatpush1.bf16.msra.mxu0 %v572
    %583 = vmatprep.subr.bf16.mxu0 0
    %584 = vmatpush1.bf16.msra.mxu0 %v571
    %585 = vmatprep.subr.bf16.mxu0 0
    %586 = vmatpush1.bf16.msra.mxu0 %v570
    %587 = vmatprep.subr.bf16.mxu0 0
    %588 = vmatpush1.bf16.msra.mxu0 %v569
    %589 = vmatprep.subr.bf16.mxu0 0
    %590 = vmatpush1.bf16.msra.mxu0 %v568
    %591 = vmatprep.subr.bf16.mxu0 0
    %592 = vmatpush1.bf16.msra.mxu0 %v567
    %593 = vmatprep.subr.bf16.mxu0 0
    %594 = vmatpush1.bf16.msra.mxu0 %v566
    %595 = vmatprep.subr.bf16.mxu0 0
    %596 = vmatpush1.bf16.msra.mxu0 %v565
    %597 = vmatprep.subr.bf16.mxu0 0
    %598 = vmatpush2.bf16.msra.mxu0 0
    %599 = vmatprep.subr.bf16.mxu0 0
    %600 = vmatpush2.bf16.msra.mxu0 0
    %601 = vmatprep.subr.bf16.mxu0 0
    %602 = vmatpush2.bf16.msra.mxu0 0
    %603 = vmatprep.subr.bf16.mxu0 0
    %604 = vmatpush2.bf16.msra.mxu0 0
    %605 = vmatprep.subr.bf16.mxu0 0
    %606 = vmatpush2.bf16.msra.mxu0 0
    %607 = vmatprep.subr.bf16.mxu0 0
    %608 = vmatpush2.bf16.msra.mxu0 0
    %609 = vmatprep.subr.bf16.mxu0 0
    %610 = vmatpush2.bf16.msra.mxu0 0
    %611 = vmatprep.subr.bf16.mxu0 0
    %612 = vmatpush2.bf16.msra.mxu0 0
    %613 = vmatprep.mubr.bf16.mxu0 0
    %614 = vmatmul.mubr.bf16.gmra.mxu0 %v529
    %v615 = vpop.f32.mrf.mxu0
    %v616 = vadd.f32 0.0, %v615
    %v617 = vpop.f32.mrf.mxu0
    %v618 = vpop.f32.mrf.mxu0
    %v619 = vadd.f32 0.0, %v618
    %v620 = vpop.f32.mrf.mxu0
    %621 = vmatprep.mubr.bf16.mxu0 0
    %622 = vmatmul.mubr.bf16.gmra.mxu0 %v530
    %v623 = vpop.f32.mrf.mxu0
    %v624 = vadd.f32 0.0, %v623
    %v625 = vpop.f32.mrf.mxu0
    %v626 = vpop.f32.mrf.mxu0
    %v627 = vadd.f32 0.0, %v626
    %v628 = vpop.f32.mrf.mxu0
    %629 = vdwg.mxu0
    %v630 = vadd.f32 %v472, %v616
    %v631 = vadd.f32 %v473, %v619
    %v632 = vadd.f32 %v474, %v624
    %v633 = vadd.f32 %v475, %v627
    %vm634 = vcmask 1041408
    %vm635 = vcmask 1045508
    %vm636 = vmor %vm634, %vm635
    %v637 = vrot.slane %v29, 6
    %v638 = vrot.slane %v637, 4
    %v639 = vrot.slane %v30, 6
    %v640 = vsel %vm636, %v638, %v639
    %v641 = vrot.slane %v639, 4
    %v642 = vrot.slane %v31, 6
    %v643 = vsel %vm636, %v641, %v642
    %v644 = vrot.slane %v32, 6
    %v645 = vrot.slane %v644, 4
    %v646 = vrot.slane %v33, 6
    %v647 = vsel %vm636, %v645, %v646
    %v648 = vrot.slane %v646, 4
    %v649 = vrot.slane %v34, 6
    %v650 = vsel %vm636, %v648, %v649
    %v651 = vld [vmem:[#allocation2 + $0x100] sm:$0xf]
    %v652 = vld [vmem:[#allocation2 + $0x104] sm:$0xf]
    %v653 = vld [vmem:[#allocation2 + $0x108] sm:$0xf]
    %v654 = vld [vmem:[#allocation2 + $0x10c] sm:$0xf]
    %v655 = vld [vmem:[#allocation2 + $0x110] sm:$0xf]
    %v656 = vld [vmem:[#allocation2 + $0x114] sm:$0xf]
    %v657 = vld [vmem:[#allocation2 + $0x118] sm:$0xf]
    %v658 = vld [vmem:[#allocation2 + $0x11c] sm:$0xf]
    %v659 = vld [vmem:[#allocation2 + $0x120] sm:$0xf]
    %v660 = vld [vmem:[#allocation2 + $0x124] sm:$0xf]
    %v661 = vld [vmem:[#allocation2 + $0x128] sm:$0xf]
    %v662 = vld [vmem:[#allocation2 + $0x12c] sm:$0xf]
    %v663 = vld [vmem:[#allocation2 + $0x130] sm:$0xf]
    %v664 = vld [vmem:[#allocation2 + $0x134] sm:$0xf]
    %v665 = vld [vmem:[#allocation2 + $0x138] sm:$0xf]
    %v666 = vld [vmem:[#allocation2 + $0x13c] sm:$0xf]
    %v667 = vunpack.c.l.b16 %v640
    %v668 = vunpack.c.l.b16 %v643
    %v669 = vunpack.c.l.b16 %v647
    %v670 = vunpack.c.l.b16 %v650
    %v671 = vpack.c.b16 %v668, %v667
    %v672 = vpack.c.b16 %v670, %v669
    %v691 = vunpack.c.l.b16 %v651
    %v692 = vunpack.c.l.b16 %v652
    %v693 = vunpack.c.l.b16 %v653
    %v694 = vunpack.c.l.b16 %v654
    %v695 = vunpack.c.l.b16 %v655
    %v696 = vunpack.c.l.b16 %v656
    %v697 = vunpack.c.l.b16 %v657
    %v698 = vunpack.c.l.b16 %v658
    %v699 = vunpack.c.l.b16 %v659
    %v700 = vunpack.c.l.b16 %v660
    %v701 = vunpack.c.l.b16 %v661
    %v702 = vunpack.c.l.b16 %v662
    %v703 = vunpack.c.l.b16 %v663
    %v704 = vunpack.c.l.b16 %v664
    %v705 = vunpack.c.l.b16 %v665
    %v706 = vunpack.c.l.b16 %v666
    %v707 = vpack.c.b16 %v692, %v691
    %v708 = vpack.c.b16 %v694, %v693
    %v709 = vpack.c.b16 %v696, %v695
    %v710 = vpack.c.b16 %v698, %v697
    %v711 = vpack.c.b16 %v700, %v699
    %v712 = vpack.c.b16 %v702, %v701
    %v713 = vpack.c.b16 %v704, %v703
    %v714 = vpack.c.b16 %v706, %v705
    %723 = vmatprep.subr.bf16.mxu0 0
    %724 = vmatpush1.bf16.msra.mxu0 %v714
    %725 = vmatprep.subr.bf16.mxu0 0
    %726 = vmatpush1.bf16.msra.mxu0 %v713
    %727 = vmatprep.subr.bf16.mxu0 0
    %728 = vmatpush1.bf16.msra.mxu0 %v712
    %729 = vmatprep.subr.bf16.mxu0 0
    %730 = vmatpush1.bf16.msra.mxu0 %v711
    %731 = vmatprep.subr.bf16.mxu0 0
    %732 = vmatpush1.bf16.msra.mxu0 %v710
    %733 = vmatprep.subr.bf16.mxu0 0
    %734 = vmatpush1.bf16.msra.mxu0 %v709
    %735 = vmatprep.subr.bf16.mxu0 0
    %736 = vmatpush1.bf16.msra.mxu0 %v708
    %737 = vmatprep.subr.bf16.mxu0 0
    %738 = vmatpush1.bf16.msra.mxu0 %v707
    %739 = vmatprep.subr.bf16.mxu0 0
    %740 = vmatpush2.bf16.msra.mxu0 0
    %741 = vmatprep.subr.bf16.mxu0 0
    %742 = vmatpush2.bf16.msra.mxu0 0
    %743 = vmatprep.subr.bf16.mxu0 0
    %744 = vmatpush2.bf16.msra.mxu0 0
    %745 = vmatprep.subr.bf16.mxu0 0
    %746 = vmatpush2.bf16.msra.mxu0 0
    %747 = vmatprep.subr.bf16.mxu0 0
    %748 = vmatpush2.bf16.msra.mxu0 0
    %749 = vmatprep.subr.bf16.mxu0 0
    %750 = vmatpush2.bf16.msra.mxu0 0
    %751 = vmatprep.subr.bf16.mxu0 0
    %752 = vmatpush2.bf16.msra.mxu0 0
    %753 = vmatprep.subr.bf16.mxu0 0
    %754 = vmatpush2.bf16.msra.mxu0 0
    %755 = vmatprep.mubr.bf16.mxu0 0
    %756 = vmatmul.mubr.bf16.gmra.mxu0 %v671
    %v757 = vpop.f32.mrf.mxu0
    %v758 = vadd.f32 0.0, %v757
    %v759 = vpop.f32.mrf.mxu0
    %v760 = vpop.f32.mrf.mxu0
    %v761 = vadd.f32 0.0, %v760
    %v762 = vpop.f32.mrf.mxu0
    %763 = vmatprep.mubr.bf16.mxu0 0
    %764 = vmatmul.mubr.bf16.gmra.mxu0 %v672
    %v765 = vpop.f32.mrf.mxu0
    %v766 = vadd.f32 0.0, %v765
    %v767 = vpop.f32.mrf.mxu0
    %v768 = vpop.f32.mrf.mxu0
    %v769 = vadd.f32 0.0, %v768
    %v770 = vpop.f32.mrf.mxu0
    %771 = vdwg.mxu0
    %v772 = vadd.f32 %v630, %v758
    %v773 = vadd.f32 %v631, %v761
    %v774 = vadd.f32 %v632, %v766
    %v775 = vadd.f32 %v633, %v769
    %v776 = vld [vmem:[%s2] sm:$0x1]
    %v777 = vlaneseq
    %v778 = vshrl.u32 %v777, 7
    %v779 = vsub.s32 0, %v778
    %v780 = vrot.slane %v776, %v779
    %v781 = vmul.f32 %v772, %v780
    %v782 = vmul.f32 %v773, %v780
    %v783 = vmul.f32 %v774, %v780
    %v784 = vmul.f32 %v775, %v780
    %v785 = vld [vmem:[%s2 + $0x1] sm:$0x1]
    %v786 = vlaneseq
    %v787 = vshrl.u32 %v786, 7
    %v788 = vsub.s32 0, %v787
    %v789 = vrot.slane %v785, %v788
    %v790 = vadd.f32 %v781, %v789
    %v791 = vadd.f32 %v782, %v789
    %v792 = vadd.f32 %v783, %v789
    %v793 = vadd.f32 %v784, %v789
    %vm794 = vcmp.ge.f32.partialorder %v790, 0.0
    %vm795 = vcmp.ge.f32.partialorder %v791, 0.0
    %vm796 = vcmp.ge.f32.partialorder %v792, 0.0
    %vm797 = vcmp.ge.f32.partialorder %v793, 0.0
    %v798 = vld [vmem:[%s2 + $0x2] sm:$0x1]
    %v799 = vlaneseq
    %v800 = vshrl.u32 %v799, 7
    %v801 = vsub.s32 0, %v800
    %v802 = vrot.slane %v798, %v801
    %v803 = vmul.f32 %v790, %v802
    %v804 = vmul.f32 %v791, %v802
    %v805 = vmul.f32 %v792, %v802
    %v806 = vmul.f32 %v793, %v802
    %v807 = vsel %vm794, %v790, %v803
    %v808 = vsel %vm795, %v791, %v804
    %v809 = vsel %vm796, %v792, %v805
    %v810 = vsel %vm797, %v793, %v806
    %v811 = vpack.c.bf16 %v808, %v807
    %v812 = vpack.c.bf16 %v810, %v809
    %v815 = vunpack.c.l.b16 %v811
    %v816 = vunpack.c.h.b16 %v811
    %v817 = vunpack.c.l.b16 %v812
    %v818 = vunpack.c.h.b16 %v812
    %v819 = vpack.c.b16 %v815, %v815
    %v820 = vpack.c.b16 %v816, %v816
    %v821 = vpack.c.b16 %v817, %v817
    %v822 = vpack.c.b16 %v818, %v818
    %827 = vst [vmem:[%s3] sm:$0xf] %v819
    %828 = vst [vmem:[%s3 + $0x4] sm:$0xf] %v820
    %829 = vst [vmem:[%s3 + $0x8] sm:$0xf] %v821
    %830 = vst [vmem:[%s3 + $0xc] sm:$0xf] %v822
    // Predicated region
    $region18: #{dense_tcn_forward.7} parent=1 // pred_check
      _
    $region19: #{dense_tcn_forward.7} parent=1 // pred_check_branch
      %832 = sbr.rel (0) target = $region21
    $region20: #{dense_tcn_forward.7} parent=1 // pred_region
      _
    $region21: #{dense_tcn_forward.7} parent=1 // pred_fallthru
      _
    // Predicated region
    $region22: #{dense_tcn_forward.7} parent=1 // pred_check
      _
    $region23: #{dense_tcn_forward.7} parent=1 // pred_check_branch
      %834 = sbr.rel (0) target = $region25
    $region24: #{dense_tcn_forward.7} parent=1 // pred_region
      _
    $region25: #{dense_tcn_forward.7} parent=1 // pred_fallthru
      _
    %835 = vsyncpa [#allocation3], 1

// kernel: dense_tcn_forward.8
$region0: #{dense_tcn_forward.8}
  #allocation0 [shape = 'u32[]', space=smem, size = 0x4, offset = 0x4, fixed_abs, tag = 'smem constant byte address 0x4 - core index']
  #allocation1 [shape = 'u32[144,128]{1,0:T(1,128)}', space=vmem, size = 0x12000, scoped, tag = 'internal scratch']
  %s0 = inlined_call_operand.vmem [shape: bf16[2,20,128], index: 0, kind: input, shape index: {}]
  %s1 = inlined_call_operand.vmem [shape: bf16[640,128], index: 1, kind: input, shape index: {}]
  %s2 = inlined_call_operand.vmem [shape: f32[3,128], index: 2, kind: input, shape index: {}]
  %s3 = inlined_call_operand.vmem [shape: bf16[2,16,128], index: 3, kind: input, shape index: {}]
  %s4 = inlined_call_operand.vmem [shape: f32[2,128], index: 4, kind: input, shape index: {}]
  %s5 = inlined_call_operand.vmem [shape: bf16[2,16,128], index: 5, kind: output, shape index: {}]
  %s6 = sld [smem:[#allocation0]]
  $region30: #{dense_tcn_forward.8} parent=0
    _
  %s8 = ssub.s32 1, %s6
  %s9 = scalar_select 0, %s8, %s6
  // Predicated region
  $region2: #{dense_tcn_forward.8} parent=0 // pred_check
    _
  $region3: #{dense_tcn_forward.8} parent=0 // pred_check_branch
    %11 = sbr.rel (0) target = $region5
  $region4: #{dense_tcn_forward.8} parent=0 // pred_region
    _
  $region5: #{dense_tcn_forward.8} parent=0 // pred_fallthru
    _
  // Predicated region
  $region6: #{dense_tcn_forward.8} parent=0 // pred_check
    _
  $region7: #{dense_tcn_forward.8} parent=0 // pred_check_branch
    %13 = sbr.rel (0) target = $region9
  $region8: #{dense_tcn_forward.8} parent=0 // pred_region
    _
  $region9: #{dense_tcn_forward.8} parent=0 // pred_fallthru
    _
  // Predicated region
  $region10: #{dense_tcn_forward.8} parent=0 // pred_check
    _
  $region11: #{dense_tcn_forward.8} parent=0 // pred_check_branch
    %15 = sbr.rel (0) target = $region13
  $region12: #{dense_tcn_forward.8} parent=0 // pred_region
    _
  $region13: #{dense_tcn_forward.8} parent=0 // pred_fallthru
    _
  // Predicated region
  $region14: #{dense_tcn_forward.8} parent=0 // pred_check
    _
  $region15: #{dense_tcn_forward.8} parent=0 // pred_check_branch
    %17 = sbr.rel (0) target = $region17
  $region16: #{dense_tcn_forward.8} parent=0 // pred_region
    _
  $region17: #{dense_tcn_forward.8} parent=0 // pred_fallthru
    _
  // Predicated region
  $region18: #{dense_tcn_forward.8} parent=0 // pred_check
    _
  $region19: #{dense_tcn_forward.8} parent=0 // pred_check_branch
    %19 = sbr.rel (0) target = $region21
  $region20: #{dense_tcn_forward.8} parent=0 // pred_region
    _
  $region21: #{dense_tcn_forward.8} parent=0 // pred_fallthru
    _
  %v21 = vld [vmem:[%s0] sm:$0xf]
  %v22 = vld [vmem:[%s0 + $0x4] sm:$0xf]
  %v23 = vld [vmem:[%s0 + $0x8] sm:$0x3]
  %v24 = vld [vmem:[%s0 + $0xc] sm:$0xf]
  %v25 = vld [vmem:[%s0 + $0x10] sm:$0xf]
  %v26 = vld [vmem:[%s0 + $0x14] sm:$0x3]
  %v27 = vld [vmem:[%s1] sm:$0xf]
  %v28 = vld [vmem:[%s1 + $0x4] sm:$0xf]
  %v29 = vld [vmem:[%s1 + $0x8] sm:$0xf]
  %v30 = vld [vmem:[%s1 + $0xc] sm:$0xf]
  %v31 = vld [vmem:[%s1 + $0x10] sm:$0xf]
  %v32 = vld [vmem:[%s1 + $0x14] sm:$0xf]
  %v33 = vld [vmem:[%s1 + $0x18] sm:$0xf]
  %v34 = vld [vmem:[%s1 + $0x1c] sm:$0xf]
  %v35 = vld [vmem:[%s1 + $0x20] sm:$0xf]
  %v36 = vld [vmem:[%s1 + $0x24] sm:$0xf]
  %v37 = vld [vmem:[%s1 + $0x28] sm:$0xf]
  %v38 = vld [vmem:[%s1 + $0x2c] sm:$0xf]
  %v39 = vld [vmem:[%s1 + $0x30] sm:$0xf]
  %v40 = vld [vmem:[%s1 + $0x34] sm:$0xf]
  %v41 = vld [vmem:[%s1 + $0x38] sm:$0xf]
  %v42 = vld [vmem:[%s1 + $0x3c] sm:$0xf]
  %vm43 = vsmask.f32 3328
  %vm44 = vsmask.f32 7440
  %vm45 = vmor %vm43, %vm44
  %v47 = vshrl.u32 %v21, 16
  %v49 = vrot.slane %v47, 4
  %v50 = vshll.u32 %v21, 16
  %v52 = vrot.slane %v50, 5
  %v53 = vor.u32 %v49, %v52
  %v54 = vrot.slane %v53, 4
  %v56 = vshll.u32 %v22, 16
  %v58 = vrot.slane %v56, 5
  %v59 = vsel %vm45, %v54, %v58
  %v60 = vshrl.u32 %v22, 16
  %v62 = vrot.slane %v60, 4
  %v63 = vor.u32 %v62, %v58
  %v64 = vrot.slane %v63, 4
  %v66 = vshll.u32 %v23, 16
  %v68 = vrot.slane %v66, 5
  %v69 = vsel %vm45, %v64, %v68
  %v71 = vshrl.u32 %v24, 16
  %v73 = vrot.slane %v71, 4
  %v74 = vshll.u32 %v24, 16
  %v76 = vrot.slane %v74, 5
  %v77 = vor.u32 %v73, %v76
  %v78 = vrot.slane %v77, 4
  %v80 = vshll.u32 %v25, 16
  %v82 = vrot.slane %v80, 5
  %v83 = vsel %vm45, %v78, %v82
  %v84 = vshrl.u32 %v25, 16
  %v86 = vrot.slane %v84, 4
  %v87 = vor.u32 %v86, %v82
  %v88 = vrot.slane %v87, 4
  %v90 = vshll.u32 %v26, 16
  %v92 = vrot.slane %v90, 5
  %v93 = vsel %vm45, %v88, %v92
  %v94 = vld [vmem:[%s1 + $0x40] sm:$0xf]
  %v95 = vld [vmem:[%s1 + $0x44] sm:$0xf]
  %v96 = vld [vmem:[%s1 + $0x48] sm:$0xf]
  %v97 = vld [vmem:[%s1 + $0x4c] sm:$0xf]
  %v98 = vld [vmem:[%s1 + $0x50] sm:$0xf]
  %v99 = vld [vmem:[%s1 + $0x54] sm:$0xf]
  %v100 = vld [vmem:[%s1 + $0x58] sm:$0xf]
  %v101 = vld [vmem:[%s1 + $0x5c] sm:$0xf]
  %v102 = vld [vmem:[%s1 + $0x60] sm:$0xf]
  %v103 = vld [vmem:[%s1 + $0x64] sm:$0xf]
  %v104 = vld [vmem:[%s1 + $0x68] sm:$0xf]
  %v105 = vld [vmem:[%s1 + $0x6c] sm:$0xf]
  %v106 = vld [vmem:[%s1 + $0x70] sm:$0xf]
  %v107 = vld [vmem:[%s1 + $0x74] sm:$0xf]
  %v108 = vld [vmem:[%s1 + $0x78] sm:$0xf]
  %v109 = vld [vmem:[%s1 + $0x7c] sm:$0xf]
  %v110 = vunpack.c.l.b16 %v59
  %v111 = vunpack.c.l.b16 %v69
  %v112 = vunpack.c.l.b16 %v83
  %v113 = vunpack.c.l.b16 %v93
  %v114 = vpack.c.b16 %v111, %v110
  %v115 = vpack.c.b16 %v113, %v112
  %v134 = vunpack.c.l.b16 %v94
  %v135 = vunpack.c.l.b16 %v95
  %v136 = vunpack.c.l.b16 %v96
  %v137 = vunpack.c.l.b16 %v97
  %v138 = vunpack.c.l.b16 %v98
  %v139 = vunpack.c.l.b16 %v99
  %v140 = vunpack.c.l.b16 %v100
  %v141 = vunpack.c.l.b16 %v101
  %v142 = vunpack.c.l.b16 %v102
  %v143 = vunpack.c.l.b16 %v103
  %v144 = vunpack.c.l.b16 %v104
  %v145 = vunpack.c.l.b16 %v105
  %v146 = vunpack.c.l.b16 %v106
  %v147 = vunpack.c.l.b16 %v107
  %v148 = vunpack.c.l.b16 %v108
  %v149 = vunpack.c.l.b16 %v109
  %v150 = vpack.c.b16 %v135, %v134
  %v151 = vpack.c.b16 %v137, %v136
  %v152 = vpack.c.b16 %v139, %v138
  %v153 = vpack.c.b16 %v141, %v140
  %v154 = vpack.c.b16 %v143, %v142
  %v155 = vpack.c.b16 %v145, %v144
  %v156 = vpack.c.b16 %v147, %v146
  %v157 = vpack.c.b16 %v149, %v148
  %166 = vmatprep.subr.bf16.mxu0 0
  %167 = vmatpush1.bf16.msra.mxu0 %v157
  %168 = vmatprep.subr.bf16.mxu0 0
  %169 = vmatpush1.bf16.msra.mxu0 %v156
  %170 = vmatprep.subr.bf16.mxu0 0
  %171 = vmatpush1.bf16.msra.mxu0 %v155
  %172 = vmatprep.subr.bf16.mxu0 0
  %173 = vmatpush1.bf16.msra.mxu0 %v154
  %174 = vmatprep.subr.bf16.mxu0 0
  %175 = vmatpush1.bf16.msra.mxu0 %v153
  %176 = vmatprep.subr.bf16.mxu0 0
  %177 = vmatpush1.bf16.msra.mxu0 %v152
  %178 = vmatprep.subr.bf16.mxu0 0
  %179 = vmatpush1.bf16.msra.mxu0 %v151
  %180 = vmatprep.subr.bf16.mxu0 0
  %181 = vmatpush1.bf16.msra.mxu0 %v150
  %182 = vmatprep.subr.bf16.mxu0 0
  %183 = vmatpush2.bf16.msra.mxu0 0
  %184 = vmatprep.subr.bf16.mxu0 0
  %185 = vmatpush2.bf16.msra.mxu0 0
  %186 = vmatprep.subr.bf16.mxu0 0
  %187 = vmatpush2.bf16.msra.mxu0 0
  %188 = vmatprep.subr.bf16.mxu0 0
  %189 = vmatpush2.bf16.msra.mxu0 0
  %190 = vmatprep.subr.bf16.mxu0 0
  %191 = vmatpush2.bf16.msra.mxu0 0
  %192 = vmatprep.subr.bf16.mxu0 0
  %193 = vmatpush2.bf16.msra.mxu0 0
  %194 = vmatprep.subr.bf16.mxu0 0
  %195 = vmatpush2.bf16.msra.mxu0 0
  %196 = vmatprep.subr.bf16.mxu0 0
  %197 = vmatpush2.bf16.msra.mxu0 0
  %198 = vmatprep.mubr.bf16.mxu0 0
  %199 = vmatmul.mubr.bf16.gmra.mxu0 %v114
  %v200 = vpop.f32.mrf.mxu0
  %v201 = vadd.f32 0.0, %v200
  %v202 = vpop.f32.mrf.mxu0
  %v203 = vpop.f32.mrf.mxu0
  %v204 = vadd.f32 0.0, %v203
  %v205 = vpop.f32.mrf.mxu0
  %206 = vmatprep.mubr.bf16.mxu0 0
  %207 = vmatmul.mubr.bf16.gmra.mxu0 %v115
  %v208 = vpop.f32.mrf.mxu0
  %v209 = vadd.f32 0.0, %v208
  %v210 = vpop.f32.mrf.mxu0
  %v211 = vpop.f32.mrf.mxu0
  %v212 = vadd.f32 0.0, %v211
  %v213 = vpop.f32.mrf.mxu0
  %214 = vdwg.mxu0
  %v219 = vunpack.c.l.b16 %v21
  %v220 = vunpack.c.l.b16 %v22
  %v221 = vunpack.c.l.b16 %v24
  %v222 = vunpack.c.l.b16 %v25
  %v223 = vpack.c.b16 %v220, %v219
  %v224 = vpack.c.b16 %v222, %v221
  %v243 = vunpack.c.l.b16 %v27
  %v244 = vunpack.c.l.b16 %v28
  %v245 = vunpack.c.l.b16 %v29
  %v246 = vunpack.c.l.b16 %v30
  %v247 = vunpack.c.l.b16 %v31
  %v248 = vunpack.c.l.b16 %v32
  %v249 = vunpack.c.l.b16 %v33
  %v250 = vunpack.c.l.b16 %v34
  %v251 = vunpack.c.l.b16 %v35
  %v252 = vunpack.c.l.b16 %v36
  %v253 = vunpack.c.l.b16 %v37
  %v254 = vunpack.c.l.b16 %v38
  %v255 = vunpack.c.l.b16 %v39
  %v256 = vunpack.c.l.b16 %v40
  %v257 = vunpack.c.l.b16 %v41
  %v258 = vunpack.c.l.b16 %v42
  %v259 = vpack.c.b16 %v244, %v243
  %v260 = vpack.c.b16 %v246, %v245
  %v261 = vpack.c.b16 %v248, %v247
  %v262 = vpack.c.b16 %v250, %v249
  %v263 = vpack.c.b16 %v252, %v251
  %v264 = vpack.c.b16 %v254, %v253
  %v265 = vpack.c.b16 %v256, %v255
  %v266 = vpack.c.b16 %v258, %v257
  %275 = vmatprep.subr.bf16.mxu0 0
  %276 = vmatpush1.bf16.msra.mxu0 %v266
  %277 = vmatprep.subr.bf16.mxu0 0
  %278 = vmatpush1.bf16.msra.mxu0 %v265
  %279 = vmatprep.subr.bf16.mxu0 0
  %280 = vmatpush1.bf16.msra.mxu0 %v264
  %281 = vmatprep.subr.bf16.mxu0 0
  %282 = vmatpush1.bf16.msra.mxu0 %v263
  %283 = vmatprep.subr.bf16.mxu0 0
  %284 = vmatpush1.bf16.msra.mxu0 %v262
  %285 = vmatprep.subr.bf16.mxu0 0
  %286 = vmatpush1.bf16.msra.mxu0 %v261
  %287 = vmatprep.subr.bf16.mxu0 0
  %288 = vmatpush1.bf16.msra.mxu0 %v260
  %289 = vmatprep.subr.bf16.mxu0 0
  %290 = vmatpush1.bf16.msra.mxu0 %v259
  %291 = vmatprep.subr.bf16.mxu0 0
  %292 = vmatpush2.bf16.msra.mxu0 0
  %293 = vmatprep.subr.bf16.mxu0 0
  %294 = vmatpush2.bf16.msra.mxu0 0
  %295 = vmatprep.subr.bf16.mxu0 0
  %296 = vmatpush2.bf16.msra.mxu0 0
  %297 = vmatprep.subr.bf16.mxu0 0
  %298 = vmatpush2.bf16.msra.mxu0 0
  %299 = vmatprep.subr.bf16.mxu0 0
  %300 = vmatpush2.bf16.msra.mxu0 0
  %301 = vmatprep.subr.bf16.mxu0 0
  %302 = vmatpush2.bf16.msra.mxu0 0
  %303 = vmatprep.subr.bf16.mxu0 0
  %304 = vmatpush2.bf16.msra.mxu0 0
  %305 = vmatprep.subr.bf16.mxu0 0
  %306 = vmatpush2.bf16.msra.mxu0 0
  %307 = vmatprep.mubr.bf16.mxu0 0
  %308 = vmatmul.mubr.bf16.gmra.mxu0 %v223
  %v309 = vpop.f32.mrf.mxu0
  %v310 = vadd.f32 %v201, %v309
  %v311 = vpop.f32.mrf.mxu0
  %v312 = vpop.f32.mrf.mxu0
  %v313 = vadd.f32 %v204, %v312
  %v314 = vpop.f32.mrf.mxu0
  %315 = vmatprep.mubr.bf16.mxu0 0
  %316 = vmatmul.mubr.bf16.gmra.mxu0 %v224
  %v317 = vpop.f32.mrf.mxu0
  %v318 = vadd.f32 %v209, %v317
  %v319 = vpop.f32.mrf.mxu0
  %v320 = vpop.f32.mrf.mxu0
  %v321 = vadd.f32 %v212, %v320
  %v322 = vpop.f32.mrf.mxu0
  %323 = vdwg.mxu0
  %vm326 = vcmask 1042432
  %vm327 = vcmask 1046532
  %vm328 = vmor %vm326, %vm327
  %v329 = vrot.slane %v21, 5
  %v330 = vrot.slane %v329, 4
  %v331 = vrot.slane %v22, 5
  %v332 = vsel %vm328, %v330, %v331
  %v333 = vrot.slane %v331, 4
  %v334 = vrot.slane %v23, 5
  %v335 = vsel %vm328, %v333, %v334
  %v336 = vrot.slane %v24, 5
  %v337 = vrot.slane %v336, 4
  %v338 = vrot.slane %v25, 5
  %v339 = vsel %vm328, %v337, %v338
  %v340 = vrot.slane %v338, 4
  %v341 = vrot.slane %v26, 5
  %v342 = vsel %vm328, %v340, %v341
  %v343 = vld [vmem:[%s1 + $0x80] sm:$0xf]
  %v344 = vld [vmem:[%s1 + $0x84] sm:$0xf]
  %v345 = vld [vmem:[%s1 + $0x88] sm:$0xf]
  %v346 = vld [vmem:[%s1 + $0x8c] sm:$0xf]
  %v347 = vld [vmem:[%s1 + $0x90] sm:$0xf]
  %v348 = vld [vmem:[%s1 + $0x94] sm:$0xf]
  %v349 = vld [vmem:[%s1 + $0x98] sm:$0xf]
  %v350 = vld [vmem:[%s1 + $0x9c] sm:$0xf]
  %v351 = vld [vmem:[%s1 + $0xa0] sm:$0xf]
  %v352 = vld [vmem:[%s1 + $0xa4] sm:$0xf]
  %v353 = vld [vmem:[%s1 + $0xa8] sm:$0xf]
  %v354 = vld [vmem:[%s1 + $0xac] sm:$0xf]
  %v355 = vld [vmem:[%s1 + $0xb0] sm:$0xf]
  %v356 = vld [vmem:[%s1 + $0xb4] sm:$0xf]
  %v357 = vld [vmem:[%s1 + $0xb8] sm:$0xf]
  %v358 = vld [vmem:[%s1 + $0xbc] sm:$0xf]
  %v359 = vunpack.c.l.b16 %v332
  %v360 = vunpack.c.l.b16 %v335
  %v361 = vunpack.c.l.b16 %v339
  %v362 = vunpack.c.l.b16 %v342
  %v363 = vpack.c.b16 %v360, %v359
  %v364 = vpack.c.b16 %v362, %v361
  %v383 = vunpack.c.l.b16 %v343
  %v384 = vunpack.c.l.b16 %v344
  %v385 = vunpack.c.l.b16 %v345
  %v386 = vunpack.c.l.b16 %v346
  %v387 = vunpack.c.l.b16 %v347
  %v388 = vunpack.c.l.b16 %v348
  %v389 = vunpack.c.l.b16 %v349
  %v390 = vunpack.c.l.b16 %v350
  %v391 = vunpack.c.l.b16 %v351
  %v392 = vunpack.c.l.b16 %v352
  %v393 = vunpack.c.l.b16 %v353
  %v394 = vunpack.c.l.b16 %v354
  %v395 = vunpack.c.l.b16 %v355
  %v396 = vunpack.c.l.b16 %v356
  %v397 = vunpack.c.l.b16 %v357
  %v398 = vunpack.c.l.b16 %v358
  %v399 = vpack.c.b16 %v384, %v383
  %v400 = vpack.c.b16 %v386, %v385
  %v401 = vpack.c.b16 %v388, %v387
  %v402 = vpack.c.b16 %v390, %v389
  %v403 = vpack.c.b16 %v392, %v391
  %v404 = vpack.c.b16 %v394, %v393
  %v405 = vpack.c.b16 %v396, %v395
  %v406 = vpack.c.b16 %v398, %v397
  %415 = vmatprep.subr.bf16.mxu0 0
  %416 = vmatpush1.bf16.msra.mxu0 %v406
  %417 = vmatprep.subr.bf16.mxu0 0
  %418 = vmatpush1.bf16.msra.mxu0 %v405
  %419 = vmatprep.subr.bf16.mxu0 0
  %420 = vmatpush1.bf16.msra.mxu0 %v404
  %421 = vmatprep.subr.bf16.mxu0 0
  %422 = vmatpush1.bf16.msra.mxu0 %v403
  %423 = vmatprep.subr.bf16.mxu0 0
  %424 = vmatpush1.bf16.msra.mxu0 %v402
  %425 = vmatprep.subr.bf16.mxu0 0
  %426 = vmatpush1.bf16.msra.mxu0 %v401
  %427 = vmatprep.subr.bf16.mxu0 0
  %428 = vmatpush1.bf16.msra.mxu0 %v400
  %429 = vmatprep.subr.bf16.mxu0 0
  %430 = vmatpush1.bf16.msra.mxu0 %v399
  %431 = vmatprep.subr.bf16.mxu0 0
  %432 = vmatpush2.bf16.msra.mxu0 0
  %433 = vmatprep.subr.bf16.mxu0 0
  %434 = vmatpush2.bf16.msra.mxu0 0
  %435 = vmatprep.subr.bf16.mxu0 0
  %436 = vmatpush2.bf16.msra.mxu0 0
  %437 = vmatprep.subr.bf16.mxu0 0
  %438 = vmatpush2.bf16.msra.mxu0 0
  %439 = vmatprep.subr.bf16.mxu0 0
  %440 = vmatpush2.bf16.msra.mxu0 0
  %441 = vmatprep.subr.bf16.mxu0 0
  %442 = vmatpush2.bf16.msra.mxu0 0
  %443 = vmatprep.subr.bf16.mxu0 0
  %444 = vmatpush2.bf16.msra.mxu0 0
  %445 = vmatprep.subr.bf16.mxu0 0
  %446 = vmatpush2.bf16.msra.mxu0 0
  %447 = vmatprep.mubr.bf16.mxu0 0
  %448 = vmatmul.mubr.bf16.gmra.mxu0 %v363
  %v449 = vpop.f32.mrf.mxu0
  %v450 = vadd.f32 0.0, %v449
  %v451 = vpop.f32.mrf.mxu0
  %v452 = vpop.f32.mrf.mxu0
  %v453 = vadd.f32 0.0, %v452
  %v454 = vpop.f32.mrf.mxu0
  %455 = vmatprep.mubr.bf16.mxu0 0
  %456 = vmatmul.mubr.bf16.gmra.mxu0 %v364
  %v457 = vpop.f32.mrf.mxu0
  %v458 = vadd.f32 0.0, %v457
  %v459 = vpop.f32.mrf.mxu0
  %v460 = vpop.f32.mrf.mxu0
  %v461 = vadd.f32 0.0, %v460
  %v462 = vpop.f32.mrf.mxu0
  %463 = vdwg.mxu0
  %v464 = vadd.f32 %v310, %v450
  %v465 = vadd.f32 %v313, %v453
  %v466 = vadd.f32 %v318, %v458
  %v467 = vadd.f32 %v321, %v461
  %vm468 = vsmask.f32 2304
  %vm469 = vsmask.f32 6416
  %vm470 = vmor %vm468, %vm469
  %v471 = vrot.slane %v47, 5
  %v472 = vrot.slane %v50, 6
  %v473 = vor.u32 %v471, %v472
  %v474 = vrot.slane %v473, 4
  %v475 = vrot.slane %v60, 5
  %v476 = vrot.slane %v56, 6
  %v477 = vor.u32 %v475, %v476
  %v478 = vsel %vm470, %v474, %v477
  %v479 = vrot.slane %v477, 4
  %v480 = vshrl.u32 %v23, 16
  %v482 = vrot.slane %v480, 5
  %v483 = vrot.slane %v66, 6
  %v484 = vor.u32 %v482, %v483
  %v485 = vsel %vm470, %v479, %v484
  %v486 = vrot.slane %v71, 5
  %v487 = vrot.slane %v74, 6
  %v488 = vor.u32 %v486, %v487
  %v489 = vrot.slane %v488, 4
  %v490 = vrot.slane %v84, 5
  %v491 = vrot.slane %v80, 6
  %v492 = vor.u32 %v490, %v491
  %v493 = vsel %vm470, %v489, %v492
  %v494 = vrot.slane %v492, 4
  %v495 = vshrl.u32 %v26, 16
  %v497 = vrot.slane %v495, 5
  %v498 = vrot.slane %v90, 6
  %v499 = vor.u32 %v497, %v498
  %v500 = vsel %vm470, %v494, %v499
  %v501 = vld [vmem:[%s1 + $0xc0] sm:$0xf]
  %v502 = vld [vmem:[%s1 + $0xc4] sm:$0xf]
  %v503 = vld [vmem:[%s1 + $0xc8] sm:$0xf]
  %v504 = vld [vmem:[%s1 + $0xcc] sm:$0xf]
  %v505 = vld [vmem:[%s1 + $0xd0] sm:$0xf]
  %v506 = vld [vmem:[%s1 + $0xd4] sm:$0xf]
  %v507 = vld [vmem:[%s1 + $0xd8] sm:$0xf]
  %v508 = vld [vmem:[%s1 + $0xdc] sm:$0xf]
  %v509 = vld [vmem:[%s1 + $0xe0] sm:$0xf]
  %v510 = vld [vmem:[%s1 + $0xe4] sm:$0xf]
  %v511 = vld [vmem:[%s1 + $0xe8] sm:$0xf]
  %v512 = vld [vmem:[%s1 + $0xec] sm:$0xf]
  %v513 = vld [vmem:[%s1 + $0xf0] sm:$0xf]
  %v514 = vld [vmem:[%s1 + $0xf4] sm:$0xf]
  %v515 = vld [vmem:[%s1 + $0xf8] sm:$0xf]
  %v516 = vld [vmem:[%s1 + $0xfc] sm:$0xf]
  %v517 = vunpack.c.l.b16 %v478
  %v518 = vunpack.c.l.b16 %v485
  %v519 = vunpack.c.l.b16 %v493
  %v520 = vunpack.c.l.b16 %v500
  %v521 = vpack.c.b16 %v518, %v517
  %v522 = vpack.c.b16 %v520, %v519
  %v541 = vunpack.c.l.b16 %v501
  %v542 = vunpack.c.l.b16 %v502
  %v543 = vunpack.c.l.b16 %v503
  %v544 = vunpack.c.l.b16 %v504
  %v545 = vunpack.c.l.b16 %v505
  %v546 = vunpack.c.l.b16 %v506
  %v547 = vunpack.c.l.b16 %v507
  %v548 = vunpack.c.l.b16 %v508
  %v549 = vunpack.c.l.b16 %v509
  %v550 = vunpack.c.l.b16 %v510
  %v551 = vunpack.c.l.b16 %v511
  %v552 = vunpack.c.l.b16 %v512
  %v553 = vunpack.c.l.b16 %v513
  %v554 = vunpack.c.l.b16 %v514
  %v555 = vunpack.c.l.b16 %v515
  %v556 = vunpack.c.l.b16 %v516
  %v557 = vpack.c.b16 %v542, %v541
  %v558 = vpack.c.b16 %v544, %v543
  %v559 = vpack.c.b16 %v546, %v545
  %v560 = vpack.c.b16 %v548, %v547
  %v561 = vpack.c.b16 %v550, %v549
  %v562 = vpack.c.b16 %v552, %v551
  %v563 = vpack.c.b16 %v554, %v553
  %v564 = vpack.c.b16 %v556, %v555
  %573 = vmatprep.subr.bf16.mxu0 0
  %574 = vmatpush1.bf16.msra.mxu0 %v564
  %575 = vmatprep.subr.bf16.mxu0 0
  %576 = vmatpush1.bf16.msra.mxu0 %v563
  %577 = vmatprep.subr.bf16.mxu0 0
  %578 = vmatpush1.bf16.msra.mxu0 %v562
  %579 = vmatprep.subr.bf16.mxu0 0
  %580 = vmatpush1.bf16.msra.mxu0 %v561
  %581 = vmatprep.subr.bf16.mxu0 0
  %582 = vmatpush1.bf16.msra.mxu0 %v560
  %583 = vmatprep.subr.bf16.mxu0 0
  %584 = vmatpush1.bf16.msra.mxu0 %v559
  %585 = vmatprep.subr.bf16.mxu0 0
  %586 = vmatpush1.bf16.msra.mxu0 %v558
  %587 = vmatprep.subr.bf16.mxu0 0
  %588 = vmatpush1.bf16.msra.mxu0 %v557
  %589 = vmatprep.subr.bf16.mxu0 0
  %590 = vmatpush2.bf16.msra.mxu0 0
  %591 = vmatprep.subr.bf16.mxu0 0
  %592 = vmatpush2.bf16.msra.mxu0 0
  %593 = vmatprep.subr.bf16.mxu0 0
  %594 = vmatpush2.bf16.msra.mxu0 0
  %595 = vmatprep.subr.bf16.mxu0 0
  %596 = vmatpush2.bf16.msra.mxu0 0
  %597 = vmatprep.subr.bf16.mxu0 0
  %598 = vmatpush2.bf16.msra.mxu0 0
  %599 = vmatprep.subr.bf16.mxu0 0
  %600 = vmatpush2.bf16.msra.mxu0 0
  %601 = vmatprep.subr.bf16.mxu0 0
  %602 = vmatpush2.bf16.msra.mxu0 0
  %603 = vmatprep.subr.bf16.mxu0 0
  %604 = vmatpush2.bf16.msra.mxu0 0
  %605 = vmatprep.mubr.bf16.mxu0 0
  %606 = vmatmul.mubr.bf16.gmra.mxu0 %v521
  %v607 = vpop.f32.mrf.mxu0
  %v608 = vadd.f32 0.0, %v607
  %v609 = vpop.f32.mrf.mxu0
  %v610 = vpop.f32.mrf.mxu0
  %v611 = vadd.f32 0.0, %v610
  %v612 = vpop.f32.mrf.mxu0
  %613 = vmatprep.mubr.bf16.mxu0 0
  %614 = vmatmul.mubr.bf16.gmra.mxu0 %v522
  %v615 = vpop.f32.mrf.mxu0
  %v616 = vadd.f32 0.0, %v615
  %v617 = vpop.f32.mrf.mxu0
  %v618 = vpop.f32.mrf.mxu0
  %v619 = vadd.f32 0.0, %v618
  %v620 = vpop.f32.mrf.mxu0
  %621 = vdwg.mxu0
  %v622 = vadd.f32 %v464, %v608
  %v623 = vadd.f32 %v465, %v611
  %v624 = vadd.f32 %v466, %v616
  %v625 = vadd.f32 %v467, %v619
  %vm626 = vcmask 1041408
  %vm627 = vcmask 1045508
  %vm628 = vmor %vm626, %vm627
  %v629 = vrot.slane %v21, 6
  %v630 = vrot.slane %v629, 4
  %v631 = vrot.slane %v22, 6
  %v632 = vsel %vm628, %v630, %v631
  %v633 = vrot.slane %v631, 4
  %v634 = vrot.slane %v23, 6
  %v635 = vsel %vm628, %v633, %v634
  %v636 = vrot.slane %v24, 6
  %v637 = vrot.slane %v636, 4
  %v638 = vrot.slane %v25, 6
  %v639 = vsel %vm628, %v637, %v638
  %v640 = vrot.slane %v638, 4
  %v641 = vrot.slane %v26, 6
  %v642 = vsel %vm628, %v640, %v641
  %v643 = vld [vmem:[%s1 + $0x100] sm:$0xf]
  %v644 = vld [vmem:[%s1 + $0x104] sm:$0xf]
  %v645 = vld [vmem:[%s1 + $0x108] sm:$0xf]
  %v646 = vld [vmem:[%s1 + $0x10c] sm:$0xf]
  %v647 = vld [vmem:[%s1 + $0x110] sm:$0xf]
  %v648 = vld [vmem:[%s1 + $0x114] sm:$0xf]
  %v649 = vld [vmem:[%s1 + $0x118] sm:$0xf]
  %v650 = vld [vmem:[%s1 + $0x11c] sm:$0xf]
  %v651 = vld [vmem:[%s1 + $0x120] sm:$0xf]
  %v652 = vld [vmem:[%s1 + $0x124] sm:$0xf]
  %v653 = vld [vmem:[%s1 + $0x128] sm:$0xf]
  %v654 = vld [vmem:[%s1 + $0x12c] sm:$0xf]
  %v655 = vld [vmem:[%s1 + $0x130] sm:$0xf]
  %v656 = vld [vmem:[%s1 + $0x134] sm:$0xf]
  %v657 = vld [vmem:[%s1 + $0x138] sm:$0xf]
  %v658 = vld [vmem:[%s1 + $0x13c] sm:$0xf]
  %v659 = vunpack.c.l.b16 %v632
  %v660 = vunpack.c.l.b16 %v635
  %v661 = vunpack.c.l.b16 %v639
  %v662 = vunpack.c.l.b16 %v642
  %v663 = vpack.c.b16 %v660, %v659
  %v664 = vpack.c.b16 %v662, %v661
  %v683 = vunpack.c.l.b16 %v643
  %v684 = vunpack.c.l.b16 %v644
  %v685 = vunpack.c.l.b16 %v645
  %v686 = vunpack.c.l.b16 %v646
  %v687 = vunpack.c.l.b16 %v647
  %v688 = vunpack.c.l.b16 %v648
  %v689 = vunpack.c.l.b16 %v649
  %v690 = vunpack.c.l.b16 %v650
  %v691 = vunpack.c.l.b16 %v651
  %v692 = vunpack.c.l.b16 %v652
  %v693 = vunpack.c.l.b16 %v653
  %v694 = vunpack.c.l.b16 %v654
  %v695 = vunpack.c.l.b16 %v655
  %v696 = vunpack.c.l.b16 %v656
  %v697 = vunpack.c.l.b16 %v657
  %v698 = vunpack.c.l.b16 %v658
  %v699 = vpack.c.b16 %v684, %v683
  %v700 = vpack.c.b16 %v686, %v685
  %v701 = vpack.c.b16 %v688, %v687
  %v702 = vpack.c.b16 %v690, %v689
  %v703 = vpack.c.b16 %v692, %v691
  %v704 = vpack.c.b16 %v694, %v693
  %v705 = vpack.c.b16 %v696, %v695
  %v706 = vpack.c.b16 %v698, %v697
  %715 = vmatprep.subr.bf16.mxu0 0
  %716 = vmatpush1.bf16.msra.mxu0 %v706
  %717 = vmatprep.subr.bf16.mxu0 0
  %718 = vmatpush1.bf16.msra.mxu0 %v705
  %719 = vmatprep.subr.bf16.mxu0 0
  %720 = vmatpush1.bf16.msra.mxu0 %v704
  %721 = vmatprep.subr.bf16.mxu0 0
  %722 = vmatpush1.bf16.msra.mxu0 %v703
  %723 = vmatprep.subr.bf16.mxu0 0
  %724 = vmatpush1.bf16.msra.mxu0 %v702
  %725 = vmatprep.subr.bf16.mxu0 0
  %726 = vmatpush1.bf16.msra.mxu0 %v701
  %727 = vmatprep.subr.bf16.mxu0 0
  %728 = vmatpush1.bf16.msra.mxu0 %v700
  %729 = vmatprep.subr.bf16.mxu0 0
  %730 = vmatpush1.bf16.msra.mxu0 %v699
  %731 = vmatprep.subr.bf16.mxu0 0
  %732 = vmatpush2.bf16.msra.mxu0 0
  %733 = vmatprep.subr.bf16.mxu0 0
  %734 = vmatpush2.bf16.msra.mxu0 0
  %735 = vmatprep.subr.bf16.mxu0 0
  %736 = vmatpush2.bf16.msra.mxu0 0
  %737 = vmatprep.subr.bf16.mxu0 0
  %738 = vmatpush2.bf16.msra.mxu0 0
  %739 = vmatprep.subr.bf16.mxu0 0
  %740 = vmatpush2.bf16.msra.mxu0 0
  %741 = vmatprep.subr.bf16.mxu0 0
  %742 = vmatpush2.bf16.msra.mxu0 0
  %743 = vmatprep.subr.bf16.mxu0 0
  %744 = vmatpush2.bf16.msra.mxu0 0
  %745 = vmatprep.subr.bf16.mxu0 0
  %746 = vmatpush2.bf16.msra.mxu0 0
  %747 = vmatprep.mubr.bf16.mxu0 0
  %748 = vmatmul.mubr.bf16.gmra.mxu0 %v663
  %v749 = vpop.f32.mrf.mxu0
  %v750 = vadd.f32 0.0, %v749
  %v751 = vpop.f32.mrf.mxu0
  %v752 = vpop.f32.mrf.mxu0
  %v753 = vadd.f32 0.0, %v752
  %v754 = vpop.f32.mrf.mxu0
  %755 = vmatprep.mubr.bf16.mxu0 0
  %756 = vmatmul.mubr.bf16.gmra.mxu0 %v664
  %v757 = vpop.f32.mrf.mxu0
  %v758 = vadd.f32 0.0, %v757
  %v759 = vpop.f32.mrf.mxu0
  %v760 = vpop.f32.mrf.mxu0
  %v761 = vadd.f32 0.0, %v760
  %v762 = vpop.f32.mrf.mxu0
  %763 = vdwg.mxu0
  %v764 = vadd.f32 %v622, %v750
  %v765 = vadd.f32 %v623, %v753
  %v766 = vadd.f32 %v624, %v758
  %v767 = vadd.f32 %v625, %v761
  %v768 = vld [vmem:[%s2] sm:$0x1]
  %v769 = vlaneseq
  %v770 = vshrl.u32 %v769, 7
  %v771 = vsub.s32 0, %v770
  %v772 = vrot.slane %v768, %v771
  %v773 = vmul.f32 %v764, %v772
  %v774 = vmul.f32 %v765, %v772
  %v775 = vmul.f32 %v766, %v772
  %v776 = vmul.f32 %v767, %v772
  %v777 = vld [vmem:[%s2 + $0x1] sm:$0x1]
  %v778 = vlaneseq
  %v779 = vshrl.u32 %v778, 7
  %v780 = vsub.s32 0, %v779
  %v781 = vrot.slane %v777, %v780
  %v782 = vadd.f32 %v773, %v781
  %v783 = vadd.f32 %v774, %v781
  %v784 = vadd.f32 %v775, %v781
  %v785 = vadd.f32 %v776, %v781
  %vm786 = vcmp.ge.f32.partialorder %v782, 0.0
  %vm787 = vcmp.ge.f32.partialorder %v783, 0.0
  %vm788 = vcmp.ge.f32.partialorder %v784, 0.0
  %vm789 = vcmp.ge.f32.partialorder %v785, 0.0
  %v790 = vld [vmem:[%s2 + $0x2] sm:$0x1]
  %v791 = vlaneseq
  %v792 = vshrl.u32 %v791, 7
  %v793 = vsub.s32 0, %v792
  %v794 = vrot.slane %v790, %v793
  %v795 = vmul.f32 %v782, %v794
  %v796 = vmul.f32 %v783, %v794
  %v797 = vmul.f32 %v784, %v794
  %v798 = vmul.f32 %v785, %v794
  %v799 = vsel %vm786, %v782, %v795
  %v800 = vsel %vm787, %v783, %v796
  %v801 = vsel %vm788, %v784, %v797
  %v802 = vsel %vm789, %v785, %v798
  %v803 = vld [vmem:[%s3] sm:$0xf]
  %v804 = vld [vmem:[%s3 + $0x4] sm:$0xf]
  %v805 = vld [vmem:[%s3 + $0x8] sm:$0xf]
  %v806 = vld [vmem:[%s3 + $0xc] sm:$0xf]
  %v807 = vunpack.c.l.bf16 %v803
  %v808 = vunpack.c.l.bf16 %v804
  %v809 = vunpack.c.l.bf16 %v805
  %v810 = vunpack.c.l.bf16 %v806
  %v811 = vadd.f32 %v799, %v807
  %v812 = vadd.f32 %v800, %v808
  %v813 = vadd.f32 %v801, %v809
  %v814 = vadd.f32 %v802, %v810
  %vm815 = vcmp.ge.f32.partialorder %v811, 0.0
  %vm816 = vcmp.ge.f32.partialorder %v812, 0.0
  %vm817 = vcmp.ge.f32.partialorder %v813, 0.0
  %vm818 = vcmp.ge.f32.partialorder %v814, 0.0
  %v819 = vld [vmem:[%s4 + $0x1] sm:$0x1]
  %v820 = vlaneseq
  %v821 = vshrl.u32 %v820, 7
  %v822 = vsub.s32 0, %v821
  %v823 = vrot.slane %v819, %v822
  %v824 = vmul.f32 %v811, %v823
  %v825 = vmul.f32 %v812, %v823
  %v826 = vmul.f32 %v813, %v823
  %v827 = vmul.f32 %v814, %v823
  %v828 = vsel %vm815, %v811, %v824
  %v829 = vsel %vm816, %v812, %v825
  %v830 = vsel %vm817, %v813, %v826
  %v831 = vsel %vm818, %v814, %v827
  %v832 = vpack.c.bf16 %v829, %v828
  %v833 = vpack.c.bf16 %v831, %v830
  %v836 = vunpack.c.l.b16 %v832
  %v837 = vunpack.c.h.b16 %v832
  %v838 = vunpack.c.l.b16 %v833
  %v839 = vunpack.c.h.b16 %v833
  %v840 = vpack.c.b16 %v836, %v836
  %v841 = vpack.c.b16 %v837, %v837
  %v842 = vpack.c.b16 %v838, %v838
  %v843 = vpack.c.b16 %v839, %v839
  %848 = vst [vmem:[%s5] sm:$0xf] %v840
  %849 = vst [vmem:[%s5 + $0x4] sm:$0xf] %v841
  %850 = vst [vmem:[%s5 + $0x8] sm:$0xf] %v842
  %851 = vst [vmem:[%s5 + $0xc] sm:$0xf] %v843
  // Predicated region
  $region22: #{dense_tcn_forward.8} parent=0 // pred_check
    _
  $region23: #{dense_tcn_forward.8} parent=0 // pred_check_branch
    %853 = sbr.rel (0) target = $region25
  $region24: #{dense_tcn_forward.8} parent=0 // pred_region
    _
  $region25: #{dense_tcn_forward.8} parent=0 // pred_fallthru
    _
  // Predicated region
  $region26: #{dense_tcn_forward.8} parent=0 // pred_check
    _
  $region27: #{dense_tcn_forward.8} parent=0 // pred_check_branch
    %855 = sbr.rel (0) target = $region29
  $region28: #{dense_tcn_forward.8} parent=0 // pred_region
    _
  $region29: #{dense_tcn_forward.8} parent=0 // pred_fallthru
    _

// kernel: dense_tcn_forward.9
$region0: #{dense_tcn_forward.9}
  #allocation0 [shape = 'u32[]', space=smem, size = 0x4, offset = 0x4, fixed_abs, tag = 'smem constant byte address 0x4 - core index']
  #allocation1 [shape = 'u32[144,128]{1,0:T(1,128)}', space=vmem, size = 0x12000, scoped, tag = 'internal scratch']
  %s0 = inlined_call_operand.vmem [shape: bf16[2,24,256], index: 0, kind: input, shape index: {}]
  %s1 = inlined_call_operand.vmem [shape: bf16[1280,128], index: 1, kind: input, shape index: {}]
  %s2 = inlined_call_operand.vmem [shape: f32[3,128], index: 2, kind: input, shape index: {}]
  %s3 = inlined_call_operand.vmem [shape: bf16[2,16,128], index: 3, kind: output, shape index: {}]
  %s4 = sld [smem:[#allocation0]]
  $region22: #{dense_tcn_forward.9} parent=0
    _
  %s6 = ssub.s32 1, %s4
  %s7 = scalar_select 0, %s6, %s4
  // Predicated region
  $region2: #{dense_tcn_forward.9} parent=0 // pred_check
    _
  $region3: #{dense_tcn_forward.9} parent=0 // pred_check_branch
    %9 = sbr.rel (0) target = $region5
  $region4: #{dense_tcn_forward.9} parent=0 // pred_region
    _
  $region5: #{dense_tcn_forward.9} parent=0 // pred_fallthru
    _
  // Predicated region
  $region6: #{dense_tcn_forward.9} parent=0 // pred_check
    _
  $region7: #{dense_tcn_forward.9} parent=0 // pred_check_branch
    %11 = sbr.rel (0) target = $region9
  $region8: #{dense_tcn_forward.9} parent=0 // pred_region
    _
  $region9: #{dense_tcn_forward.9} parent=0 // pred_fallthru
    _
  // Predicated region
  $region10: #{dense_tcn_forward.9} parent=0 // pred_check
    _
  $region11: #{dense_tcn_forward.9} parent=0 // pred_check_branch
    %13 = sbr.rel (0) target = $region13
  $region12: #{dense_tcn_forward.9} parent=0 // pred_region
    _
  $region13: #{dense_tcn_forward.9} parent=0 // pred_fallthru
    _
  %v15 = vld [vmem:[%s0] sm:$0xff]
  %v16 = vld [vmem:[%s0 + $0x8] sm:$0xff]
  %v17 = vld [vmem:[%s0 + $0x10] sm:$0xff]
  %v18 = vld [vmem:[%s0 + $0x18] sm:$0xff]
  %v19 = vld [vmem:[%s0 + $0x20] sm:$0xff]
  %v20 = vld [vmem:[%s0 + $0x28] sm:$0xff]
  %v21 = vld [vmem:[%s1] sm:$0xf]
  %v22 = vld [vmem:[%s1 + $0x4] sm:$0xf]
  %v23 = vld [vmem:[%s1 + $0x8] sm:$0xf]
  %v24 = vld [vmem:[%s1 + $0xc] sm:$0xf]
  %v25 = vld [vmem:[%s1 + $0x10] sm:$0xf]
  %v26 = vld [vmem:[%s1 + $0x14] sm:$0xf]
  %v27 = vld [vmem:[%s1 + $0x18] sm:$0xf]
  %v28 = vld [vmem:[%s1 + $0x1c] sm:$0xf]
  %v29 = vld [vmem:[%s1 + $0x20] sm:$0xf]
  %v30 = vld [vmem:[%s1 + $0x24] sm:$0xf]
  %v31 = vld [vmem:[%s1 + $0x28] sm:$0xf]
  %v32 = vld [vmem:[%s1 + $0x2c] sm:$0xf]
  %v33 = vld [vmem:[%s1 + $0x30] sm:$0xf]
  %v34 = vld [vmem:[%s1 + $0x34] sm:$0xf]
  %v35 = vld [vmem:[%s1 + $0x38] sm:$0xf]
  %v36 = vld [vmem:[%s1 + $0x3c] sm:$0xf]
  %v37 = vld [vmem:[%s1 + $0x40] sm:$0xf]
  %v38 = vld [vmem:[%s1 + $0x44] sm:$0xf]
  %v39 = vld [vmem:[%s1 + $0x48] sm:$0xf]
  %v40 = vld [vmem:[%s1 + $0x4c] sm:$0xf]
  %v41 = vld [vmem:[%s1 + $0x50] sm:$0xf]
  %v42 = vld [vmem:[%s1 + $0x54] sm:$0xf]
  %v43 = vld [vmem:[%s1 + $0x58] sm:$0xf]
  %v44 = vld [vmem:[%s1 + $0x5c] sm:$0xf]
  %v45 = vld [vmem:[%s1 + $0x60] sm:$0xf]
  %v46 = vld [vmem:[%s1 + $0x64] sm:$0xf]
  %v47 = vld [vmem:[%s1 + $0x68] sm:$0xf]
  %v48 = vld [vmem:[%s1 + $0x6c] sm:$0xf]
  %v49 = vld [vmem:[%s1 + $0x70] sm:$0xf]
  %v50 = vld [vmem:[%s1 + $0x74] sm:$0xf]
  %v51 = vld [vmem:[%s1 + $0x78] sm:$0xf]
  %v52 = vld [vmem:[%s1 + $0x7c] sm:$0xf]
  %vm59 = vcmask 1042432
  %vm60 = vcmask 1046532
  %vm61 = vmor %vm59, %vm60
  %v62 = vrot.slane %v15, 5
  %v63 = vrot.slane %v62, 4
  %v64 = vrot.slane %v16, 5
  %v65 = vsel %vm61, %v63, %v64
  %v66 = vrot.slane %v64, 4
  %v67 = vrot.slane %v17, 5
  %v68 = vsel %vm61, %v66, %v67
  %v69 = vrot.slane %v18, 5
  %v70 = vrot.slane %v69, 4
  %v71 = vrot.slane %v19, 5
  %v72 = vsel %vm61, %v70, %v71
  %v73 = vrot.slane %v71, 4
  %v74 = vrot.slane %v20, 5
  %v75 = vsel %vm61, %v73, %v74
  %v76 = vld [vmem:[%s1 + $0x80] sm:$0xf]
  %v77 = vld [vmem:[%s1 + $0x84] sm:$0xf]
  %v78 = vld [vmem:[%s1 + $0x88] sm:$0xf]
  %v79 = vld [vmem:[%s1 + $0x8c] sm:$0xf]
  %v80 = vld [vmem:[%s1 + $0x90] sm:$0xf]
  %v81 = vld [vmem:[%s1 + $0x94] sm:$0xf]
  %v82 = vld [vmem:[%s1 + $0x98] sm:$0xf]
  %v83 = vld [vmem:[%s1 + $0x9c] sm:$0xf]
  %v84 = vld [vmem:[%s1 + $0xa0] sm:$0xf]
  %v85 = vld [vmem:[%s1 + $0xa4] sm:$0xf]
  %v86 = vld [vmem:[%s1 + $0xa8] sm:$0xf]
  %v87 = vld [vmem:[%s1 + $0xac] sm:$0xf]
  %v88 = vld [vmem:[%s1 + $0xb0] sm:$0xf]
  %v89 = vld [vmem:[%s1 + $0xb4] sm:$0xf]
  %v90 = vld [vmem:[%s1 + $0xb8] sm:$0xf]
  %v91 = vld [vmem:[%s1 + $0xbc] sm:$0xf]
  %v92 = vld [vmem:[%s1 + $0xc0] sm:$0xf]
  %v93 = vld [vmem:[%s1 + $0xc4] sm:$0xf]
  %v94 = vld [vmem:[%s1 + $0xc8] sm:$0xf]
  %v95 = vld [vmem:[%s1 + $0xcc] sm:$0xf]
  %v96 = vld [vmem:[%s1 + $0xd0] sm:$0xf]
  %v97 = vld [vmem:[%s1 + $0xd4] sm:$0xf]
  %v98 = vld [vmem:[%s1 + $0xd8] sm:$0xf]
  %v99 = vld [vmem:[%s1 + $0xdc] sm:$0xf]
  %v100 = vld [vmem:[%s1 + $0xe0] sm:$0xf]
  %v101 = vld [vmem:[%s1 + $0xe4] sm:$0xf]
  %v102 = vld [vmem:[%s1 + $0xe8] sm:$0xf]
  %v103 = vld [vmem:[%s1 + $0xec] sm:$0xf]
  %v104 = vld [vmem:[%s1 + $0xf0] sm:$0xf]
  %v105 = vld [vmem:[%s1 + $0xf4] sm:$0xf]
  %v106 = vld [vmem:[%s1 + $0xf8] sm:$0xf]
  %v107 = vld [vmem:[%s1 + $0xfc] sm:$0xf]
  %v108 = vunpack.c.l.b16 %v65
  %v109 = vunpack.c.h.b16 %v65
  %v110 = vunpack.c.l.b16 %v68
  %v111 = vunpack.c.h.b16 %v68
  %v112 = vunpack.c.l.b16 %v72
  %v113 = vunpack.c.h.b16 %v72
  %v114 = vunpack.c.l.b16 %v75
  %v115 = vunpack.c.h.b16 %v75
  %v116 = vpack.c.b16 %v110, %v108
  %v117 = vpack.c.b16 %v111, %v109
  %v118 = vpack.c.b16 %v114, %v112
  %v119 = vpack.c.b16 %v115, %v113
  %v156 = vunpack.c.l.b16 %v76
  %v157 = vunpack.c.l.b16 %v77
  %v158 = vunpack.c.l.b16 %v78
  %v159 = vunpack.c.l.b16 %v79
  %v160 = vunpack.c.l.b16 %v80
  %v161 = vunpack.c.l.b16 %v81
  %v162 = vunpack.c.l.b16 %v82
  %v163 = vunpack.c.l.b16 %v83
  %v164 = vunpack.c.l.b16 %v84
  %v165 = vunpack.c.l.b16 %v85
  %v166 = vunpack.c.l.b16 %v86
  %v167 = vunpack.c.l.b16 %v87
  %v168 = vunpack.c.l.b16 %v88
  %v169 = vunpack.c.l.b16 %v89
  %v170 = vunpack.c.l.b16 %v90
  %v171 = vunpack.c.l.b16 %v91
  %v172 = vunpack.c.l.b16 %v92
  %v173 = vunpack.c.l.b16 %v93
  %v174 = vunpack.c.l.b16 %v94
  %v175 = vunpack.c.l.b16 %v95
  %v176 = vunpack.c.l.b16 %v96
  %v177 = vunpack.c.l.b16 %v97
  %v178 = vunpack.c.l.b16 %v98
  %v179 = vunpack.c.l.b16 %v99
  %v180 = vunpack.c.l.b16 %v100
  %v181 = vunpack.c.l.b16 %v101
  %v182 = vunpack.c.l.b16 %v102
  %v183 = vunpack.c.l.b16 %v103
  %v184 = vunpack.c.l.b16 %v104
  %v185 = vunpack.c.l.b16 %v105
  %v186 = vunpack.c.l.b16 %v106
  %v187 = vunpack.c.l.b16 %v107
  %v188 = vpack.c.b16 %v157, %v156
  %v189 = vpack.c.b16 %v159, %v158
  %v190 = vpack.c.b16 %v161, %v160
  %v191 = vpack.c.b16 %v163, %v162
  %v192 = vpack.c.b16 %v165, %v164
  %v193 = vpack.c.b16 %v167, %v166
  %v194 = vpack.c.b16 %v169, %v168
  %v195 = vpack.c.b16 %v171, %v170
  %v196 = vpack.c.b16 %v173, %v172
  %v197 = vpack.c.b16 %v175, %v174
  %v198 = vpack.c.b16 %v177, %v176
  %v199 = vpack.c.b16 %v179, %v178
  %v200 = vpack.c.b16 %v181, %v180
  %v201 = vpack.c.b16 %v183, %v182
  %v202 = vpack.c.b16 %v185, %v184
  %v203 = vpack.c.b16 %v187, %v186
  %220 = vmatprep.subr.bf16.mxu0 0
  %221 = vmatpush1.bf16.msra.mxu0 %v195
  %222 = vmatprep.subr.bf16.mxu0 0
  %223 = vmatpush1.bf16.msra.mxu0 %v194
  %224 = vmatprep.subr.bf16.mxu0 0
  %225 = vmatpush1.bf16.msra.mxu0 %v193
  %226 = vmatprep.subr.bf16.mxu0 0
  %227 = vmatpush1.bf16.msra.mxu0 %v192
  %228 = vmatprep.subr.bf16.mxu0 0
  %229 = vmatpush1.bf16.msra.mxu0 %v191
  %230 = vmatprep.subr.bf16.mxu0 0
  %231 = vmatpush1.bf16.msra.mxu0 %v190
  %232 = vmatprep.subr.bf16.mxu0 0
  %233 = vmatpush1.bf16.msra.mxu0 %v189
  %234 = vmatprep.subr.bf16.mxu0 0
  %235 = vmatpush1.bf16.msra.mxu0 %v188
  %236 = vmatprep.subr.bf16.mxu0 0
  %237 = vmatpush2.bf16.msra.mxu0 %v203
  %238 = vmatprep.subr.bf16.mxu0 0
  %239 = vmatpush2.bf16.msra.mxu0 %v202
  %240 = vmatprep.subr.bf16.mxu0 0
  %241 = vmatpush2.bf16.msra.mxu0 %v201
  %242 = vmatprep.subr.bf16.mxu0 0
  %243 = vmatpush2.bf16.msra.mxu0 %v200
  %244 = vmatprep.subr.bf16.mxu0 0
  %245 = vmatpush2.bf16.msra.mxu0 %v199
  %246 = vmatprep.subr.bf16.mxu0 0
  %247 = vmatpush2.bf16.msra.mxu0 %v198
  %248 = vmatprep.subr.bf16.mxu0 0
  %249 = vmatpush2.bf16.msra.mxu0 %v197
  %250 = vmatprep.subr.bf16.mxu0 0
  %251 = vmatpush2.bf16.msra.mxu0 %v196
  %252 = vmatprep.mubr.bf16.mxu0 %v117
  %253 = vmatmul.mubr.bf16.gmra.mxu0 %v116
  %v254 = vpop.f32.mrf.mxu0
  %v255 = vadd.f32 0.0, %v254
  %v256 = vpop.f32.mrf.mxu0
  %v257 = vpop.f32.mrf.mxu0
  %v258 = vadd.f32 0.0, %v257
  %v259 = vpop.f32.mrf.mxu0
  %260 = vmatprep.mubr.bf16.mxu0 %v119
  %261 = vmatmul.mubr.bf16.gmra.mxu0 %v118
  %v262 = vpop.f32.mrf.mxu0
  %v263 = vadd.f32 0.0, %v262
  %v264 = vpop.f32.mrf.mxu0
  %v265 = vpop.f32.mrf.mxu0
  %v266 = vadd.f32 0.0, %v265
  %v267 = vpop.f32.mrf.mxu0
  %268 = vdwg.mxu0
  %v269 = vunpack.c.l.b16 %v15
  %v270 = vunpack.c.h.b16 %v15
  %v271 = vunpack.c.l.b16 %v16
  %v272 = vunpack.c.h.b16 %v16
  %v273 = vunpack.c.l.b16 %v18
  %v274 = vunpack.c.h.b16 %v18
  %v275 = vunpack.c.l.b16 %v19
  %v276 = vunpack.c.h.b16 %v19
  %v277 = vpack.c.b16 %v271, %v269
  %v278 = vpack.c.b16 %v272, %v270
  %v279 = vpack.c.b16 %v275, %v273
  %v280 = vpack.c.b16 %v276, %v274
  %v317 = vunpack.c.l.b16 %v21
  %v318 = vunpack.c.l.b16 %v22
  %v319 = vunpack.c.l.b16 %v23
  %v320 = vunpack.c.l.b16 %v24
  %v321 = vunpack.c.l.b16 %v25
  %v322 = vunpack.c.l.b16 %v26
  %v323 = vunpack.c.l.b16 %v27
  %v324 = vunpack.c.l.b16 %v28
  %v325 = vunpack.c.l.b16 %v29
  %v326 = vunpack.c.l.b16 %v30
  %v327 = vunpack.c.l.b16 %v31
  %v328 = vunpack.c.l.b16 %v32
  %v329 = vunpack.c.l.b16 %v33
  %v330 = vunpack.c.l.b16 %v34
  %v331 = vunpack.c.l.b16 %v35
  %v332 = vunpack.c.l.b16 %v36
  %v333 = vunpack.c.l.b16 %v37
  %v334 = vunpack.c.l.b16 %v38
  %v335 = vunpack.c.l.b16 %v39
  %v336 = vunpack.c.l.b16 %v40
  %v337 = vunpack.c.l.b16 %v41
  %v338 = vunpack.c.l.b16 %v42
  %v339 = vunpack.c.l.b16 %v43
  %v340 = vunpack.c.l.b16 %v44
  %v341 = vunpack.c.l.b16 %v45
  %v342 = vunpack.c.l.b16 %v46
  %v343 = vunpack.c.l.b16 %v47
  %v344 = vunpack.c.l.b16 %v48
  %v345 = vunpack.c.l.b16 %v49
  %v346 = vunpack.c.l.b16 %v50
  %v347 = vunpack.c.l.b16 %v51
  %v348 = vunpack.c.l.b16 %v52
  %v349 = vpack.c.b16 %v318, %v317
  %v350 = vpack.c.b16 %v320, %v319
  %v351 = vpack.c.b16 %v322, %v321
  %v352 = vpack.c.b16 %v324, %v323
  %v353 = vpack.c.b16 %v326, %v325
  %v354 = vpack.c.b16 %v328, %v327
  %v355 = vpack.c.b16 %v330, %v329
  %v356 = vpack.c.b16 %v332, %v331
  %v357 = vpack.c.b16 %v334, %v333
  %v358 = vpack.c.b16 %v336, %v335
  %v359 = vpack.c.b16 %v338, %v337
  %v360 = vpack.c.b16 %v340, %v339
  %v361 = vpack.c.b16 %v342, %v341
  %v362 = vpack.c.b16 %v344, %v343
  %v363 = vpack.c.b16 %v346, %v345
  %v364 = vpack.c.b16 %v348, %v347
  %381 = vmatprep.subr.bf16.mxu0 0
  %382 = vmatpush1.bf16.msra.mxu0 %v356
  %383 = vmatprep.subr.bf16.mxu0 0
  %384 = vmatpush1.bf16.msra.mxu0 %v355
  %385 = vmatprep.subr.bf16.mxu0 0
  %386 = vmatpush1.bf16.msra.mxu0 %v354
  %387 = vmatprep.subr.bf16.mxu0 0
  %388 = vmatpush1.bf16.msra.mxu0 %v353
  %389 = vmatprep.subr.bf16.mxu0 0
  %390 = vmatpush1.bf16.msra.mxu0 %v352
  %391 = vmatprep.subr.bf16.mxu0 0
  %392 = vmatpush1.bf16.msra.mxu0 %v351
  %393 = vmatprep.subr.bf16.mxu0 0
  %394 = vmatpush1.bf16.msra.mxu0 %v350
  %395 = vmatprep.subr.bf16.mxu0 0
  %396 = vmatpush1.bf16.msra.mxu0 %v349
  %397 = vmatprep.subr.bf16.mxu0 0
  %398 = vmatpush2.bf16.msra.mxu0 %v364
  %399 = vmatprep.subr.bf16.mxu0 0
  %400 = vmatpush2.bf16.msra.mxu0 %v363
  %401 = vmatprep.subr.bf16.mxu0 0
  %402 = vmatpush2.bf16.msra.mxu0 %v362
  %403 = vmatprep.subr.bf16.mxu0 0
  %404 = vmatpush2.bf16.msra.mxu0 %v361
  %405 = vmatprep.subr.bf16.mxu0 0
  %406 = vmatpush2.bf16.msra.mxu0 %v360
  %407 = vmatprep.subr.bf16.mxu0 0
  %408 = vmatpush2.bf16.msra.mxu0 %v359
  %409 = vmatprep.subr.bf16.mxu0 0
  %410 = vmatpush2.bf16.msra.mxu0 %v358
  %411 = vmatprep.subr.bf16.mxu0 0
  %412 = vmatpush2.bf16.msra.mxu0 %v357
  %413 = vmatprep.mubr.bf16.mxu0 %v278
  %414 = vmatmul.mubr.bf16.gmra.mxu0 %v277
  %v415 = vpop.f32.mrf.mxu0
  %v416 = vadd.f32 %v255, %v415
  %v417 = vpop.f32.mrf.mxu0
  %v418 = vpop.f32.mrf.mxu0
  %v419 = vadd.f32 %v258, %v418
  %v420 = vpop.f32.mrf.mxu0
  %421 = vmatprep.mubr.bf16.mxu0 %v280
  %422 = vmatmul.mubr.bf16.gmra.mxu0 %v279
  %v423 = vpop.f32.mrf.mxu0
  %v424 = vadd.f32 %v263, %v423
  %v425 = vpop.f32.mrf.mxu0
  %v426 = vpop.f32.mrf.mxu0
  %v427 = vadd.f32 %v266, %v426
  %v428 = vpop.f32.mrf.mxu0
  %429 = vdwg.mxu0
  %vm430 = vcmask 1041408
  %vm431 = vcmask 1045508
  %vm432 = vmor %vm430, %vm431
  %v433 = vrot.slane %v15, 6
  %v434 = vrot.slane %v433, 4
  %v435 = vrot.slane %v16, 6
  %v436 = vsel %vm432, %v434, %v435
  %v437 = vrot.slane %v435, 4
  %v438 = vrot.slane %v17, 6
  %v439 = vsel %vm432, %v437, %v438
  %v440 = vrot.slane %v18, 6
  %v441 = vrot.slane %v440, 4
  %v442 = vrot.slane %v19, 6
  %v443 = vsel %vm432, %v441, %v442
  %v444 = vrot.slane %v442, 4
  %v445 = vrot.slane %v20, 6
  %v446 = vsel %vm432, %v444, %v445
  %v447 = vld [vmem:[%s1 + $0x100] sm:$0xf]
  %v448 = vld [vmem:[%s1 + $0x104] sm:$0xf]
  %v449 = vld [vmem:[%s1 + $0x108] sm:$0xf]
  %v450 = vld [vmem:[%s1 + $0x10c] sm:$0xf]
  %v451 = vld [vmem:[%s1 + $0x110] sm:$0xf]
  %v452 = vld [vmem:[%s1 + $0x114] sm:$0xf]
  %v453 = vld [vmem:[%s1 + $0x118] sm:$0xf]
  %v454 = vld [vmem:[%s1 + $0x11c] sm:$0xf]
  %v455 = vld [vmem:[%s1 + $0x120] sm:$0xf]
  %v456 = vld [vmem:[%s1 + $0x124] sm:$0xf]
  %v457 = vld [vmem:[%s1 + $0x128] sm:$0xf]
  %v458 = vld [vmem:[%s1 + $0x12c] sm:$0xf]
  %v459 = vld [vmem:[%s1 + $0x130] sm:$0xf]
  %v460 = vld [vmem:[%s1 + $0x134] sm:$0xf]
  %v461 = vld [vmem:[%s1 + $0x138] sm:$0xf]
  %v462 = vld [vmem:[%s1 + $0x13c] sm:$0xf]
  %v463 = vld [vmem:[%s1 + $0x140] sm:$0xf]
  %v464 = vld [vmem:[%s1 + $0x144] sm:$0xf]
  %v465 = vld [vmem:[%s1 + $0x148] sm:$0xf]
  %v466 = vld [vmem:[%s1 + $0x14c] sm:$0xf]
  %v467 = vld [vmem:[%s1 + $0x150] sm:$0xf]
  %v468 = vld [vmem:[%s1 + $0x154] sm:$0xf]
  %v469 = vld [vmem:[%s1 + $0x158] sm:$0xf]
  %v470 = vld [vmem:[%s1 + $0x15c] sm:$0xf]
  %v471 = vld [vmem:[%s1 + $0x160] sm:$0xf]
  %v472 = vld [vmem:[%s1 + $0x164] sm:$0xf]
  %v473 = vld [vmem:[%s1 + $0x168] sm:$0xf]
  %v474 = vld [vmem:[%s1 + $0x16c] sm:$0xf]
  %v475 = vld [vmem:[%s1 + $0x170] sm:$0xf]
  %v476 = vld [vmem:[%s1 + $0x174] sm:$0xf]
  %v477 = vld [vmem:[%s1 + $0x178] sm:$0xf]
  %v478 = vld [vmem:[%s1 + $0x17c] sm:$0xf]
  %v479 = vunpack.c.l.b16 %v436
  %v480 = vunpack.c.h.b16 %v436
  %v481 = vunpack.c.l.b16 %v439
  %v482 = vunpack.c.h.b16 %v439
  %v483 = vunpack.c.l.b16 %v443
  %v484 = vunpack.c.h.b16 %v443
  %v485 = vunpack.c.l.b16 %v446
  %v486 = vunpack.c.h.b16 %v446
  %v487 = vpack.c.b16 %v481, %v479
  %v488 = vpack.c.b16 %v482, %v480
  %v489 = vpack.c.b16 %v485, %v483
  %v490 = vpack.c.b16 %v486, %v484
  %v527 = vunpack.c.l.b16 %v447
  %v528 = vunpack.c.l.b16 %v448
  %v529 = vunpack.c.l.b16 %v449
  %v530 = vunpack.c.l.b16 %v450
  %v531 = vunpack.c.l.b16 %v451
  %v532 = vunpack.c.l.b16 %v452
  %v533 = vunpack.c.l.b16 %v453
  %v534 = vunpack.c.l.b16 %v454
  %v535 = vunpack.c.l.b16 %v455
  %v536 = vunpack.c.l.b16 %v456
  %v537 = vunpack.c.l.b16 %v457
  %v538 = vunpack.c.l.b16 %v458
  %v539 = vunpack.c.l.b16 %v459
  %v540 = vunpack.c.l.b16 %v460
  %v541 = vunpack.c.l.b16 %v461
  %v542 = vunpack.c.l.b16 %v462
  %v543 = vunpack.c.l.b16 %v463
  %v544 = vunpack.c.l.b16 %v464
  %v545 = vunpack.c.l.b16 %v465
  %v546 = vunpack.c.l.b16 %v466
  %v547 = vunpack.c.l.b16 %v467
  %v548 = vunpack.c.l.b16 %v468
  %v549 = vunpack.c.l.b16 %v469
  %v550 = vunpack.c.l.b16 %v470
  %v551 = vunpack.c.l.b16 %v471
  %v552 = vunpack.c.l.b16 %v472
  %v553 = vunpack.c.l.b16 %v473
  %v554 = vunpack.c.l.b16 %v474
  %v555 = vunpack.c.l.b16 %v475
  %v556 = vunpack.c.l.b16 %v476
  %v557 = vunpack.c.l.b16 %v477
  %v558 = vunpack.c.l.b16 %v478
  %v559 = vpack.c.b16 %v528, %v527
  %v560 = vpack.c.b16 %v530, %v529
  %v561 = vpack.c.b16 %v532, %v531
  %v562 = vpack.c.b16 %v534, %v533
  %v563 = vpack.c.b16 %v536, %v535
  %v564 = vpack.c.b16 %v538, %v537
  %v565 = vpack.c.b16 %v540, %v539
  %v566 = vpack.c.b16 %v542, %v541
  %v567 = vpack.c.b16 %v544, %v543
  %v568 = vpack.c.b16 %v546, %v545
  %v569 = vpack.c.b16 %v548, %v547
  %v570 = vpack.c.b16 %v550, %v549
  %v571 = vpack.c.b16 %v552, %v551
  %v572 = vpack.c.b16 %v554, %v553
  %v573 = vpack.c.b16 %v556, %v555
  %v574 = vpack.c.b16 %v558, %v557
  %591 = vmatprep.subr.bf16.mxu0 0
  %592 = vmatpush1.bf16.msra.mxu0 %v566
  %593 = vmatprep.subr.bf16.mxu0 0
  %594 = vmatpush1.bf16.msra.mxu0 %v565
  %595 = vmatprep.subr.bf16.mxu0 0
  %596 = vmatpush1.bf16.msra.mxu0 %v564
  %597 = vmatprep.subr.bf16.mxu0 0
  %598 = vmatpush1.bf16.msra.mxu0 %v563
  %599 = vmatprep.subr.bf16.mxu0 0
  %600 = vmatpush1.bf16.msra.mxu0 %v562
  %601 = vmatprep.subr.bf16.mxu0 0
  %602 = vmatpush1.bf16.msra.mxu0 %v561
  %603 = vmatprep.subr.bf16.mxu0 0
  %604 = vmatpush1.bf16.msra.mxu0 %v560
  %605 = vmatprep.subr.bf16.mxu0 0
  %606 = vmatpush1.bf16.msra.mxu0 %v559
  %607 = vmatprep.subr.bf16.mxu0 0
  %608 = vmatpush2.bf16.msra.mxu0 %v574
  %609 = vmatprep.subr.bf16.mxu0 0
  %610 = vmatpush2.bf16.msra.mxu0 %v573
  %611 = vmatprep.subr.bf16.mxu0 0
  %612 = vmatpush2.bf16.msra.mxu0 %v572
  %613 = vmatprep.subr.bf16.mxu0 0
  %614 = vmatpush2.bf16.msra.mxu0 %v571
  %615 = vmatprep.subr.bf16.mxu0 0
  %616 = vmatpush2.bf16.msra.mxu0 %v570
  %617 = vmatprep.subr.bf16.mxu0 0
  %618 = vmatpush2.bf16.msra.mxu0 %v569
  %619 = vmatprep.subr.bf16.mxu0 0
  %620 = vmatpush2.bf16.msra.mxu0 %v568
  %621 = vmatprep.subr.bf16.mxu0 0
  %622 = vmatpush2.bf16.msra.mxu0 %v567
  %623 = vmatprep.mubr.bf16.mxu0 %v488
  %624 = vmatmul.mubr.bf16.gmra.mxu0 %v487
  %v625 = vpop.f32.mrf.mxu0
  %v626 = vadd.f32 0.0, %v625
  %v627 = vpop.f32.mrf.mxu0
  %v628 = vpop.f32.mrf.mxu0
  %v629 = vadd.f32 0.0, %v628
  %v630 = vpop.f32.mrf.mxu0
  %631 = vmatprep.mubr.bf16.mxu0 %v490
  %632 = vmatmul.mubr.bf16.gmra.mxu0 %v489
  %v633 = vpop.f32.mrf.mxu0
  %v634 = vadd.f32 0.0, %v633
  %v635 = vpop.f32.mrf.mxu0
  %v636 = vpop.f32.mrf.mxu0
  %v637 = vadd.f32 0.0, %v636
  %v638 = vpop.f32.mrf.mxu0
  %639 = vdwg.mxu0
  %v640 = vadd.f32 %v416, %v626
  %v641 = vadd.f32 %v419, %v629
  %v642 = vadd.f32 %v424, %v634
  %v643 = vadd.f32 %v427, %v637
  %vm644 = vcmask 1040384
  %vm645 = vcmask 1044484
  %vm646 = vmor %vm644, %vm645
  %v647 = vrot.slane %v15, 7
  %v648 = vrot.slane %v647, 4
  %v649 = vrot.slane %v16, 7
  %v650 = vsel %vm646, %v648, %v649
  %v651 = vrot.slane %v649, 4
  %v652 = vrot.slane %v17, 7
  %v653 = vsel %vm646, %v651, %v652
  %v654 = vrot.slane %v18, 7
  %v655 = vrot.slane %v654, 4
  %v656 = vrot.slane %v19, 7
  %v657 = vsel %vm646, %v655, %v656
  %v658 = vrot.slane %v656, 4
  %v659 = vrot.slane %v20, 7
  %v660 = vsel %vm646, %v658, %v659
  %v661 = vld [vmem:[%s1 + $0x180] sm:$0xf]
  %v662 = vld [vmem:[%s1 + $0x184] sm:$0xf]
  %v663 = vld [vmem:[%s1 + $0x188] sm:$0xf]
  %v664 = vld [vmem:[%s1 + $0x18c] sm:$0xf]
  %v665 = vld [vmem:[%s1 + $0x190] sm:$0xf]
  %v666 = vld [vmem:[%s1 + $0x194] sm:$0xf]
  %v667 = vld [vmem:[%s1 + $0x198] sm:$0xf]
  %v668 = vld [vmem:[%s1 + $0x19c] sm:$0xf]
  %v669 = vld [vmem:[%s1 + $0x1a0] sm:$0xf]
  %v670 = vld [vmem:[%s1 + $0x1a4] sm:$0xf]
  %v671 = vld [vmem:[%s1 + $0x1a8] sm:$0xf]
  %v672 = vld [vmem:[%s1 + $0x1ac] sm:$0xf]
  %v673 = vld [vmem:[%s1 + $0x1b0] sm:$0xf]
  %v674 = vld [vmem:[%s1 + $0x1b4] sm:$0xf]
  %v675 = vld [vmem:[%s1 + $0x1b8] sm:$0xf]
  %v676 = vld [vmem:[%s1 + $0x1bc] sm:$0xf]
  %v677 = vld [vmem:[%s1 + $0x1c0] sm:$0xf]
  %v678 = vld [vmem:[%s1 + $0x1c4] sm:$0xf]
  %v679 = vld [vmem:[%s1 + $0x1c8] sm:$0xf]
  %v680 = vld [vmem:[%s1 + $0x1cc] sm:$0xf]
  %v681 = vld [vmem:[%s1 + $0x1d0] sm:$0xf]
  %v682 = vld [vmem:[%s1 + $0x1d4] sm:$0xf]
  %v683 = vld [vmem:[%s1 + $0x1d8] sm:$0xf]
  %v684 = vld [vmem:[%s1 + $0x1dc] sm:$0xf]
  %v685 = vld [vmem:[%s1 + $0x1e0] sm:$0xf]
  %v686 = vld [vmem:[%s1 + $0x1e4] sm:$0xf]
  %v687 = vld [vmem:[%s1 + $0x1e8] sm:$0xf]
  %v688 = vld [vmem:[%s1 + $0x1ec] sm:$0xf]
  %v689 = vld [vmem:[%s1 + $0x1f0] sm:$0xf]
  %v690 = vld [vmem:[%s1 + $0x1f4] sm:$0xf]
  %v691 = vld [vmem:[%s1 + $0x1f8] sm:$0xf]
  %v692 = vld [vmem:[%s1 + $0x1fc] sm:$0xf]
  %v693 = vunpack.c.l.b16 %v650
  %v694 = vunpack.c.h.b16 %v650
  %v695 = vunpack.c.l.b16 %v653
  %v696 = vunpack.c.h.b16 %v653
  %v697 = vunpack.c.l.b16 %v657
  %v698 = vunpack.c.h.b16 %v657
  %v699 = vunpack.c.l.b16 %v660
  %v700 = vunpack.c.h.b16 %v660
  %v701 = vpack.c.b16 %v695, %v693
  %v702 = vpack.c.b16 %v696, %v694
  %v703 = vpack.c.b16 %v699, %v697
  %v704 = vpack.c.b16 %v700, %v698
  %v741 = vunpack.c.l.b16 %v661
  %v742 = vunpack.c.l.b16 %v662
  %v743 = vunpack.c.l.b16 %v663
  %v744 = vunpack.c.l.b16 %v664
  %v745 = vunpack.c.l.b16 %v665
  %v746 = vunpack.c.l.b16 %v666
  %v747 = vunpack.c.l.b16 %v667
  %v748 = vunpack.c.l.b16 %v668
  %v749 = vunpack.c.l.b16 %v669
  %v750 = vunpack.c.l.b16 %v670
  %v751 = vunpack.c.l.b16 %v671
  %v752 = vunpack.c.l.b16 %v672
  %v753 = vunpack.c.l.b16 %v673
  %v754 = vunpack.c.l.b16 %v674
  %v755 = vunpack.c.l.b16 %v675
  %v756 = vunpack.c.l.b16 %v676
  %v757 = vunpack.c.l.b16 %v677
  %v758 = vunpack.c.l.b16 %v678
  %v759 = vunpack.c.l.b16 %v679
  %v760 = vunpack.c.l.b16 %v680
  %v761 = vunpack.c.l.b16 %v681
  %v762 = vunpack.c.l.b16 %v682
  %v763 = vunpack.c.l.b16 %v683
  %v764 = vunpack.c.l.b16 %v684
  %v765 = vunpack.c.l.b16 %v685
  %v766 = vunpack.c.l.b16 %v686
  %v767 = vunpack.c.l.b16 %v687
  %v768 = vunpack.c.l.b16 %v688
  %v769 = vunpack.c.l.b16 %v689
  %v770 = vunpack.c.l.b16 %v690
  %v771 = vunpack.c.l.b16 %v691
  %v772 = vunpack.c.l.b16 %v692
  %v773 = vpack.c.b16 %v742, %v741
  %v774 = vpack.c.b16 %v744, %v743
  %v775 = vpack.c.b16 %v746, %v745
  %v776 = vpack.c.b16 %v748, %v747
  %v777 = vpack.c.b16 %v750, %v749
  %v778 = vpack.c.b16 %v752, %v751
  %v779 = vpack.c.b16 %v754, %v753
  %v780 = vpack.c.b16 %v756, %v755
  %v781 = vpack.c.b16 %v758, %v757
  %v782 = vpack.c.b16 %v760, %v759
  %v783 = vpack.c.b16 %v762, %v761
  %v784 = vpack.c.b16 %v764, %v763
  %v785 = vpack.c.b16 %v766, %v765
  %v786 = vpack.c.b16 %v768, %v767
  %v787 = vpack.c.b16 %v770, %v769
  %v788 = vpack.c.b16 %v772, %v771
  %805 = vmatprep.subr.bf16.mxu0 0
  %806 = vmatpush1.bf16.msra.mxu0 %v780
  %807 = vmatprep.subr.bf16.mxu0 0
  %808 = vmatpush1.bf16.msra.mxu0 %v779
  %809 = vmatprep.subr.bf16.mxu0 0
  %810 = vmatpush1.bf16.msra.mxu0 %v778
  %811 = vmatprep.subr.bf16.mxu0 0
  %812 = vmatpush1.bf16.msra.mxu0 %v777
  %813 = vmatprep.subr.bf16.mxu0 0
  %814 = vmatpush1.bf16.msra.mxu0 %v776
  %815 = vmatprep.subr.bf16.mxu0 0
  %816 = vmatpush1.bf16.msra.mxu0 %v775
  %817 = vmatprep.subr.bf16.mxu0 0
  %818 = vmatpush1.bf16.msra.mxu0 %v774
  %819 = vmatprep.subr.bf16.mxu0 0
  %820 = vmatpush1.bf16.msra.mxu0 %v773
  %821 = vmatprep.subr.bf16.mxu0 0
  %822 = vmatpush2.bf16.msra.mxu0 %v788
  %823 = vmatprep.subr.bf16.mxu0 0
  %824 = vmatpush2.bf16.msra.mxu0 %v787
  %825 = vmatprep.subr.bf16.mxu0 0
  %826 = vmatpush2.bf16.msra.mxu0 %v786
  %827 = vmatprep.subr.bf16.mxu0 0
  %828 = vmatpush2.bf16.msra.mxu0 %v785
  %829 = vmatprep.subr.bf16.mxu0 0
  %830 = vmatpush2.bf16.msra.mxu0 %v784
  %831 = vmatprep.subr.bf16.mxu0 0
  %832 = vmatpush2.bf16.msra.mxu0 %v783
  %833 = vmatprep.subr.bf16.mxu0 0
  %834 = vmatpush2.bf16.msra.mxu0 %v782
  %835 = vmatprep.subr.bf16.mxu0 0
  %836 = vmatpush2.bf16.msra.mxu0 %v781
  %837 = vmatprep.mubr.bf16.mxu0 %v702
  %838 = vmatmul.mubr.bf16.gmra.mxu0 %v701
  %v839 = vpop.f32.mrf.mxu0
  %v840 = vadd.f32 0.0, %v839
  %v841 = vpop.f32.mrf.mxu0
  %v842 = vpop.f32.mrf.mxu0
  %v843 = vadd.f32 0.0, %v842
  %v844 = vpop.f32.mrf.mxu0
  %845 = vmatprep.mubr.bf16.mxu0 %v704
  %846 = vmatmul.mubr.bf16.gmra.mxu0 %v703
  %v847 = vpop.f32.mrf.mxu0
  %v848 = vadd.f32 0.0, %v847
  %v849 = vpop.f32.mrf.mxu0
  %v850 = vpop.f32.mrf.mxu0
  %v851 = vadd.f32 0.0, %v850
  %v852 = vpop.f32.mrf.mxu0
  %853 = vdwg.mxu0
  %v854 = vadd.f32 %v640, %v840
  %v855 = vadd.f32 %v641, %v843
  %v856 = vadd.f32 %v642, %v848
  %v857 = vadd.f32 %v643, %v851
  %v858 = vld [vmem:[%s1 + $0x200] sm:$0xf]
  %v859 = vld [vmem:[%s1 + $0x204] sm:$0xf]
  %v860 = vld [vmem:[%s1 + $0x208] sm:$0xf]
  %v861 = vld [vmem:[%s1 + $0x20c] sm:$0xf]
  %v862 = vld [vmem:[%s1 + $0x210] sm:$0xf]
  %v863 = vld [vmem:[%s1 + $0x214] sm:$0xf]
  %v864 = vld [vmem:[%s1 + $0x218] sm:$0xf]
  %v865 = vld [vmem:[%s1 + $0x21c] sm:$0xf]
  %v866 = vld [vmem:[%s1 + $0x220] sm:$0xf]
  %v867 = vld [vmem:[%s1 + $0x224] sm:$0xf]
  %v868 = vld [vmem:[%s1 + $0x228] sm:$0xf]
  %v869 = vld [vmem:[%s1 + $0x22c] sm:$0xf]
  %v870 = vld [vmem:[%s1 + $0x230] sm:$0xf]
  %v871 = vld [vmem:[%s1 + $0x234] sm:$0xf]
  %v872 = vld [vmem:[%s1 + $0x238] sm:$0xf]
  %v873 = vld [vmem:[%s1 + $0x23c] sm:$0xf]
  %v874 = vld [vmem:[%s1 + $0x240] sm:$0xf]
  %v875 = vld [vmem:[%s1 + $0x244] sm:$0xf]
  %v876 = vld [vmem:[%s1 + $0x248] sm:$0xf]
  %v877 = vld [vmem:[%s1 + $0x24c] sm:$0xf]
  %v878 = vld [vmem:[%s1 + $0x250] sm:$0xf]
  %v879 = vld [vmem:[%s1 + $0x254] sm:$0xf]
  %v880 = vld [vmem:[%s1 + $0x258] sm:$0xf]
  %v881 = vld [vmem:[%s1 + $0x25c] sm:$0xf]
  %v882 = vld [vmem:[%s1 + $0x260] sm:$0xf]
  %v883 = vld [vmem:[%s1 + $0x264] sm:$0xf]
  %v884 = vld [vmem:[%s1 + $0x268] sm:$0xf]
  %v885 = vld [vmem:[%s1 + $0x26c] sm:$0xf]
  %v886 = vld [vmem:[%s1 + $0x270] sm:$0xf]
  %v887 = vld [vmem:[%s1 + $0x274] sm:$0xf]
  %v888 = vld [vmem:[%s1 + $0x278] sm:$0xf]
  %v889 = vld [vmem:[%s1 + $0x27c] sm:$0xf]
  %v890 = vunpack.c.l.b16 %v17
  %v891 = vunpack.c.h.b16 %v17
  %v892 = vunpack.c.l.b16 %v20
  %v893 = vunpack.c.h.b16 %v20
  %v894 = vpack.c.b16 %v890, %v271
  %v895 = vpack.c.b16 %v891, %v272
  %v896 = vpack.c.b16 %v892, %v275
  %v897 = vpack.c.b16 %v893, %v276
  %v934 = vunpack.c.l.b16 %v858
  %v935 = vunpack.c.l.b16 %v859
  %v936 = vunpack.c.l.b16 %v860
  %v937 = vunpack.c.l.b16 %v861
  %v938 = vunpack.c.l.b16 %v862
  %v939 = vunpack.c.l.b16 %v863
  %v940 = vunpack.c.l.b16 %v864
  %v941 = vunpack.c.l.b16 %v865
  %v942 = vunpack.c.l.b16 %v866
  %v943 = vunpack.c.l.b16 %v867
  %v944 = vunpack.c.l.b16 %v868
  %v945 = vunpack.c.l.b16 %v869
  %v946 = vunpack.c.l.b16 %v870
  %v947 = vunpack.c.l.b16 %v871
  %v948 = vunpack.c.l.b16 %v872
  %v949 = vunpack.c.l.b16 %v873
  %v950 = vunpack.c.l.b16 %v874
  %v951 = vunpack.c.l.b16 %v875
  %v952 = vunpack.c.l.b16 %v876
  %v953 = vunpack.c.l.b16 %v877
  %v954 = vunpack.c.l.b16 %v878
  %v955 = vunpack.c.l.b16 %v879
  %v956 = vunpack.c.l.b16 %v880
  %v957 = vunpack.c.l.b16 %v881
  %v958 = vunpack.c.l.b16 %v882
  %v959 = vunpack.c.l.b16 %v883
  %v960 = vunpack.c.l.b16 %v884
  %v961 = vunpack.c.l.b16 %v885
  %v962 = vunpack.c.l.b16 %v886
  %v963 = vunpack.c.l.b16 %v887
  %v964 = vunpack.c.l.b16 %v888
  %v965 = vunpack.c.l.b16 %v889
  %v966 = vpack.c.b16 %v935, %v934
  %v967 = vpack.c.b16 %v937, %v936
  %v968 = vpack.c.b16 %v939, %v938
  %v969 = vpack.c.b16 %v941, %v940
  %v970 = vpack.c.b16 %v943, %v942
  %v971 = vpack.c.b16 %v945, %v944
  %v972 = vpack.c.b16 %v947, %v946
  %v973 = vpack.c.b16 %v949, %v948
  %v974 = vpack.c.b16 %v951, %v950
  %v975 = vpack.c.b16 %v953, %v952
  %v976 = vpack.c.b16 %v955, %v954
  %v977 = vpack.c.b16 %v957, %v956
  %v978 = vpack.c.b16 %v959, %v958
  %v979 = vpack.c.b16 %v961, %v960
  %v980 = vpack.c.b16 %v963, %v962
  %v981 = vpack.c.b16 %v965, %v964
  %998 = vmatprep.subr.bf16.mxu0 0
  %999 = vmatpush1.bf16.msra.mxu0 %v973
  %1000 = vmatprep.subr.bf16.mxu0 0
  %1001 = vmatpush1.bf16.msra.mxu0 %v972
  %1002 = vmatprep.subr.bf16.mxu0 0
  %1003 = vmatpush1.bf16.msra.mxu0 %v971
  %1004 = vmatprep.subr.bf16.mxu0 0
  %1005 = vmatpush1.bf16.msra.mxu0 %v970
  %1006 = vmatprep.subr.bf16.mxu0 0
  %1007 = vmatpush1.bf16.msra.mxu0 %v969
  %1008 = vmatprep.subr.bf16.mxu0 0
  %1009 = vmatpush1.bf16.msra.mxu0 %v968
  %1010 = vmatprep.subr.bf16.mxu0 0
  %1011 = vmatpush1.bf16.msra.mxu0 %v967
  %1012 = vmatprep.subr.bf16.mxu0 0
  %1013 = vmatpush1.bf16.msra.mxu0 %v966
  %1014 = vmatprep.subr.bf16.mxu0 0
  %1015 = vmatpush2.bf16.msra.mxu0 %v981
  %1016 = vmatprep.subr.bf16.mxu0 0
  %1017 = vmatpush2.bf16.msra.mxu0 %v980
  %1018 = vmatprep.subr.bf16.mxu0 0
  %1019 = vmatpush2.bf16.msra.mxu0 %v979
  %1020 = vmatprep.subr.bf16.mxu0 0
  %1021 = vmatpush2.bf16.msra.mxu0 %v978
  %1022 = vmatprep.subr.bf16.mxu0 0
  %1023 = vmatpush2.bf16.msra.mxu0 %v977
  %1024 = vmatprep.subr.bf16.mxu0 0
  %1025 = vmatpush2.bf16.msra.mxu0 %v976
  %1026 = vmatprep.subr.bf16.mxu0 0
  %1027 = vmatpush2.bf16.msra.mxu0 %v975
  %1028 = vmatprep.subr.bf16.mxu0 0
  %1029 = vmatpush2.bf16.msra.mxu0 %v974
  %1030 = vmatprep.mubr.bf16.mxu0 %v895
  %1031 = vmatmul.mubr.bf16.gmra.mxu0 %v894
  %v1032 = vpop.f32.mrf.mxu0
  %v1033 = vadd.f32 0.0, %v1032
  %v1034 = vpop.f32.mrf.mxu0
  %v1035 = vpop.f32.mrf.mxu0
  %v1036 = vadd.f32 0.0, %v1035
  %v1037 = vpop.f32.mrf.mxu0
  %1038 = vmatprep.mubr.bf16.mxu0 %v897
  %1039 = vmatmul.mubr.bf16.gmra.mxu0 %v896
  %v1040 = vpop.f32.mrf.mxu0
  %v1041 = vadd.f32 0.0, %v1040
  %v1042 = vpop.f32.mrf.mxu0
  %v1043 = vpop.f32.mrf.mxu0
  %v1044 = vadd.f32 0.0, %v1043
  %v1045 = vpop.f32.mrf.mxu0
  %1046 = vdwg.mxu0
  %v1047 = vadd.f32 %v854, %v1033
  %v1048 = vadd.f32 %v855, %v1036
  %v1049 = vadd.f32 %v856, %v1041
  %v1050 = vadd.f32 %v857, %v1044
  %v1051 = vld [vmem:[%s2] sm:$0x1]
  %v1052 = vlaneseq
  %v1053 = vshrl.u32 %v1052, 7
  %v1054 = vsub.s32 0, %v1053
  %v1055 = vrot.slane %v1051, %v1054
  %v1056 = vmul.f32 %v1047, %v1055
  %v1057 = vmul.f32 %v1048, %v1055
  %v1058 = vmul.f32 %v1049, %v1055
  %v1059 = vmul.f32 %v1050, %v1055
  %v1060 = vld [vmem:[%s2 + $0x1] sm:$0x1]
  %v1061 = vlaneseq
  %v1062 = vshrl.u32 %v1061, 7
  %v1063 = vsub.s32 0, %v1062
  %v1064 = vrot.slane %v1060, %v1063
  %v1065 = vadd.f32 %v1056, %v1064
  %v1066 = vadd.f32 %v1057, %v1064
  %v1067 = vadd.f32 %v1058, %v1064
  %v1068 = vadd.f32 %v1059, %v1064
  %vm1069 = vcmp.ge.f32.partialorder %v1065, 0.0
  %vm1070 = vcmp.ge.f32.partialorder %v1066, 0.0
  %vm1071 = vcmp.ge.f32.partialorder %v1067, 0.0
  %vm1072 = vcmp.ge.f32.partialorder %v1068, 0.0
  %v1073 = vld [vmem:[%s2 + $0x2] sm:$0x1]
  %v1074 = vlaneseq
  %v1075 = vshrl.u32 %v1074, 7
  %v1076 = vsub.s32 0, %v1075
  %v1077 = vrot.slane %v1073, %v1076
  %v1078 = vmul.f32 %v1065, %v1077
  %v1079 = vmul.f32 %v1066, %v1077
  %v1080 = vmul.f32 %v1067, %v1077
  %v1081 = vmul.f32 %v1068, %v1077
  %v1082 = vsel %vm1069, %v1065, %v1078
  %v1083 = vsel %vm1070, %v1066, %v1079
  %v1084 = vsel %vm1071, %v1067, %v1080
  %v1085 = vsel %vm1072, %v1068, %v1081
  %v1086 = vpack.c.bf16 %v1083, %v1082
  %v1087 = vpack.c.bf16 %v1085, %v1084
  %v1090 = vunpack.c.l.b16 %v1086
  %v1091 = vunpack.c.h.b16 %v1086
  %v1092 = vunpack.c.l.b16 %v1087
  %v1093 = vunpack.c.h.b16 %v1087
  %v1094 = vpack.c.b16 %v1090, %v1090
  %v1095 = vpack.c.b16 %v1091, %v1091
  %v1096 = vpack.c.b16 %v1092, %v1092
  %v1097 = vpack.c.b16 %v1093, %v1093
  %1102 = vst [vmem:[%s3] sm:$0xf] %v1094
  %1103 = vst [vmem:[%s3 + $0x4] sm:$0xf] %v1095
  %1104 = vst [vmem:[%s3 + $0x8] sm:$0xf] %v1096
  %1105 = vst [vmem:[%s3 + $0xc] sm:$0xf] %v1097
  // Predicated region
  $region14: #{dense_tcn_forward.9} parent=0 // pred_check
    _
  $region15: #{dense_tcn_forward.9} parent=0 // pred_check_branch
    %1107 = sbr.rel (0) target = $region17
  $region16: #{dense_tcn_forward.9} parent=0 // pred_region
    _
  $region17: #{dense_tcn_forward.9} parent=0 // pred_fallthru
    _
  // Predicated region
  $region18: #{dense_tcn_forward.9} parent=0 // pred_check
    _
  $region19: #{dense_tcn_forward.9} parent=0 // pred_check_branch
    %1109 = sbr.rel (0) target = $region21
  $region20: #{dense_tcn_forward.9} parent=0 // pred_region
    _
  $region21: #{dense_tcn_forward.9} parent=0 // pred_fallthru
    _

// kernel: dense_tcn_forward.10
$region0: #{dense_tcn_forward.10}
  #allocation0 [shape = 'u32[]', space=smem, size = 0x4, offset = 0x4, fixed_abs, tag = 'smem constant byte address 0x4 - core index']
  #allocation1 [shape = 'u32[144,128]{1,0:T(1,128)}', space=vmem, size = 0x12000, scoped, tag = 'internal scratch']
  %s0 = inlined_call_operand.vmem [shape: bf16[2,24,128], index: 0, kind: input, shape index: {}]
  %s1 = inlined_call_operand.vmem [shape: bf16[640,128], index: 1, kind: input, shape index: {}]
  %s2 = inlined_call_operand.vmem [shape: f32[3,128], index: 2, kind: input, shape index: {}]
  %s3 = inlined_call_operand.vmem [shape: bf16[2,16,256], index: 3, kind: input, shape index: {}]
  %s4 = inlined_call_operand.vmem [shape: bf16[256,128], index: 4, kind: input, shape index: {}]
  %s5 = inlined_call_operand.vmem [shape: f32[2,128], index: 5, kind: input, shape index: {}]
  %s6 = inlined_call_operand.vmem [shape: bf16[2,16,128], index: 6, kind: output, shape index: {}]
  %s7 = sld [smem:[#allocation0]]
  $region34: #{dense_tcn_forward.10} parent=0
    _
  %s9 = ssub.s32 1, %s7
  %s10 = scalar_select 0, %s9, %s7
  // Predicated region
  $region2: #{dense_tcn_forward.10} parent=0 // pred_check
    _
  $region3: #{dense_tcn_forward.10} parent=0 // pred_check_branch
    %12 = sbr.rel (0) target = $region5
  $region4: #{dense_tcn_forward.10} parent=0 // pred_region
    _
  $region5: #{dense_tcn_forward.10} parent=0 // pred_fallthru
    _
  // Predicated region
  $region6: #{dense_tcn_forward.10} parent=0 // pred_check
    _
  $region7: #{dense_tcn_forward.10} parent=0 // pred_check_branch
    %14 = sbr.rel (0) target = $region9
  $region8: #{dense_tcn_forward.10} parent=0 // pred_region
    _
  $region9: #{dense_tcn_forward.10} parent=0 // pred_fallthru
    _
  // Predicated region
  $region10: #{dense_tcn_forward.10} parent=0 // pred_check
    _
  $region11: #{dense_tcn_forward.10} parent=0 // pred_check_branch
    %16 = sbr.rel (0) target = $region13
  $region12: #{dense_tcn_forward.10} parent=0 // pred_region
    _
  $region13: #{dense_tcn_forward.10} parent=0 // pred_fallthru
    _
  // Predicated region
  $region14: #{dense_tcn_forward.10} parent=0 // pred_check
    _
  $region15: #{dense_tcn_forward.10} parent=0 // pred_check_branch
    %18 = sbr.rel (0) target = $region17
  $region16: #{dense_tcn_forward.10} parent=0 // pred_region
    _
  $region17: #{dense_tcn_forward.10} parent=0 // pred_fallthru
    _
  // Predicated region
  $region18: #{dense_tcn_forward.10} parent=0 // pred_check
    _
  $region19: #{dense_tcn_forward.10} parent=0 // pred_check_branch
    %20 = sbr.rel (0) target = $region21
  $region20: #{dense_tcn_forward.10} parent=0 // pred_region
    _
  $region21: #{dense_tcn_forward.10} parent=0 // pred_fallthru
    _
  // Predicated region
  $region22: #{dense_tcn_forward.10} parent=0 // pred_check
    _
  $region23: #{dense_tcn_forward.10} parent=0 // pred_check_branch
    %22 = sbr.rel (0) target = $region25
  $region24: #{dense_tcn_forward.10} parent=0 // pred_region
    _
  $region25: #{dense_tcn_forward.10} parent=0 // pred_fallthru
    _
  %v24 = vld [vmem:[%s0] sm:$0xf]
  %v25 = vld [vmem:[%s0 + $0x4] sm:$0xf]
  %v26 = vld [vmem:[%s0 + $0x8] sm:$0xf]
  %v27 = vld [vmem:[%s0 + $0xc] sm:$0xf]
  %v28 = vld [vmem:[%s0 + $0x10] sm:$0xf]
  %v29 = vld [vmem:[%s0 + $0x14] sm:$0xf]
  %v30 = vld [vmem:[%s1] sm:$0xf]
  %v31 = vld [vmem:[%s1 + $0x4] sm:$0xf]
  %v32 = vld [vmem:[%s1 + $0x8] sm:$0xf]
  %v33 = vld [vmem:[%s1 + $0xc] sm:$0xf]
  %v34 = vld [vmem:[%s1 + $0x10] sm:$0xf]
  %v35 = vld [vmem:[%s1 + $0x14] sm:$0xf]
  %v36 = vld [vmem:[%s1 + $0x18] sm:$0xf]
  %v37 = vld [vmem:[%s1 + $0x1c] sm:$0xf]
  %v38 = vld [vmem:[%s1 + $0x20] sm:$0xf]
  %v39 = vld [vmem:[%s1 + $0x24] sm:$0xf]
  %v40 = vld [vmem:[%s1 + $0x28] sm:$0xf]
  %v41 = vld [vmem:[%s1 + $0x2c] sm:$0xf]
  %v42 = vld [vmem:[%s1 + $0x30] sm:$0xf]
  %v43 = vld [vmem:[%s1 + $0x34] sm:$0xf]
  %v44 = vld [vmem:[%s1 + $0x38] sm:$0xf]
  %v45 = vld [vmem:[%s1 + $0x3c] sm:$0xf]
  %vm52 = vcmask 1042432
  %vm53 = vcmask 1046532
  %vm54 = vmor %vm52, %vm53
  %v55 = vrot.slane %v24, 5
  %v56 = vrot.slane %v55, 4
  %v57 = vrot.slane %v25, 5
  %v58 = vsel %vm54, %v56, %v57
  %v59 = vrot.slane %v57, 4
  %v60 = vrot.slane %v26, 5
  %v61 = vsel %vm54, %v59, %v60
  %v62 = vrot.slane %v27, 5
  %v63 = vrot.slane %v62, 4
  %v64 = vrot.slane %v28, 5
  %v65 = vsel %vm54, %v63, %v64
  %v66 = vrot.slane %v64, 4
  %v67 = vrot.slane %v29, 5
  %v68 = vsel %vm54, %v66, %v67
  %v69 = vld [vmem:[%s1 + $0x40] sm:$0xf]
  %v70 = vld [vmem:[%s1 + $0x44] sm:$0xf]
  %v71 = vld [vmem:[%s1 + $0x48] sm:$0xf]
  %v72 = vld [vmem:[%s1 + $0x4c] sm:$0xf]
  %v73 = vld [vmem:[%s1 + $0x50] sm:$0xf]
  %v74 = vld [vmem:[%s1 + $0x54] sm:$0xf]
  %v75 = vld [vmem:[%s1 + $0x58] sm:$0xf]
  %v76 = vld [vmem:[%s1 + $0x5c] sm:$0xf]
  %v77 = vld [vmem:[%s1 + $0x60] sm:$0xf]
  %v78 = vld [vmem:[%s1 + $0x64] sm:$0xf]
  %v79 = vld [vmem:[%s1 + $0x68] sm:$0xf]
  %v80 = vld [vmem:[%s1 + $0x6c] sm:$0xf]
  %v81 = vld [vmem:[%s1 + $0x70] sm:$0xf]
  %v82 = vld [vmem:[%s1 + $0x74] sm:$0xf]
  %v83 = vld [vmem:[%s1 + $0x78] sm:$0xf]
  %v84 = vld [vmem:[%s1 + $0x7c] sm:$0xf]
  %v85 = vunpack.c.l.b16 %v58
  %v86 = vunpack.c.l.b16 %v61
  %v87 = vunpack.c.l.b16 %v65
  %v88 = vunpack.c.l.b16 %v68
  %v89 = vpack.c.b16 %v86, %v85
  %v90 = vpack.c.b16 %v88, %v87
  %v109 = vunpack.c.l.b16 %v69
  %v110 = vunpack.c.l.b16 %v70
  %v111 = vunpack.c.l.b16 %v71
  %v112 = vunpack.c.l.b16 %v72
  %v113 = vunpack.c.l.b16 %v73
  %v114 = vunpack.c.l.b16 %v74
  %v115 = vunpack.c.l.b16 %v75
  %v116 = vunpack.c.l.b16 %v76
  %v117 = vunpack.c.l.b16 %v77
  %v118 = vunpack.c.l.b16 %v78
  %v119 = vunpack.c.l.b16 %v79
  %v120 = vunpack.c.l.b16 %v80
  %v121 = vunpack.c.l.b16 %v81
  %v122 = vunpack.c.l.b16 %v82
  %v123 = vunpack.c.l.b16 %v83
  %v124 = vunpack.c.l.b16 %v84
  %v125 = vpack.c.b16 %v110, %v109
  %v126 = vpack.c.b16 %v112, %v111
  %v127 = vpack.c.b16 %v114, %v113
  %v128 = vpack.c.b16 %v116, %v115
  %v129 = vpack.c.b16 %v118, %v117
  %v130 = vpack.c.b16 %v120, %v119
  %v131 = vpack.c.b16 %v122, %v121
  %v132 = vpack.c.b16 %v124, %v123
  %141 = vmatprep.subr.bf16.mxu0 0
  %142 = vmatpush1.bf16.msra.mxu0 %v132
  %143 = vmatprep.subr.bf16.mxu0 0
  %144 = vmatpush1.bf16.msra.mxu0 %v131
  %145 = vmatprep.subr.bf16.mxu0 0
  %146 = vmatpush1.bf16.msra.mxu0 %v130
  %147 = vmatprep.subr.bf16.mxu0 0
  %148 = vmatpush1.bf16.msra.mxu0 %v129
  %149 = vmatprep.subr.bf16.mxu0 0
  %150 = vmatpush1.bf16.msra.mxu0 %v128
  %151 = vmatprep.subr.bf16.mxu0 0
  %152 = vmatpush1.bf16.msra.mxu0 %v127
  %153 = vmatprep.subr.bf16.mxu0 0
  %154 = vmatpush1.bf16.msra.mxu0 %v126
  %155 = vmatprep.subr.bf16.mxu0 0
  %156 = vmatpush1.bf16.msra.mxu0 %v125
  %157 = vmatprep.subr.bf16.mxu0 0
  %158 = vmatpush2.bf16.msra.mxu0 0
  %159 = vmatprep.subr.bf16.mxu0 0
  %160 = vmatpush2.bf16.msra.mxu0 0
  %161 = vmatprep.subr.bf16.mxu0 0
  %162 = vmatpush2.bf16.msra.mxu0 0
  %163 = vmatprep.subr.bf16.mxu0 0
  %164 = vmatpush2.bf16.msra.mxu0 0
  %165 = vmatprep.subr.bf16.mxu0 0
  %166 = vmatpush2.bf16.msra.mxu0 0
  %167 = vmatprep.subr.bf16.mxu0 0
  %168 = vmatpush2.bf16.msra.mxu0 0
  %169 = vmatprep.subr.bf16.mxu0 0
  %170 = vmatpush2.bf16.msra.mxu0 0
  %171 = vmatprep.subr.bf16.mxu0 0
  %172 = vmatpush2.bf16.msra.mxu0 0
  %173 = vmatprep.mubr.bf16.mxu0 0
  %174 = vmatmul.mubr.bf16.gmra.mxu0 %v89
  %v175 = vpop.f32.mrf.mxu0
  %v176 = vadd.f32 0.0, %v175
  %v177 = vpop.f32.mrf.mxu0
  %v178 = vpop.f32.mrf.mxu0
  %v179 = vadd.f32 0.0, %v178
  %v180 = vpop.f32.mrf.mxu0
  %181 = vmatprep.mubr.bf16.mxu0 0
  %182 = vmatmul.mubr.bf16.gmra.mxu0 %v90
  %v183 = vpop.f32.mrf.mxu0
  %v184 = vadd.f32 0.0, %v183
  %v185 = vpop.f32.mrf.mxu0
  %v186 = vpop.f32.mrf.mxu0
  %v187 = vadd.f32 0.0, %v186
  %v188 = vpop.f32.mrf.mxu0
  %189 = vdwg.mxu0
  %v190 = vunpack.c.l.b16 %v24
  %v191 = vunpack.c.l.b16 %v25
  %v192 = vunpack.c.l.b16 %v27
  %v193 = vunpack.c.l.b16 %v28
  %v194 = vpack.c.b16 %v191, %v190
  %v195 = vpack.c.b16 %v193, %v192
  %v214 = vunpack.c.l.b16 %v30
  %v215 = vunpack.c.l.b16 %v31
  %v216 = vunpack.c.l.b16 %v32
  %v217 = vunpack.c.l.b16 %v33
  %v218 = vunpack.c.l.b16 %v34
  %v219 = vunpack.c.l.b16 %v35
  %v220 = vunpack.c.l.b16 %v36
  %v221 = vunpack.c.l.b16 %v37
  %v222 = vunpack.c.l.b16 %v38
  %v223 = vunpack.c.l.b16 %v39
  %v224 = vunpack.c.l.b16 %v40
  %v225 = vunpack.c.l.b16 %v41
  %v226 = vunpack.c.l.b16 %v42
  %v227 = vunpack.c.l.b16 %v43
  %v228 = vunpack.c.l.b16 %v44
  %v229 = vunpack.c.l.b16 %v45
  %v230 = vpack.c.b16 %v215, %v214
  %v231 = vpack.c.b16 %v217, %v216
  %v232 = vpack.c.b16 %v219, %v218
  %v233 = vpack.c.b16 %v221, %v220
  %v234 = vpack.c.b16 %v223, %v222
  %v235 = vpack.c.b16 %v225, %v224
  %v236 = vpack.c.b16 %v227, %v226
  %v237 = vpack.c.b16 %v229, %v228
  %246 = vmatprep.subr.bf16.mxu0 0
  %247 = vmatpush1.bf16.msra.mxu0 %v237
  %248 = vmatprep.subr.bf16.mxu0 0
  %249 = vmatpush1.bf16.msra.mxu0 %v236
  %250 = vmatprep.subr.bf16.mxu0 0
  %251 = vmatpush1.bf16.msra.mxu0 %v235
  %252 = vmatprep.subr.bf16.mxu0 0
  %253 = vmatpush1.bf16.msra.mxu0 %v234
  %254 = vmatprep.subr.bf16.mxu0 0
  %255 = vmatpush1.bf16.msra.mxu0 %v233
  %256 = vmatprep.subr.bf16.mxu0 0
  %257 = vmatpush1.bf16.msra.mxu0 %v232
  %258 = vmatprep.subr.bf16.mxu0 0
  %259 = vmatpush1.bf16.msra.mxu0 %v231
  %260 = vmatprep.subr.bf16.mxu0 0
  %261 = vmatpush1.bf16.msra.mxu0 %v230
  %262 = vmatprep.subr.bf16.mxu0 0
  %263 = vmatpush2.bf16.msra.mxu0 0
  %264 = vmatprep.subr.bf16.mxu0 0
  %265 = vmatpush2.bf16.msra.mxu0 0
  %266 = vmatprep.subr.bf16.mxu0 0
  %267 = vmatpush2.bf16.msra.mxu0 0
  %268 = vmatprep.subr.bf16.mxu0 0
  %269 = vmatpush2.bf16.msra.mxu0 0
  %270 = vmatprep.subr.bf16.mxu0 0
  %271 = vmatpush2.bf16.msra.mxu0 0
  %272 = vmatprep.subr.bf16.mxu0 0
  %273 = vmatpush2.bf16.msra.mxu0 0
  %274 = vmatprep.subr.bf16.mxu0 0
  %275 = vmatpush2.bf16.msra.mxu0 0
  %276 = vmatprep.subr.bf16.mxu0 0
  %277 = vmatpush2.bf16.msra.mxu0 0
  %278 = vmatprep.mubr.bf16.mxu0 0
  %279 = vmatmul.mubr.bf16.gmra.mxu0 %v194
  %v280 = vpop.f32.mrf.mxu0
  %v281 = vadd.f32 %v176, %v280
  %v282 = vpop.f32.mrf.mxu0
  %v283 = vpop.f32.mrf.mxu0
  %v284 = vadd.f32 %v179, %v283
  %v285 = vpop.f32.mrf.mxu0
  %286 = vmatprep.mubr.bf16.mxu0 0
  %287 = vmatmul.mubr.bf16.gmra.mxu0 %v195
  %v288 = vpop.f32.mrf.mxu0
  %v289 = vadd.f32 %v184, %v288
  %v290 = vpop.f32.mrf.mxu0
  %v291 = vpop.f32.mrf.mxu0
  %v292 = vadd.f32 %v187, %v291
  %v293 = vpop.f32.mrf.mxu0
  %294 = vdwg.mxu0
  %vm295 = vcmask 1041408
  %vm296 = vcmask 1045508
  %vm297 = vmor %vm295, %vm296
  %v298 = vrot.slane %v24, 6
  %v299 = vrot.slane %v298, 4
  %v300 = vrot.slane %v25, 6
  %v301 = vsel %vm297, %v299, %v300
  %v302 = vrot.slane %v300, 4
  %v303 = vrot.slane %v26, 6
  %v304 = vsel %vm297, %v302, %v303
  %v305 = vrot.slane %v27, 6
  %v306 = vrot.slane %v305, 4
  %v307 = vrot.slane %v28, 6
  %v308 = vsel %vm297, %v306, %v307
  %v309 = vrot.slane %v307, 4
  %v310 = vrot.slane %v29, 6
  %v311 = vsel %vm297, %v309, %v310
  %v312 = vld [vmem:[%s1 + $0x80] sm:$0xf]
  %v313 = vld [vmem:[%s1 + $0x84] sm:$0xf]
  %v314 = vld [vmem:[%s1 + $0x88] sm:$0xf]
  %v315 = vld [vmem:[%s1 + $0x8c] sm:$0xf]
  %v316 = vld [vmem:[%s1 + $0x90] sm:$0xf]
  %v317 = vld [vmem:[%s1 + $0x94] sm:$0xf]
  %v318 = vld [vmem:[%s1 + $0x98] sm:$0xf]
  %v319 = vld [vmem:[%s1 + $0x9c] sm:$0xf]
  %v320 = vld [vmem:[%s1 + $0xa0] sm:$0xf]
  %v321 = vld [vmem:[%s1 + $0xa4] sm:$0xf]
  %v322 = vld [vmem:[%s1 + $0xa8] sm:$0xf]
  %v323 = vld [vmem:[%s1 + $0xac] sm:$0xf]
  %v324 = vld [vmem:[%s1 + $0xb0] sm:$0xf]
  %v325 = vld [vmem:[%s1 + $0xb4] sm:$0xf]
  %v326 = vld [vmem:[%s1 + $0xb8] sm:$0xf]
  %v327 = vld [vmem:[%s1 + $0xbc] sm:$0xf]
  %v328 = vunpack.c.l.b16 %v301
  %v329 = vunpack.c.l.b16 %v304
  %v330 = vunpack.c.l.b16 %v308
  %v331 = vunpack.c.l.b16 %v311
  %v332 = vpack.c.b16 %v329, %v328
  %v333 = vpack.c.b16 %v331, %v330
  %v352 = vunpack.c.l.b16 %v312
  %v353 = vunpack.c.l.b16 %v313
  %v354 = vunpack.c.l.b16 %v314
  %v355 = vunpack.c.l.b16 %v315
  %v356 = vunpack.c.l.b16 %v316
  %v357 = vunpack.c.l.b16 %v317
  %v358 = vunpack.c.l.b16 %v318
  %v359 = vunpack.c.l.b16 %v319
  %v360 = vunpack.c.l.b16 %v320
  %v361 = vunpack.c.l.b16 %v321
  %v362 = vunpack.c.l.b16 %v322
  %v363 = vunpack.c.l.b16 %v323
  %v364 = vunpack.c.l.b16 %v324
  %v365 = vunpack.c.l.b16 %v325
  %v366 = vunpack.c.l.b16 %v326
  %v367 = vunpack.c.l.b16 %v327
  %v368 = vpack.c.b16 %v353, %v352
  %v369 = vpack.c.b16 %v355, %v354
  %v370 = vpack.c.b16 %v357, %v356
  %v371 = vpack.c.b16 %v359, %v358
  %v372 = vpack.c.b16 %v361, %v360
  %v373 = vpack.c.b16 %v363, %v362
  %v374 = vpack.c.b16 %v365, %v364
  %v375 = vpack.c.b16 %v367, %v366
  %384 = vmatprep.subr.bf16.mxu0 0
  %385 = vmatpush1.bf16.msra.mxu0 %v375
  %386 = vmatprep.subr.bf16.mxu0 0
  %387 = vmatpush1.bf16.msra.mxu0 %v374
  %388 = vmatprep.subr.bf16.mxu0 0
  %389 = vmatpush1.bf16.msra.mxu0 %v373
  %390 = vmatprep.subr.bf16.mxu0 0
  %391 = vmatpush1.bf16.msra.mxu0 %v372
  %392 = vmatprep.subr.bf16.mxu0 0
  %393 = vmatpush1.bf16.msra.mxu0 %v371
  %394 = vmatprep.subr.bf16.mxu0 0
  %395 = vmatpush1.bf16.msra.mxu0 %v370
  %396 = vmatprep.subr.bf16.mxu0 0
  %397 = vmatpush1.bf16.msra.mxu0 %v369
  %398 = vmatprep.subr.bf16.mxu0 0
  %399 = vmatpush1.bf16.msra.mxu0 %v368
  %400 = vmatprep.subr.bf16.mxu0 0
  %401 = vmatpush2.bf16.msra.mxu0 0
  %402 = vmatprep.subr.bf16.mxu0 0
  %403 = vmatpush2.bf16.msra.mxu0 0
  %404 = vmatprep.subr.bf16.mxu0 0
  %405 = vmatpush2.bf16.msra.mxu0 0
  %406 = vmatprep.subr.bf16.mxu0 0
  %407 = vmatpush2.bf16.msra.mxu0 0
  %408 = vmatprep.subr.bf16.mxu0 0
  %409 = vmatpush2.bf16.msra.mxu0 0
  %410 = vmatprep.subr.bf16.mxu0 0
  %411 = vmatpush2.bf16.msra.mxu0 0
  %412 = vmatprep.subr.bf16.mxu0 0
  %413 = vmatpush2.bf16.msra.mxu0 0
  %414 = vmatprep.subr.bf16.mxu0 0
  %415 = vmatpush2.bf16.msra.mxu0 0
  %416 = vmatprep.mubr.bf16.mxu0 0
  %417 = vmatmul.mubr.bf16.gmra.mxu0 %v332
  %v418 = vpop.f32.mrf.mxu0
  %v419 = vadd.f32 0.0, %v418
  %v420 = vpop.f32.mrf.mxu0
  %v421 = vpop.f32.mrf.mxu0
  %v422 = vadd.f32 0.0, %v421
  %v423 = vpop.f32.mrf.mxu0
  %424 = vmatprep.mubr.bf16.mxu0 0
  %425 = vmatmul.mubr.bf16.gmra.mxu0 %v333
  %v426 = vpop.f32.mrf.mxu0
  %v427 = vadd.f32 0.0, %v426
  %v428 = vpop.f32.mrf.mxu0
  %v429 = vpop.f32.mrf.mxu0
  %v430 = vadd.f32 0.0, %v429
  %v431 = vpop.f32.mrf.mxu0
  %432 = vdwg.mxu0
  %v433 = vadd.f32 %v281, %v419
  %v434 = vadd.f32 %v284, %v422
  %v435 = vadd.f32 %v289, %v427
  %v436 = vadd.f32 %v292, %v430
  %vm437 = vcmask 1040384
  %vm438 = vcmask 1044484
  %vm439 = vmor %vm437, %vm438
  %v440 = vrot.slane %v24, 7
  %v441 = vrot.slane %v440, 4
  %v442 = vrot.slane %v25, 7
  %v443 = vsel %vm439, %v441, %v442
  %v444 = vrot.slane %v442, 4
  %v445 = vrot.slane %v26, 7
  %v446 = vsel %vm439, %v444, %v445
  %v447 = vrot.slane %v27, 7
  %v448 = vrot.slane %v447, 4
  %v449 = vrot.slane %v28, 7
  %v450 = vsel %vm439, %v448, %v449
  %v451 = vrot.slane %v449, 4
  %v452 = vrot.slane %v29, 7
  %v453 = vsel %vm439, %v451, %v452
  %v454 = vld [vmem:[%s1 + $0xc0] sm:$0xf]
  %v455 = vld [vmem:[%s1 + $0xc4] sm:$0xf]
  %v456 = vld [vmem:[%s1 + $0xc8] sm:$0xf]
  %v457 = vld [vmem:[%s1 + $0xcc] sm:$0xf]
  %v458 = vld [vmem:[%s1 + $0xd0] sm:$0xf]
  %v459 = vld [vmem:[%s1 + $0xd4] sm:$0xf]
  %v460 = vld [vmem:[%s1 + $0xd8] sm:$0xf]
  %v461 = vld [vmem:[%s1 + $0xdc] sm:$0xf]
  %v462 = vld [vmem:[%s1 + $0xe0] sm:$0xf]
  %v463 = vld [vmem:[%s1 + $0xe4] sm:$0xf]
  %v464 = vld [vmem:[%s1 + $0xe8] sm:$0xf]
  %v465 = vld [vmem:[%s1 + $0xec] sm:$0xf]
  %v466 = vld [vmem:[%s1 + $0xf0] sm:$0xf]
  %v467 = vld [vmem:[%s1 + $0xf4] sm:$0xf]
  %v468 = vld [vmem:[%s1 + $0xf8] sm:$0xf]
  %v469 = vld [vmem:[%s1 + $0xfc] sm:$0xf]
  %v470 = vunpack.c.l.b16 %v443
  %v471 = vunpack.c.l.b16 %v446
  %v472 = vunpack.c.l.b16 %v450
  %v473 = vunpack.c.l.b16 %v453
  %v474 = vpack.c.b16 %v471, %v470
  %v475 = vpack.c.b16 %v473, %v472
  %v494 = vunpack.c.l.b16 %v454
  %v495 = vunpack.c.l.b16 %v455
  %v496 = vunpack.c.l.b16 %v456
  %v497 = vunpack.c.l.b16 %v457
  %v498 = vunpack.c.l.b16 %v458
  %v499 = vunpack.c.l.b16 %v459
  %v500 = vunpack.c.l.b16 %v460
  %v501 = vunpack.c.l.b16 %v461
  %v502 = vunpack.c.l.b16 %v462
  %v503 = vunpack.c.l.b16 %v463
  %v504 = vunpack.c.l.b16 %v464
  %v505 = vunpack.c.l.b16 %v465
  %v506 = vunpack.c.l.b16 %v466
  %v507 = vunpack.c.l.b16 %v467
  %v508 = vunpack.c.l.b16 %v468
  %v509 = vunpack.c.l.b16 %v469
  %v510 = vpack.c.b16 %v495, %v494
  %v511 = vpack.c.b16 %v497, %v496
  %v512 = vpack.c.b16 %v499, %v498
  %v513 = vpack.c.b16 %v501, %v500
  %v514 = vpack.c.b16 %v503, %v502
  %v515 = vpack.c.b16 %v505, %v504
  %v516 = vpack.c.b16 %v507, %v506
  %v517 = vpack.c.b16 %v509, %v508
  %526 = vmatprep.subr.bf16.mxu0 0
  %527 = vmatpush1.bf16.msra.mxu0 %v517
  %528 = vmatprep.subr.bf16.mxu0 0
  %529 = vmatpush1.bf16.msra.mxu0 %v516
  %530 = vmatprep.subr.bf16.mxu0 0
  %531 = vmatpush1.bf16.msra.mxu0 %v515
  %532 = vmatprep.subr.bf16.mxu0 0
  %533 = vmatpush1.bf16.msra.mxu0 %v514
  %534 = vmatprep.subr.bf16.mxu0 0
  %535 = vmatpush1.bf16.msra.mxu0 %v513
  %536 = vmatprep.subr.bf16.mxu0 0
  %537 = vmatpush1.bf16.msra.mxu0 %v512
  %538 = vmatprep.subr.bf16.mxu0 0
  %539 = vmatpush1.bf16.msra.mxu0 %v511
  %540 = vmatprep.subr.bf16.mxu0 0
  %541 = vmatpush1.bf16.msra.mxu0 %v510
  %542 = vmatprep.subr.bf16.mxu0 0
  %543 = vmatpush2.bf16.msra.mxu0 0
  %544 = vmatprep.subr.bf16.mxu0 0
  %545 = vmatpush2.bf16.msra.mxu0 0
  %546 = vmatprep.subr.bf16.mxu0 0
  %547 = vmatpush2.bf16.msra.mxu0 0
  %548 = vmatprep.subr.bf16.mxu0 0
  %549 = vmatpush2.bf16.msra.mxu0 0
  %550 = vmatprep.subr.bf16.mxu0 0
  %551 = vmatpush2.bf16.msra.mxu0 0
  %552 = vmatprep.subr.bf16.mxu0 0
  %553 = vmatpush2.bf16.msra.mxu0 0
  %554 = vmatprep.subr.bf16.mxu0 0
  %555 = vmatpush2.bf16.msra.mxu0 0
  %556 = vmatprep.subr.bf16.mxu0 0
  %557 = vmatpush2.bf16.msra.mxu0 0
  %558 = vmatprep.mubr.bf16.mxu0 0
  %559 = vmatmul.mubr.bf16.gmra.mxu0 %v474
  %v560 = vpop.f32.mrf.mxu0
  %v561 = vadd.f32 0.0, %v560
  %v562 = vpop.f32.mrf.mxu0
  %v563 = vpop.f32.mrf.mxu0
  %v564 = vadd.f32 0.0, %v563
  %v565 = vpop.f32.mrf.mxu0
  %566 = vmatprep.mubr.bf16.mxu0 0
  %567 = vmatmul.mubr.bf16.gmra.mxu0 %v475
  %v568 = vpop.f32.mrf.mxu0
  %v569 = vadd.f32 0.0, %v568
  %v570 = vpop.f32.mrf.mxu0
  %v571 = vpop.f32.mrf.mxu0
  %v572 = vadd.f32 0.0, %v571
  %v573 = vpop.f32.mrf.mxu0
  %574 = vdwg.mxu0
  %v575 = vadd.f32 %v433, %v561
  %v576 = vadd.f32 %v434, %v564
  %v577 = vadd.f32 %v435, %v569
  %v578 = vadd.f32 %v436, %v572
  %v579 = vld [vmem:[%s1 + $0x100] sm:$0xf]
  %v580 = vld [vmem:[%s1 + $0x104] sm:$0xf]
  %v581 = vld [vmem:[%s1 + $0x108] sm:$0xf]
  %v582 = vld [vmem:[%s1 + $0x10c] sm:$0xf]
  %v583 = vld [vmem:[%s1 + $0x110] sm:$0xf]
  %v584 = vld [vmem:[%s1 + $0x114] sm:$0xf]
  %v585 = vld [vmem:[%s1 + $0x118] sm:$0xf]
  %v586 = vld [vmem:[%s1 + $0x11c] sm:$0xf]
  %v587 = vld [vmem:[%s1 + $0x120] sm:$0xf]
  %v588 = vld [vmem:[%s1 + $0x124] sm:$0xf]
  %v589 = vld [vmem:[%s1 + $0x128] sm:$0xf]
  %v590 = vld [vmem:[%s1 + $0x12c] sm:$0xf]
  %v591 = vld [vmem:[%s1 + $0x130] sm:$0xf]
  %v592 = vld [vmem:[%s1 + $0x134] sm:$0xf]
  %v593 = vld [vmem:[%s1 + $0x138] sm:$0xf]
  %v594 = vld [vmem:[%s1 + $0x13c] sm:$0xf]
  %v595 = vunpack.c.l.b16 %v26
  %v596 = vunpack.c.l.b16 %v29
  %v597 = vpack.c.b16 %v595, %v191
  %v598 = vpack.c.b16 %v596, %v193
  %v617 = vunpack.c.l.b16 %v579
  %v618 = vunpack.c.l.b16 %v580
  %v619 = vunpack.c.l.b16 %v581
  %v620 = vunpack.c.l.b16 %v582
  %v621 = vunpack.c.l.b16 %v583
  %v622 = vunpack.c.l.b16 %v584
  %v623 = vunpack.c.l.b16 %v585
  %v624 = vunpack.c.l.b16 %v586
  %v625 = vunpack.c.l.b16 %v587
  %v626 = vunpack.c.l.b16 %v588
  %v627 = vunpack.c.l.b16 %v589
  %v628 = vunpack.c.l.b16 %v590
  %v629 = vunpack.c.l.b16 %v591
  %v630 = vunpack.c.l.b16 %v592
  %v631 = vunpack.c.l.b16 %v593
  %v632 = vunpack.c.l.b16 %v594
  %v633 = vpack.c.b16 %v618, %v617
  %v634 = vpack.c.b16 %v620, %v619
  %v635 = vpack.c.b16 %v622, %v621
  %v636 = vpack.c.b16 %v624, %v623
  %v637 = vpack.c.b16 %v626, %v625
  %v638 = vpack.c.b16 %v628, %v627
  %v639 = vpack.c.b16 %v630, %v629
  %v640 = vpack.c.b16 %v632, %v631
  %649 = vmatprep.subr.bf16.mxu0 0
  %650 = vmatpush1.bf16.msra.mxu0 %v640
  %651 = vmatprep.subr.bf16.mxu0 0
  %652 = vmatpush1.bf16.msra.mxu0 %v639
  %653 = vmatprep.subr.bf16.mxu0 0
  %654 = vmatpush1.bf16.msra.mxu0 %v638
  %655 = vmatprep.subr.bf16.mxu0 0
  %656 = vmatpush1.bf16.msra.mxu0 %v637
  %657 = vmatprep.subr.bf16.mxu0 0
  %658 = vmatpush1.bf16.msra.mxu0 %v636
  %659 = vmatprep.subr.bf16.mxu0 0
  %660 = vmatpush1.bf16.msra.mxu0 %v635
  %661 = vmatprep.subr.bf16.mxu0 0
  %662 = vmatpush1.bf16.msra.mxu0 %v634
  %663 = vmatprep.subr.bf16.mxu0 0
  %664 = vmatpush1.bf16.msra.mxu0 %v633
  %665 = vmatprep.subr.bf16.mxu0 0
  %666 = vmatpush2.bf16.msra.mxu0 0
  %667 = vmatprep.subr.bf16.mxu0 0
  %668 = vmatpush2.bf16.msra.mxu0 0
  %669 = vmatprep.subr.bf16.mxu0 0
  %670 = vmatpush2.bf16.msra.mxu0 0
  %671 = vmatprep.subr.bf16.mxu0 0
  %672 = vmatpush2.bf16.msra.mxu0 0
  %673 = vmatprep.subr.bf16.mxu0 0
  %674 = vmatpush2.bf16.msra.mxu0 0
  %675 = vmatprep.subr.bf16.mxu0 0
  %676 = vmatpush2.bf16.msra.mxu0 0
  %677 = vmatprep.subr.bf16.mxu0 0
  %678 = vmatpush2.bf16.msra.mxu0 0
  %679 = vmatprep.subr.bf16.mxu0 0
  %680 = vmatpush2.bf16.msra.mxu0 0
  %681 = vmatprep.mubr.bf16.mxu0 0
  %682 = vmatmul.mubr.bf16.gmra.mxu0 %v597
  %v683 = vpop.f32.mrf.mxu0
  %v684 = vadd.f32 0.0, %v683
  %v685 = vpop.f32.mrf.mxu0
  %v686 = vpop.f32.mrf.mxu0
  %v687 = vadd.f32 0.0, %v686
  %v688 = vpop.f32.mrf.mxu0
  %689 = vmatprep.mubr.bf16.mxu0 0
  %690 = vmatmul.mubr.bf16.gmra.mxu0 %v598
  %v691 = vpop.f32.mrf.mxu0
  %v692 = vadd.f32 0.0, %v691
  %v693 = vpop.f32.mrf.mxu0
  %v694 = vpop.f32.mrf.mxu0
  %v695 = vadd.f32 0.0, %v694
  %v696 = vpop.f32.mrf.mxu0
  %697 = vdwg.mxu0
  %v698 = vadd.f32 %v575, %v684
  %v699 = vadd.f32 %v576, %v687
  %v700 = vadd.f32 %v577, %v692
  %v701 = vadd.f32 %v578, %v695
  %v702 = vld [vmem:[%s2] sm:$0x1]
  %v703 = vlaneseq
  %v704 = vshrl.u32 %v703, 7
  %v705 = vsub.s32 0, %v704
  %v706 = vrot.slane %v702, %v705
  %v707 = vmul.f32 %v698, %v706
  %v708 = vmul.f32 %v699, %v706
  %v709 = vmul.f32 %v700, %v706
  %v710 = vmul.f32 %v701, %v706
  %v711 = vld [vmem:[%s2 + $0x1] sm:$0x1]
  %v712 = vlaneseq
  %v713 = vshrl.u32 %v712, 7
  %v714 = vsub.s32 0, %v713
  %v715 = vrot.slane %v711, %v714
  %v716 = vadd.f32 %v707, %v715
  %v717 = vadd.f32 %v708, %v715
  %v718 = vadd.f32 %v709, %v715
  %v719 = vadd.f32 %v710, %v715
  %vm720 = vcmp.ge.f32.partialorder %v716, 0.0
  %vm721 = vcmp.ge.f32.partialorder %v717, 0.0
  %vm722 = vcmp.ge.f32.partialorder %v718, 0.0
  %vm723 = vcmp.ge.f32.partialorder %v719, 0.0
  %v724 = vld [vmem:[%s2 + $0x2] sm:$0x1]
  %v725 = vlaneseq
  %v726 = vshrl.u32 %v725, 7
  %v727 = vsub.s32 0, %v726
  %v728 = vrot.slane %v724, %v727
  %v729 = vmul.f32 %v716, %v728
  %v730 = vmul.f32 %v717, %v728
  %v731 = vmul.f32 %v718, %v728
  %v732 = vmul.f32 %v719, %v728
  %v733 = vsel %vm720, %v716, %v729
  %v734 = vsel %vm721, %v717, %v730
  %v735 = vsel %vm722, %v718, %v731
  %v736 = vsel %vm723, %v719, %v732
  %v737 = vld [vmem:[%s3] sm:$0xff]
  %v738 = vld [vmem:[%s3 + $0x8] sm:$0xff]
  %v739 = vld [vmem:[%s3 + $0x10] sm:$0xff]
  %v740 = vld [vmem:[%s3 + $0x18] sm:$0xff]
  %v741 = vld [vmem:[%s4] sm:$0xf]
  %v742 = vld [vmem:[%s4 + $0x4] sm:$0xf]
  %v743 = vld [vmem:[%s4 + $0x8] sm:$0xf]
  %v744 = vld [vmem:[%s4 + $0xc] sm:$0xf]
  %v745 = vld [vmem:[%s4 + $0x10] sm:$0xf]
  %v746 = vld [vmem:[%s4 + $0x14] sm:$0xf]
  %v747 = vld [vmem:[%s4 + $0x18] sm:$0xf]
  %v748 = vld [vmem:[%s4 + $0x1c] sm:$0xf]
  %v749 = vld [vmem:[%s4 + $0x20] sm:$0xf]
  %v750 = vld [vmem:[%s4 + $0x24] sm:$0xf]
  %v751 = vld [vmem:[%s4 + $0x28] sm:$0xf]
  %v752 = vld [vmem:[%s4 + $0x2c] sm:$0xf]
  %v753 = vld [vmem:[%s4 + $0x30] sm:$0xf]
  %v754 = vld [vmem:[%s4 + $0x34] sm:$0xf]
  %v755 = vld [vmem:[%s4 + $0x38] sm:$0xf]
  %v756 = vld [vmem:[%s4 + $0x3c] sm:$0xf]
  %v757 = vld [vmem:[%s4 + $0x40] sm:$0xf]
  %v758 = vld [vmem:[%s4 + $0x44] sm:$0xf]
  %v759 = vld [vmem:[%s4 + $0x48] sm:$0xf]
  %v760 = vld [vmem:[%s4 + $0x4c] sm:$0xf]
  %v761 = vld [vmem:[%s4 + $0x50] sm:$0xf]
  %v762 = vld [vmem:[%s4 + $0x54] sm:$0xf]
  %v763 = vld [vmem:[%s4 + $0x58] sm:$0xf]
  %v764 = vld [vmem:[%s4 + $0x5c] sm:$0xf]
  %v765 = vld [vmem:[%s4 + $0x60] sm:$0xf]
  %v766 = vld [vmem:[%s4 + $0x64] sm:$0xf]
  %v767 = vld [vmem:[%s4 + $0x68] sm:$0xf]
  %v768 = vld [vmem:[%s4 + $0x6c] sm:$0xf]
  %v769 = vld [vmem:[%s4 + $0x70] sm:$0xf]
  %v770 = vld [vmem:[%s4 + $0x74] sm:$0xf]
  %v771 = vld [vmem:[%s4 + $0x78] sm:$0xf]
  %v772 = vld [vmem:[%s4 + $0x7c] sm:$0xf]
  %v773 = vld [vmem:[%s5] sm:$0x1]
  %v774 = vlaneseq
  %v775 = vshrl.u32 %v774, 7
  %v776 = vsub.s32 0, %v775
  %v777 = vrot.slane %v773, %v776
  %v782 = vunpack.c.l.b16 %v737
  %v783 = vunpack.c.h.b16 %v737
  %v784 = vunpack.c.l.b16 %v738
  %v785 = vunpack.c.h.b16 %v738
  %v786 = vunpack.c.l.b16 %v739
  %v787 = vunpack.c.h.b16 %v739
  %v788 = vunpack.c.l.b16 %v740
  %v789 = vunpack.c.h.b16 %v740
  %v790 = vpack.c.b16 %v784, %v782
  %v791 = vpack.c.b16 %v785, %v783
  %v792 = vpack.c.b16 %v788, %v786
  %v793 = vpack.c.b16 %v789, %v787
  %v830 = vunpack.c.l.b16 %v741
  %v831 = vunpack.c.l.b16 %v742
  %v832 = vunpack.c.l.b16 %v743
  %v833 = vunpack.c.l.b16 %v744
  %v834 = vunpack.c.l.b16 %v745
  %v835 = vunpack.c.l.b16 %v746
  %v836 = vunpack.c.l.b16 %v747
  %v837 = vunpack.c.l.b16 %v748
  %v838 = vunpack.c.l.b16 %v749
  %v839 = vunpack.c.l.b16 %v750
  %v840 = vunpack.c.l.b16 %v751
  %v841 = vunpack.c.l.b16 %v752
  %v842 = vunpack.c.l.b16 %v753
  %v843 = vunpack.c.l.b16 %v754
  %v844 = vunpack.c.l.b16 %v755
  %v845 = vunpack.c.l.b16 %v756
  %v846 = vunpack.c.l.b16 %v757
  %v847 = vunpack.c.l.b16 %v758
  %v848 = vunpack.c.l.b16 %v759
  %v849 = vunpack.c.l.b16 %v760
  %v850 = vunpack.c.l.b16 %v761
  %v851 = vunpack.c.l.b16 %v762
  %v852 = vunpack.c.l.b16 %v763
  %v853 = vunpack.c.l.b16 %v764
  %v854 = vunpack.c.l.b16 %v765
  %v855 = vunpack.c.l.b16 %v766
  %v856 = vunpack.c.l.b16 %v767
  %v857 = vunpack.c.l.b16 %v768
  %v858 = vunpack.c.l.b16 %v769
  %v859 = vunpack.c.l.b16 %v770
  %v860 = vunpack.c.l.b16 %v771
  %v861 = vunpack.c.l.b16 %v772
  %v862 = vpack.c.b16 %v831, %v830
  %v863 = vpack.c.b16 %v833, %v832
  %v864 = vpack.c.b16 %v835, %v834
  %v865 = vpack.c.b16 %v837, %v836
  %v866 = vpack.c.b16 %v839, %v838
  %v867 = vpack.c.b16 %v841, %v840
  %v868 = vpack.c.b16 %v843, %v842
  %v869 = vpack.c.b16 %v845, %v844
  %v870 = vpack.c.b16 %v847, %v846
  %v871 = vpack.c.b16 %v849, %v848
  %v872 = vpack.c.b16 %v851, %v850
  %v873 = vpack.c.b16 %v853, %v852
  %v874 = vpack.c.b16 %v855, %v854
  %v875 = vpack.c.b16 %v857, %v856
  %v876 = vpack.c.b16 %v859, %v858
  %v877 = vpack.c.b16 %v861, %v860
  %894 = vmatprep.subr.bf16.mxu0 0
  %895 = vmatpush1.bf16.msra.mxu0 %v869
  %896 = vmatprep.subr.bf16.mxu0 0
  %897 = vmatpush1.bf16.msra.mxu0 %v868
  %898 = vmatprep.subr.bf16.mxu0 0
  %899 = vmatpush1.bf16.msra.mxu0 %v867
  %900 = vmatprep.subr.bf16.mxu0 0
  %901 = vmatpush1.bf16.msra.mxu0 %v866
  %902 = vmatprep.subr.bf16.mxu0 0
  %903 = vmatpush1.bf16.msra.mxu0 %v865
  %904 = vmatprep.subr.bf16.mxu0 0
  %905 = vmatpush1.bf16.msra.mxu0 %v864
  %906 = vmatprep.subr.bf16.mxu0 0
  %907 = vmatpush1.bf16.msra.mxu0 %v863
  %908 = vmatprep.subr.bf16.mxu0 0
  %909 = vmatpush1.bf16.msra.mxu0 %v862
  %910 = vmatprep.subr.bf16.mxu0 0
  %911 = vmatpush2.bf16.msra.mxu0 %v877
  %912 = vmatprep.subr.bf16.mxu0 0
  %913 = vmatpush2.bf16.msra.mxu0 %v876
  %914 = vmatprep.subr.bf16.mxu0 0
  %915 = vmatpush2.bf16.msra.mxu0 %v875
  %916 = vmatprep.subr.bf16.mxu0 0
  %917 = vmatpush2.bf16.msra.mxu0 %v874
  %918 = vmatprep.subr.bf16.mxu0 0
  %919 = vmatpush2.bf16.msra.mxu0 %v873
  %920 = vmatprep.subr.bf16.mxu0 0
  %921 = vmatpush2.bf16.msra.mxu0 %v872
  %922 = vmatprep.subr.bf16.mxu0 0
  %923 = vmatpush2.bf16.msra.mxu0 %v871
  %924 = vmatprep.subr.bf16.mxu0 0
  %925 = vmatpush2.bf16.msra.mxu0 %v870
  %926 = vmatprep.mubr.bf16.mxu0 %v791
  %927 = vmatmul.mubr.bf16.gmra.mxu0 %v790
  %v928 = vpop.f32.mrf.mxu0
  %v929 = vadd.f32 %v777, %v928
  %v930 = vpop.f32.mrf.mxu0
  %v931 = vpop.f32.mrf.mxu0
  %v932 = vadd.f32 %v777, %v931
  %v933 = vpop.f32.mrf.mxu0
  %934 = vmatprep.mubr.bf16.mxu0 %v793
  %935 = vmatmul.mubr.bf16.gmra.mxu0 %v792
  %v936 = vpop.f32.mrf.mxu0
  %v937 = vadd.f32 %v777, %v936
  %v938 = vpop.f32.mrf.mxu0
  %v939 = vpop.f32.mrf.mxu0
  %v940 = vadd.f32 %v777, %v939
  %v941 = vpop.f32.mrf.mxu0
  %942 = vdwg.mxu0
  %v943 = vadd.f32 %v733, %v929
  %v944 = vadd.f32 %v734, %v932
  %v945 = vadd.f32 %v735, %v937
  %v946 = vadd.f32 %v736, %v940
  %vm947 = vcmp.ge.f32.partialorder %v943, 0.0
  %vm948 = vcmp.ge.f32.partialorder %v944, 0.0
  %vm949 = vcmp.ge.f32.partialorder %v945, 0.0
  %vm950 = vcmp.ge.f32.partialorder %v946, 0.0
  %v951 = vld [vmem:[%s5 + $0x1] sm:$0x1]
  %v952 = vlaneseq
  %v953 = vshrl.u32 %v952, 7
  %v954 = vsub.s32 0, %v953
  %v955 = vrot.slane %v951, %v954
  %v956 = vmul.f32 %v943, %v955
  %v957 = vmul.f32 %v944, %v955
  %v958 = vmul.f32 %v945, %v955
  %v959 = vmul.f32 %v946, %v955
  %v960 = vsel %vm947, %v943, %v956
  %v961 = vsel %vm948, %v944, %v957
  %v962 = vsel %vm949, %v945, %v958
  %v963 = vsel %vm950, %v946, %v959
  %v964 = vpack.c.bf16 %v961, %v960
  %v965 = vpack.c.bf16 %v963, %v962
  %v968 = vunpack.c.l.b16 %v964
  %v969 = vunpack.c.h.b16 %v964
  %v970 = vunpack.c.l.b16 %v965
  %v971 = vunpack.c.h.b16 %v965
  %v972 = vpack.c.b16 %v968, %v968
  %v973 = vpack.c.b16 %v969, %v969
  %v974 = vpack.c.b16 %v970, %v970
  %v975 = vpack.c.b16 %v971, %v971
  %980 = vst [vmem:[%s6] sm:$0xf] %v972
  %981 = vst [vmem:[%s6 + $0x4] sm:$0xf] %v973
  %982 = vst [vmem:[%s6 + $0x8] sm:$0xf] %v974
  %983 = vst [vmem:[%s6 + $0xc] sm:$0xf] %v975
  // Predicated region
  $region26: #{dense_tcn_forward.10} parent=0 // pred_check
    _
  $region27: #{dense_tcn_forward.10} parent=0 // pred_check_branch
    %985 = sbr.rel (0) target = $region29
  $region28: #{dense_tcn_forward.10} parent=0 // pred_region
    _
  $region29: #{dense_tcn_forward.10} parent=0 // pred_fallthru
    _
  // Predicated region
  $region30: #{dense_tcn_forward.10} parent=0 // pred_check
    _
  $region31: #{dense_tcn_forward.10} parent=0 // pred_check_branch
    %987 = sbr.rel (0) target = $region33
  $region32: #{dense_tcn_forward.10} parent=0 // pred_region
    _
  $region33: #{dense_tcn_forward.10} parent=0 // pred_fallthru
    _

// kernel: dense_tcn_forward.11
$region0: #{dense_tcn_forward.11}
  #allocation0 [shape = 'u32[]', space=smem, size = 0x4, offset = 0x4, fixed_abs, tag = 'smem constant byte address 0x4 - core index']
  #allocation1 [shape = 'u32[144,128]{1,0:T(1,128)}', space=vmem, size = 0x12000, scoped, tag = 'internal scratch']
  %s0 = inlined_call_operand.vmem [shape: f32[2,2], index: 0, kind: input, shape index: {}]
  %s1 = inlined_call_operand.vmem [shape: bf16[2,16,384], index: 1, kind: input, shape index: {}]
  %s2 = inlined_call_operand.vmem [shape: f32[384,128], index: 2, kind: input, shape index: {}]
  %s3 = inlined_call_operand.vmem [shape: f32[1,128], index: 3, kind: input, shape index: {}]
  %s4 = inlined_call_operand.hbm [shape: f32[2,128], index: 4, kind: output, shape index: {}]
  %s5 = sld [smem:[#allocation0]]
  $region26: #{dense_tcn_forward.11} parent=0
    _
  %s7 = ssub.s32 1, %s5
  %s8 = scalar_select 0, %s7, %s5
  $region1: #{dense_tcn_forward.11} parent=0
    #allocation2 [shape = 'u8[1024]{0}', space=vmem, size = 0x400, scoped, tag = 'output window, operand 0, single buffered']
    #allocation3 [shape = 's32[1]{0}', space=sflag, size = 0x4, scoped, tag = 'scoped memory for dense_tcn_forward.11']
    %9 = vsyncpa [#allocation3], 0
    // Predicated region
    $region2: #{dense_tcn_forward.11} parent=1 // pred_check
      _
    $region3: #{dense_tcn_forward.11} parent=1 // pred_check_branch
      %11 = sbr.rel (0) target = $region5
    $region4: #{dense_tcn_forward.11} parent=1 // pred_region
      _
    $region5: #{dense_tcn_forward.11} parent=1 // pred_fallthru
      _
    // Predicated region
    $region6: #{dense_tcn_forward.11} parent=1 // pred_check
      _
    $region7: #{dense_tcn_forward.11} parent=1 // pred_check_branch
      %13 = sbr.rel (0) target = $region9
    $region8: #{dense_tcn_forward.11} parent=1 // pred_region
      _
    $region9: #{dense_tcn_forward.11} parent=1 // pred_fallthru
      _
    // Predicated region
    $region10: #{dense_tcn_forward.11} parent=1 // pred_check
      _
    $region11: #{dense_tcn_forward.11} parent=1 // pred_check_branch
      %15 = sbr.rel (0) target = $region13
    $region12: #{dense_tcn_forward.11} parent=1 // pred_region
      _
    $region13: #{dense_tcn_forward.11} parent=1 // pred_fallthru
      _
    // Predicated region
    $region14: #{dense_tcn_forward.11} parent=1 // pred_check
      _
    $region15: #{dense_tcn_forward.11} parent=1 // pred_check_branch
      %17 = sbr.rel (0) target = $region17
    $region16: #{dense_tcn_forward.11} parent=1 // pred_region
      _
    $region17: #{dense_tcn_forward.11} parent=1 // pred_fallthru
      _
    %v18 = vld [vmem:[%s0] sm:$0x3]
    %v19 = vlaneseq
    %v20 = vand.u32 %v19, 127
    %v21 = vcvt.s32.f32 %v20
    %23 = vset.pattern.permute.xlu0 0
    %24 = vperm.xlu0 %23, %v18
    %v25 = vpop.permute.xlu0 %24
    %vm27 = vcmp.lt.f32.partialorder %v21, %v25
    %v28 = vsel %vm27, 1, 0
    %v29 = vcvt.s32.f32 %v28
    %v30 = vld [vmem:[%s1] sm:$0xff]
    %v31 = vld [vmem:[%s1 + $0x8] sm:$0xf]
    %v32 = vld [vmem:[%s1 + $0xc] sm:$0xff]
    %v33 = vld [vmem:[%s1 + $0x14] sm:$0xf]
    %v34 = vld [vmem:[%s1 + $0x18] sm:$0xff]
    %v35 = vld [vmem:[%s1 + $0x20] sm:$0xf]
    %v36 = vld [vmem:[%s1 + $0x24] sm:$0xff]
    %v37 = vld [vmem:[%s1 + $0x2c] sm:$0xf]
    %v38 = vunpack.c.l.bf16 %v30
    %v39 = vunpack.c.h.bf16 %v30
    %v40 = vunpack.c.l.bf16 %v31
    %v41 = vunpack.c.l.bf16 %v32
    %v42 = vunpack.c.h.bf16 %v32
    %v43 = vunpack.c.l.bf16 %v33
    %v44 = vunpack.c.l.bf16 %v34
    %v45 = vunpack.c.h.bf16 %v34
    %v46 = vunpack.c.l.bf16 %v35
    %v47 = vunpack.c.l.bf16 %v36
    %v48 = vunpack.c.h.bf16 %v36
    %v49 = vunpack.c.l.bf16 %v37
    %v50 = vlaneseq
    %v51 = vshrl.u32 %v50, 7
    %v52 = vsub.s32 0, %v51
    %v53 = vrot.slane %v29, %v52
    %55 = vbcast.lane.b32.xlu0 %v53, 256
    %v56 = vpop.permute.xlu0 %55
    %s58 = sor.u32 256, 8
    %59 = vbcast.lane.b32.xlu0 %v53, %s58
    %v60 = vpop.permute.xlu0 %59
    %v61 = vlaneseq
    %v62 = vshrl.u32 %v61, 7
    %v63 = vsub.s32 1, %v62
    %v64 = vrot.slane %v29, %v63
    %66 = vbcast.lane.b32.xlu0 %v64, 256
    %v67 = vpop.permute.xlu0 %66
    %s69 = sor.u32 256, 8
    %70 = vbcast.lane.b32.xlu0 %v64, %s69
    %v71 = vpop.permute.xlu0 %70
    %v72 = vmul.f32 %v38, %v56
    %v73 = vmul.f32 %v39, %v56
    %v74 = vmul.f32 %v40, %v56
    %v75 = vmul.f32 %v41, %v60
    %v76 = vmul.f32 %v42, %v60
    %v77 = vmul.f32 %v43, %v60
    %v78 = vmul.f32 %v44, %v67
    %v79 = vmul.f32 %v45, %v67
    %v80 = vmul.f32 %v46, %v67
    %v81 = vmul.f32 %v47, %v71
    %v82 = vmul.f32 %v48, %v71
    %v83 = vmul.f32 %v49, %v71
    %v84 = vadd.f32 %v72, %v75
    %v85 = vrot.slane %v84, 4
    %v86 = vadd.f32 %v84, %v85
    %v87 = vrot.slane %v86, 2
    %v88 = vadd.f32 %v86, %v87
    %v89 = vrot.slane %v88, 1
    %v90 = vadd.f32 %v88, %v89
    %v91 = vadd.f32 %v73, %v76
    %v92 = vrot.slane %v91, 4
    %v93 = vadd.f32 %v91, %v92
    %v94 = vrot.slane %v93, 2
    %v95 = vadd.f32 %v93, %v94
    %v96 = vrot.slane %v95, 1
    %v97 = vadd.f32 %v95, %v96
    %v98 = vadd.f32 %v74, %v77
    %v99 = vrot.slane %v98, 4
    %v100 = vadd.f32 %v98, %v99
    %v101 = vrot.slane %v100, 2
    %v102 = vadd.f32 %v100, %v101
    %v103 = vrot.slane %v102, 1
    %v104 = vadd.f32 %v102, %v103
    %v105 = vadd.f32 %v78, %v81
    %v106 = vrot.slane %v105, 4
    %v107 = vadd.f32 %v105, %v106
    %v108 = vrot.slane %v107, 2
    %v109 = vadd.f32 %v107, %v108
    %v110 = vrot.slane %v109, 1
    %v111 = vadd.f32 %v109, %v110
    %v112 = vadd.f32 %v79, %v82
    %v113 = vrot.slane %v112, 4
    %v114 = vadd.f32 %v112, %v113
    %v115 = vrot.slane %v114, 2
    %v116 = vadd.f32 %v114, %v115
    %v117 = vrot.slane %v116, 1
    %v118 = vadd.f32 %v116, %v117
    %v119 = vadd.f32 %v80, %v83
    %v120 = vrot.slane %v119, 4
    %v121 = vadd.f32 %v119, %v120
    %v122 = vrot.slane %v121, 2
    %v123 = vadd.f32 %v121, %v122
    %v124 = vrot.slane %v123, 1
    %v125 = vadd.f32 %v123, %v124
    %126 = vset.pattern.permute.xlu0 1
    %127 = vperm.xlu0 %126, %v18
    %v128 = vpop.permute.xlu0 %127
    %v129 = vrot.slane %v128, 1
    %v132 = vmul.f32 %v90, %v128
    %v133 = vmul.f32 %v97, %v128
    %v134 = vmul.f32 %v104, %v128
    %v135 = vmul.f32 %v111, %v129
    %v136 = vmul.f32 %v118, %v129
    %v137 = vmul.f32 %v125, %v129
    %v138 = vld [vmem:[%s2] sm:$0xff]
    %v139 = vld [vmem:[%s2 + $0x8] sm:$0xff]
    %v140 = vld [vmem:[%s2 + $0x10] sm:$0xff]
    %v141 = vld [vmem:[%s2 + $0x18] sm:$0xff]
    %v142 = vld [vmem:[%s2 + $0x20] sm:$0xff]
    %v143 = vld [vmem:[%s2 + $0x28] sm:$0xff]
    %v144 = vld [vmem:[%s2 + $0x30] sm:$0xff]
    %v145 = vld [vmem:[%s2 + $0x38] sm:$0xff]
    %v146 = vld [vmem:[%s2 + $0x40] sm:$0xff]
    %v147 = vld [vmem:[%s2 + $0x48] sm:$0xff]
    %v148 = vld [vmem:[%s2 + $0x50] sm:$0xff]
    %v149 = vld [vmem:[%s2 + $0x58] sm:$0xff]
    %v150 = vld [vmem:[%s2 + $0x60] sm:$0xff]
    %v151 = vld [vmem:[%s2 + $0x68] sm:$0xff]
    %v152 = vld [vmem:[%s2 + $0x70] sm:$0xff]
    %v153 = vld [vmem:[%s2 + $0x78] sm:$0xff]
    %v154 = vld [vmem:[%s2 + $0x80] sm:$0xff]
    %v155 = vld [vmem:[%s2 + $0x88] sm:$0xff]
    %v156 = vld [vmem:[%s2 + $0x90] sm:$0xff]
    %v157 = vld [vmem:[%s2 + $0x98] sm:$0xff]
    %v158 = vld [vmem:[%s2 + $0xa0] sm:$0xff]
    %v159 = vld [vmem:[%s2 + $0xa8] sm:$0xff]
    %v160 = vld [vmem:[%s2 + $0xb0] sm:$0xff]
    %v161 = vld [vmem:[%s2 + $0xb8] sm:$0xff]
    %v162 = vld [vmem:[%s2 + $0xc0] sm:$0xff]
    %v163 = vld [vmem:[%s2 + $0xc8] sm:$0xff]
    %v164 = vld [vmem:[%s2 + $0xd0] sm:$0xff]
    %v165 = vld [vmem:[%s2 + $0xd8] sm:$0xff]
    %v166 = vld [vmem:[%s2 + $0xe0] sm:$0xff]
    %v167 = vld [vmem:[%s2 + $0xe8] sm:$0xff]
    %v168 = vld [vmem:[%s2 + $0xf0] sm:$0xff]
    %v169 = vld [vmem:[%s2 + $0xf8] sm:$0xff]
    %v170 = vld [vmem:[%s2 + $0x100] sm:$0xff]
    %v171 = vld [vmem:[%s2 + $0x108] sm:$0xff]
    %v172 = vld [vmem:[%s2 + $0x110] sm:$0xff]
    %v173 = vld [vmem:[%s2 + $0x118] sm:$0xff]
    %v174 = vld [vmem:[%s2 + $0x120] sm:$0xff]
    %v175 = vld [vmem:[%s2 + $0x128] sm:$0xff]
    %v176 = vld [vmem:[%s2 + $0x130] sm:$0xff]
    %v177 = vld [vmem:[%s2 + $0x138] sm:$0xff]
    %v178 = vld [vmem:[%s2 + $0x140] sm:$0xff]
    %v179 = vld [vmem:[%s2 + $0x148] sm:$0xff]
    %v180 = vld [vmem:[%s2 + $0x150] sm:$0xff]
    %v181 = vld [vmem:[%s2 + $0x158] sm:$0xff]
    %v182 = vld [vmem:[%s2 + $0x160] sm:$0xff]
    %v183 = vld [vmem:[%s2 + $0x168] sm:$0xff]
    %v184 = vld [vmem:[%s2 + $0x170] sm:$0xff]
    %v185 = vld [vmem:[%s2 + $0x178] sm:$0xff]
    %v186 = vld [vmem:[%s3] sm:$0x1]
    %v188 = vlaneseq
    %v189 = vshrl.u32 %v188, 7
    %v190 = vsub.s32 0, %v189
    %v191 = vrot.slane %v186, %v190
    %v199 = vrot.slane %v135, 7
    %vm200 = vcmask 1041409
    %v201 = vsel %vm200, %v199, %v132
    %v202 = vrot.slane %v136, 7
    %v203 = vsel %vm200, %v202, %v133
    %v204 = vrot.slane %v137, 7
    %v205 = vsel %vm200, %v204, %v134
    %209 = vmatprep.subr.mxu0 0.0
    %210 = vmatpush1.msra.mxu0 %v153
    %211 = vmatprep.subr.mxu0 0.0
    %212 = vmatpush1.msra.mxu0 %v152
    %213 = vmatprep.subr.mxu0 0.0
    %214 = vmatpush1.msra.mxu0 %v151
    %215 = vmatprep.subr.mxu0 0.0
    %216 = vmatpush1.msra.mxu0 %v150
    %217 = vmatprep.subr.mxu0 0.0
    %218 = vmatpush1.msra.mxu0 %v149
    %219 = vmatprep.subr.mxu0 0.0
    %220 = vmatpush1.msra.mxu0 %v148
    %221 = vmatprep.subr.mxu0 0.0
    %222 = vmatpush1.msra.mxu0 %v147
    %223 = vmatprep.subr.mxu0 0.0
    %224 = vmatpush1.msra.mxu0 %v146
    %225 = vmatprep.subr.mxu0 0.0
    %226 = vmatpush1.msra.mxu0 %v145
    %227 = vmatprep.subr.mxu0 0.0
    %228 = vmatpush1.msra.mxu0 %v144
    %229 = vmatprep.subr.mxu0 0.0
    %230 = vmatpush1.msra.mxu0 %v143
    %231 = vmatprep.subr.mxu0 0.0
    %232 = vmatpush1.msra.mxu0 %v142
    %233 = vmatprep.subr.mxu0 0.0
    %234 = vmatpush1.msra.mxu0 %v141
    %235 = vmatprep.subr.mxu0 0.0
    %236 = vmatpush1.msra.mxu0 %v140
    %237 = vmatprep.subr.mxu0 0.0
    %238 = vmatpush1.msra.mxu0 %v139
    %239 = vmatprep.subr.mxu0 0.0
    %240 = vmatpush1.msra.mxu0 %v138
    %241 = vmatprep.subr.mxu0 0.0
    %242 = vmatpush2.msra.mxu0 %v169
    %243 = vmatprep.subr.mxu0 0.0
    %244 = vmatpush2.msra.mxu0 %v168
    %245 = vmatprep.subr.mxu0 0.0
    %246 = vmatpush2.msra.mxu0 %v167
    %247 = vmatprep.subr.mxu0 0.0
    %248 = vmatpush2.msra.mxu0 %v166
    %249 = vmatprep.subr.mxu0 0.0
    %250 = vmatpush2.msra.mxu0 %v165
    %251 = vmatprep.subr.mxu0 0.0
    %252 = vmatpush2.msra.mxu0 %v164
    %253 = vmatprep.subr.mxu0 0.0
    %254 = vmatpush2.msra.mxu0 %v163
    %255 = vmatprep.subr.mxu0 0.0
    %256 = vmatpush2.msra.mxu0 %v162
    %257 = vmatprep.subr.mxu0 0.0
    %258 = vmatpush2.msra.mxu0 %v161
    %259 = vmatprep.subr.mxu0 0.0
    %260 = vmatpush2.msra.mxu0 %v160
    %261 = vmatprep.subr.mxu0 0.0
    %262 = vmatpush2.msra.mxu0 %v159
    %263 = vmatprep.subr.mxu0 0.0
    %264 = vmatpush2.msra.mxu0 %v158
    %265 = vmatprep.subr.mxu0 0.0
    %266 = vmatpush2.msra.mxu0 %v157
    %267 = vmatprep.subr.mxu0 0.0
    %268 = vmatpush2.msra.mxu0 %v156
    %269 = vmatprep.subr.mxu0 0.0
    %270 = vmatpush2.msra.mxu0 %v155
    %271 = vmatprep.subr.mxu0 0.0
    %272 = vmatpush2.msra.mxu0 %v154
    %273 = vmatprep.mubr.f32.mxu0 %v203
    %274 = vmatmul.mubr.f32.gmra.mxu0 %v201
    %v275 = vpop.f32.mrf.mxu0
    %v276 = vadd.f32 %v191, %v275
    %v277 = vpop.f32.mrf.mxu0
    %278 = vdwg.mxu0
    %279 = vmatprep.subr.mxu0 0.0
    %280 = vmatpush1.msra.mxu0 %v185
    %281 = vmatprep.subr.mxu0 0.0
    %282 = vmatpush1.msra.mxu0 %v184
    %283 = vmatprep.subr.mxu0 0.0
    %284 = vmatpush1.msra.mxu0 %v183
    %285 = vmatprep.subr.mxu0 0.0
    %286 = vmatpush1.msra.mxu0 %v182
    %287 = vmatprep.subr.mxu0 0.0
    %288 = vmatpush1.msra.mxu0 %v181
    %289 = vmatprep.subr.mxu0 0.0
    %290 = vmatpush1.msra.mxu0 %v180
    %291 = vmatprep.subr.mxu0 0.0
    %292 = vmatpush1.msra.mxu0 %v179
    %293 = vmatprep.subr.mxu0 0.0
    %294 = vmatpush1.msra.mxu0 %v178
    %295 = vmatprep.subr.mxu0 0.0
    %296 = vmatpush1.msra.mxu0 %v177
    %297 = vmatprep.subr.mxu0 0.0
    %298 = vmatpush1.msra.mxu0 %v176
    %299 = vmatprep.subr.mxu0 0.0
    %300 = vmatpush1.msra.mxu0 %v175
    %301 = vmatprep.subr.mxu0 0.0
    %302 = vmatpush1.msra.mxu0 %v174
    %303 = vmatprep.subr.mxu0 0.0
    %304 = vmatpush1.msra.mxu0 %v173
    %305 = vmatprep.subr.mxu0 0.0
    %306 = vmatpush1.msra.mxu0 %v172
    %307 = vmatprep.subr.mxu0 0.0
    %308 = vmatpush1.msra.mxu0 %v171
    %309 = vmatprep.subr.mxu0 0.0
    %310 = vmatpush1.msra.mxu0 %v170
    %311 = vmatprep.subr.mxu0 0.0
    %312 = vmatpush2.msra.mxu0 0.0
    %313 = vmatprep.subr.mxu0 0.0
    %314 = vmatpush2.msra.mxu0 0.0
    %315 = vmatprep.subr.mxu0 0.0
    %316 = vmatpush2.msra.mxu0 0.0
    %317 = vmatprep.subr.mxu0 0.0
    %318 = vmatpush2.msra.mxu0 0.0
    %319 = vmatprep.subr.mxu0 0.0
    %320 = vmatpush2.msra.mxu0 0.0
    %321 = vmatprep.subr.mxu0 0.0
    %322 = vmatpush2.msra.mxu0 0.0
    %323 = vmatprep.subr.mxu0 0.0
    %324 = vmatpush2.msra.mxu0 0.0
    %325 = vmatprep.subr.mxu0 0.0
    %326 = vmatpush2.msra.mxu0 0.0
    %327 = vmatprep.subr.mxu0 0.0
    %328 = vmatpush2.msra.mxu0 0.0
    %329 = vmatprep.subr.mxu0 0.0
    %330 = vmatpush2.msra.mxu0 0.0
    %331 = vmatprep.subr.mxu0 0.0
    %332 = vmatpush2.msra.mxu0 0.0
    %333 = vmatprep.subr.mxu0 0.0
    %334 = vmatpush2.msra.mxu0 0.0
    %335 = vmatprep.subr.mxu0 0.0
    %336 = vmatpush2.msra.mxu0 0.0
    %337 = vmatprep.subr.mxu0 0.0
    %338 = vmatpush2.msra.mxu0 0.0
    %339 = vmatprep.subr.mxu0 0.0
    %340 = vmatpush2.msra.mxu0 0.0
    %341 = vmatprep.subr.mxu0 0.0
    %342 = vmatpush2.msra.mxu0 0.0
    %343 = vmatprep.mubr.f32.mxu0 0.0
    %344 = vmatmul.mubr.f32.gmra.mxu0 %v205
    %v345 = vpop.f32.mrf.mxu0
    %v346 = vadd.f32 %v276, %v345
    %v347 = vpop.f32.mrf.mxu0
    %348 = vdwg.mxu0
    %349 = vst [vmem:[#allocation2] sm:$0x3] %v346
    // Predicated region
    $region18: #{dense_tcn_forward.11} parent=1 // pred_check
      _
    $region19: #{dense_tcn_forward.11} parent=1 // pred_check_branch
      %351 = sbr.rel (0) target = $region21
    $region20: #{dense_tcn_forward.11} parent=1 // pred_region
      %s353 = ssub.s32 32, 32
      %354 = vsyncadd [#allocation3], %s353
      %s356 = sshll.u32 [#allocation2], 4
      %s357 = int_to_ptr.vmem [resolvable:$true] %s356
      %359 = dma.vmem_to_hbm [thread:$0]  %s357, 32, %s4, [#allocation3]
    $region21: #{dense_tcn_forward.11} parent=1 // pred_fallthru
      _
    // Predicated region
    $region22: #{dense_tcn_forward.11} parent=1 // pred_check
      _
    $region23: #{dense_tcn_forward.11} parent=1 // pred_check_branch
      %361 = sbr.rel (0) target = $region25
    $region24: #{dense_tcn_forward.11} parent=1 // pred_region
      %362 = dma.done [#allocation3], 32
    $region25: #{dense_tcn_forward.11} parent=1 // pred_fallthru
      _
    %363 = vsyncpa [#allocation3], 1

</llo_original>
